<compile_context>
chip_gen: v7x
topology: tpu7x:2x2x1
jax: 0.10.0
libtpu: 0.0.40
codegen_flags: <defaults>
</compile_context>

<pallas_src>
import functools

import jax
import jax.numpy as jnp
from jax.experimental import pallas as pl
from jax.experimental.pallas import tpu as pltpu

BN_EPS = 1e-5
NEG_SLOPE = 0.2
VMEM_LIMIT = 48 * 1024 * 1024  # explicit scoped-VMEM cap; safe on v5e/v6e/v7x


# ----------------------------------------------------------------------------
# helpers
# ----------------------------------------------------------------------------
def _round_up(x, m):
    return ((x + m - 1) // m) * m


def _n_tile(n):
    """Point-axis tile: lane-aligned (128) when possible, else a single tile."""
    if n % 128 == 0:
        return 128
    return n


def _row_tile(rows, target=1024):
    """Row tile that divides `rows`; multiple of 8 (or the full extent)."""
    if rows <= target:
        return rows
    t = (target // 8) * 8
    while t >= 8:
        if rows % t == 0:
            return t
        t -= 8
    return rows


# ----------------------------------------------------------------------------
# Pallas kernels
# ----------------------------------------------------------------------------
def _pdist_kernel(x_ref, out_ref):
    """Per-batch negative squared pairwise distance: out = -||xi - xj||^2."""
    x = x_ref[0]                                                    # (N, C) f32
    g = jax.lax.dot_general(x, x, (((1,), (1,)), ((), ())),
                            preferred_element_type=jnp.float32)     # (N, N)
    xsq = x * x
    sq_col = jnp.sum(xsq, axis=1, keepdims=True)                    # (N, 1)
    # Row orientation via a tiny MXU matmul (avoids a lane<->sublane transpose).
    ones_row = jnp.ones((1, x.shape[-1]), x.dtype)
    sq_row = jax.lax.dot_general(ones_row, xsq, (((1,), (1,)), ((), ())),
                                 preferred_element_type=jnp.float32)  # (1, N)
    out_ref[0] = 2.0 * g - sq_col - sq_row


def pairwise_neg_sqdist(x_bnc):
    b, n, c = x_bnc.shape
    return pl.pallas_call(
        _pdist_kernel,
        grid=(b,),
        in_specs=[pl.BlockSpec((1, n, c), lambda i: (i, 0, 0))],
        out_specs=pl.BlockSpec((1, n, n), lambda i: (i, 0, 0)),
        out_shape=jax.ShapeDtypeStruct((b, n, n), jnp.float32),
        compiler_params=pltpu.CompilerParams(
            dimension_semantics=("parallel",)),
    )(x_bnc)


def _edge_pass1_kernel(x_ref, idx_ref, w_ref, ymax_ref, stats_ref, *, K, tn, N):
    """Fused gather + edge-feature + 1x1 conv + max-over-K + BN partial stats.

    x_ref    : (1, N, Cp)      bf16  full point cloud of this batch (resident)
    idx_ref  : (1, K, tn)      int32 kNN indices for this tile of points
    w_ref    : (2*Cp, Cout)    bf16  conv weight (resident)
    ymax_ref : (1, tn, Cout)   f32   max_k of the pre-BN activations
    stats_ref: (1, 1, 2, Cout) f32   per-tile [sum, sum_sq] over the K*tn rows
    """
    t = pl.program_id(1)
    x_all = x_ref[0]                                                # (N, Cp)
    cp = x_all.shape[-1]
    start = pl.multiple_of(t * tn, tn)
    xc = x_ref[0, pl.ds(start, tn), :]                              # (tn, Cp)

    idx = idx_ref[0]                                                # (K, tn)
    # One-hot gather of the K neighbors of each of the tn points on the MXU
    # (robust lowering on all TPU generations; avoids data-dependent VMEM gather).
    iota_n = jax.lax.broadcasted_iota(jnp.int32, (K, tn, N), 2)
    onehot = (idx[:, :, None] == iota_n).astype(jnp.bfloat16)       # (K, tn, N)
    nbr = jax.lax.dot_general(
        onehot.reshape(K * tn, N), x_all,
        (((1,), (0,)), ((), ())),
        preferred_element_type=jnp.float32).astype(jnp.bfloat16)    # (K*tn, Cp)

    ctr = jnp.broadcast_to(xc[None, :, :], (K, tn, cp)).reshape(K * tn, cp)
    feat = jnp.concatenate([nbr - ctr, ctr], axis=-1)               # (K*tn, 2Cp)

    # bf16 operands, f32 accumulation on the MXU.
    y = jnp.dot(feat, w_ref[...], preferred_element_type=jnp.float32)

    # BatchNorm2d batch statistics are taken over ALL (B, N, K) positions
    # (i.e. pre-max), exactly like the PyTorch module in training mode.
    s = jnp.sum(y, axis=0, keepdims=True)
    ss = jnp.sum(y * y, axis=0, keepdims=True)
    stats_ref[0, 0] = jnp.concatenate([s, ss], axis=0)              # (2, Cout)

    # Max over the K neighbors; monotone BN + LeakyReLU are applied afterwards.
    cout = y.shape[-1]
    ymax_ref[0] = jnp.max(y.reshape(K, tn, cout), axis=0)


def _matmul_stats_kernel(x_ref, w_ref, y_ref, stats_ref):
    """Tiled 1x1 Conv1d (rows x Cin @ Cin x Cout) + per-tile BN partial stats."""
    y = jnp.dot(x_ref[...].astype(jnp.bfloat16), w_ref[...],
                preferred_element_type=jnp.float32)
    y_ref[...] = y
    s = jnp.sum(y, axis=0, keepdims=True)
    ss = jnp.sum(y * y, axis=0, keepdims=True)
    stats_ref[0] = jnp.concatenate([s, ss], axis=0)                 # (2, Cout)


def _bn_lrelu_kernel(y_ref, scale_ref, shift_ref, out_ref):
    """Elementwise BatchNorm apply (folded scale/shift) + LeakyReLU(0.2)."""
    y = y_ref[...] * scale_ref[...] + shift_ref[...]
    out_ref[...] = jnp.where(y > 0, y, NEG_SLOPE * y)


# ----------------------------------------------------------------------------
# wrappers
# ----------------------------------------------------------------------------
def bn_lrelu(y2d, scale, shift):
    rows, c = y2d.shape
    tr = _row_tile(rows, target=1024)
    return pl.pallas_call(
        _bn_lrelu_kernel,
        grid=(rows // tr,),
        in_specs=[
            pl.BlockSpec((tr, c), lambda i: (i, 0)),
            pl.BlockSpec((1, c), lambda i: (0, 0)),
            pl.BlockSpec((1, c), lambda i: (0, 0)),
        ],
        out_specs=pl.BlockSpec((tr, c), lambda i: (i, 0)),
        out_shape=jax.ShapeDtypeStruct((rows, c), jnp.float32),
        compiler_params=pltpu.CompilerParams(
            dimension_semantics=("parallel",)),
    )(y2d, scale, shift)


def point_conv_pass1(x2d, w_bf):
    rows, cin = x2d.shape
    cout = w_bf.shape[1]
    tr = _row_tile(rows, target=512)
    nt = rows // tr
    y, stats = pl.pallas_call(
        _matmul_stats_kernel,
        grid=(nt,),
        in_specs=[
            pl.BlockSpec((tr, cin), lambda i: (i, 0)),
            pl.BlockSpec((cin, cout), lambda i: (0, 0)),        # weight resident
        ],
        out_specs=(
            pl.BlockSpec((tr, cout), lambda i: (i, 0)),
            pl.BlockSpec((1, 2, cout), lambda i: (i, 0, 0)),
        ),
        out_shape=(
            jax.ShapeDtypeStruct((rows, cout), jnp.float32),
            jax.ShapeDtypeStruct((nt, 2, cout), jnp.float32),
        ),
        compiler_params=pltpu.CompilerParams(
            dimension_semantics=("parallel",),
            vmem_limit_bytes=VMEM_LIMIT),
    )(x2d, w_bf)
    return y, stats


def _bn_scale_shift(stats, count, gamma, beta):
    """Reduce per-tile [sum, sumsq] partials -> folded BN scale/shift (f32)."""
    c = stats.shape[-1]
    s = stats.reshape(-1, 2, c).sum(axis=0)                         # (2, C)
    mean = s[0] / count
    # clamp: E[y^2] - E[y]^2 can go slightly negative from cancellation
    var = jnp.maximum(s[1] / count - mean * mean, 0.0)
    inv = jax.lax.rsqrt(var + BN_EPS)
    scale = gamma.reshape(-1) * inv
    shift = beta.reshape(-1) - mean * scale
    return scale.reshape(1, -1), shift.reshape(1, -1)


def _pad_cin(x_bnc, w):
    """Pad point channels up to a multiple of 8 (sublane) and remap W rows."""
    B, N, C = x_bnc.shape
    cp = _round_up(max(C, 8), 8)
    if cp == C:
        return x_bnc, w, C
    xp = jnp.pad(x_bnc, ((0, 0), (0, 0), (0, cp - C)))
    cout = w.shape[1]
    wp = jnp.zeros((2 * cp, cout), w.dtype)
    wp = wp.at[:C].set(w[:C])           # rows acting on (x_j - x_i)
    wp = wp.at[cp:cp + C].set(w[C:])    # rows acting on x_i
    return xp, wp, cp


def edge_conv_block(x_bnc, p, k):
    """One DGCNN EdgeConv block: knn -> conv2d(1x1) -> BN -> LeakyReLU -> max_k."""
    B, N, C = x_bnc.shape
    assert N % 8 == 0  # TODO(synk): pad the point axis for N not multiple of 8

    # 1) kNN indices (distance kernel in Pallas; selection stays in XLA).
    d = pairwise_neg_sqdist(x_bnc)                                  # (B, N, N)
    # TODO(synk): top-k (sort) has no clean Pallas equivalent; keep in JAX.
    idx = jax.lax.top_k(d, k)[1].astype(jnp.int32)                  # (B, N, k)
    idx_kn = jnp.transpose(idx, (0, 2, 1))                          # (B, k, N)

    # 2) channel padding (layer 1 only: 3 -> 8) + bf16 operands for the MXU.
    xp, wp, cp = _pad_cin(x_bnc, p["w"])
    x_bf = xp.astype(jnp.bfloat16)
    w_bf = wp.astype(jnp.bfloat16)
    cout = wp.shape[1]

    tn = _n_tile(N)
    n_tiles = N // tn
    kernel = functools.partial(_edge_pass1_kernel, K=k, tn=tn, N=N)
    ymax, stats = pl.pallas_call(
        kernel,
        grid=(B, n_tiles),
        in_specs=[
            pl.BlockSpec((1, N, cp), lambda b, t: (b, 0, 0)),       # full cloud b
            pl.BlockSpec((1, k, tn), lambda b, t: (b, 0, t)),       # idx tile
            pl.BlockSpec((2 * cp, cout), lambda b, t: (0, 0)),      # weight resident
        ],
        out_specs=(
            pl.BlockSpec((1, tn, cout), lambda b, t: (b, t, 0)),
            pl.BlockSpec((1, 1, 2, cout), lambda b, t: (b, t, 0, 0)),
        ),
        out_shape=(
            jax.ShapeDtypeStruct((B, N, cout), jnp.float32),
            jax.ShapeDtypeStruct((B, n_tiles, 2, cout), jnp.float32),
        ),
        compiler_params=pltpu.CompilerParams(
            dimension_semantics=("parallel", "parallel"),
            vmem_limit_bytes=VMEM_LIMIT),
    )(x_bf, idx_kn, w_bf)

    # 3) BN statistics over all B*N*k pre-max activations -> scale/shift.
    scale, shift = _bn_scale_shift(stats, B * N * k, p["gamma"], p["beta"])

    # 4) BN apply + LeakyReLU (exactly commutes with the max since scale > 0).
    out2d = bn_lrelu(ymax.reshape(B * N, cout), scale, shift)
    return out2d.reshape(B, N, cout)


# ----------------------------------------------------------------------------
# model
# ----------------------------------------------------------------------------
def init_params(key, emb_dims):
    ks = jax.random.split(key, 5)

    def conv(kk, cin, cout):
        return dict(
            w=(jax.random.normal(kk, (cin, cout), jnp.float32) * 0.1),
            gamma=jnp.ones((1, cout), jnp.float32),
            beta=jnp.zeros((1, cout), jnp.float32),
        )

    return dict(
        conv1=conv(ks[0], 6, 64),
        conv2=conv(ks[1], 128, 64),
        conv3=conv(ks[2], 128, 128),
        conv4=conv(ks[3], 256, 256),
        conv5=conv(ks[4], 512, emb_dims),
    )


def dgcnn_forward(params, x, k):
    """x: (B, 3, N) like PyTorch. Returns (B, emb_dims, N)."""
    B, _, N = x.shape
    x_bnc = jnp.transpose(x, (0, 2, 1))                             # (B, N, 3)

    x1 = edge_conv_block(x_bnc, params["conv1"], k)                 # (B, N, 64)
    x2 = edge_conv_block(x1, params["conv2"], k)                    # (B, N, 64)
    x3 = edge_conv_block(x2, params["conv3"], k)                    # (B, N, 128)
    x4 = edge_conv_block(x3, params["conv4"], k)                    # (B, N, 256)

    cat = jnp.concatenate([x1, x2, x3, x4], axis=-1)                # (B, N, 512)
    p5 = params["conv5"]
    y5, stats5 = point_conv_pass1(cat.reshape(B * N, 512),
                                  p5["w"].astype(jnp.bfloat16))
    scale, shift = _bn_scale_shift(stats5, B * N, p5["gamma"], p5["beta"])
    out = bn_lrelu(y5, scale, shift)                                # (B*N, emb)
    return jnp.transpose(out.reshape(B, N, -1), (0, 2, 1))          # (B, emb, N)


if __name__ == "__main__":
    B, N, K, EMB = 2, 16, 4, 64
    key = jax.random.PRNGKey(0)
    kp, kx = jax.random.split(key)
    params = init_params(kp, EMB)
    x = jax.random.normal(kx, (B, 3, N), jnp.float32)

    fwd = jax.jit(functools.partial(dgcnn_forward, k=K))
    out = fwd(params, x)
    jax.block_until_ready(out)
    assert out.shape == (B, EMB, N), out.shape
    assert bool(jnp.all(jnp.isfinite(out)))
    print("KERNEL_OK")
</pallas_src>

<mosaic_0001>
module attributes {stable_mosaic.version = 11 : i64} {
  func.func @_pdist_kernel(%arg0: i32, %arg1: memref<1x16x3xf32, #tpu.memory_space<vmem>>, %arg2: memref<1x16x16xf32, #tpu.memory_space<vmem>>) attributes {dimension_semantics = [#tpu.dimension_semantics<parallel>], iteration_bounds = array<i64: 2>, scalar_prefetch = 0 : i64, scratch_operands = 0 : i64, tpu.core_type = #tpu.core_type<tc>, window_params = [{transform_indices = @transform_0, window_bounds = array<i64: 1, 16, 3>}, {transform_indices = @transform_1, window_bounds = array<i64: 1, 16, 16>}]} {
    %c0 = arith.constant 0 : index
    %c0_0 = arith.constant 0 : index
    %c0_1 = arith.constant 0 : index
    %0 = vector.load %arg1[%c0, %c0_0, %c0_1] : memref<1x16x3xf32, #tpu.memory_space<vmem>>, vector<1x16x3xf32>
    %1 = vector.shape_cast %0 : vector<1x16x3xf32> to vector<16x3xf32>
    %cst = arith.constant dense<0.000000e+00> : vector<16x16xf32>
    %2 = tpu.matmul %1, %1, %cst {dimension_numbers = #tpu.dot_dimension_numbers<[1], [1], [0], [0], [0, 0, 1, 0], [], []>} : vector<16x3xf32>, vector<16x3xf32>, vector<16x16xf32> -> vector<16x16xf32>
    %3 = arith.mulf %1, %1 : vector<16x3xf32>
    %cst_2 = arith.constant dense<0.000000e+00> : vector<16xf32>
    %4 = vector.multi_reduction <add>, %3, %cst_2 [1] : vector<16x3xf32> to vector<16xf32>
    %5 = vector.shape_cast %4 : vector<16xf32> to vector<16x1xf32>
    %cst_3 = arith.constant 1.000000e+00 : f32
    %6 = vector.broadcast %cst_3 : f32 to vector<1x3xf32>
    %cst_4 = arith.constant dense<0.000000e+00> : vector<1x16xf32>
    %7 = tpu.matmul %6, %3, %cst_4 {dimension_numbers = #tpu.dot_dimension_numbers<[1], [1], [0], [0], [0, 0, 1, 0], [], []>} : vector<1x3xf32>, vector<16x3xf32>, vector<1x16xf32> -> vector<1x16xf32>
    %cst_5 = arith.constant 2.000000e+00 : f32
    %8 = vector.broadcast %cst_5 : f32 to vector<16x16xf32>
    %9 = arith.mulf %8, %2 : vector<16x16xf32>
    %10 = vector.broadcast %5 : vector<16x1xf32> to vector<16x16xf32>
    %11 = arith.subf %9, %10 : vector<16x16xf32>
    %12 = vector.broadcast %7 : vector<1x16xf32> to vector<16x16xf32>
    %13 = arith.subf %11, %12 : vector<16x16xf32>
    %c0_6 = arith.constant 0 : index
    %c0_7 = arith.constant 0 : index
    %c0_8 = arith.constant 0 : index
    %14 = vector.load %arg2[%c0_6, %c0_7, %c0_8] : memref<1x16x16xf32, #tpu.memory_space<vmem>>, vector<1x16x16xf32>
    %15 = vector.shape_cast %14 : vector<1x16x16xf32> to vector<16x16xf32>
    %16 = vector.shape_cast %13 : vector<16x16xf32> to vector<1x16x16xf32>
    tpu.vector_store %arg2[%c0_6, %c0_7, %c0_8], %16 {strides = array<i32>} : memref<1x16x16xf32, #tpu.memory_space<vmem>>, vector<1x16x16xf32>,
    return
  }
  func.func @transform_0(%arg0: i32) -> (i32, i32, i32) {
    %c0_i32 = arith.constant 0 : i32
    %c0_i32_0 = arith.constant 0 : i32
    %c0_i32_1 = arith.constant 0 : i32
    return %arg0, %c0_i32, %c0_i32_0 : i32, i32, i32
  }
  func.func @transform_1(%arg0: i32) -> (i32, i32, i32) {
    %c0_i32 = arith.constant 0 : i32
    %c0_i32_0 = arith.constant 0 : i32
    %c0_i32_1 = arith.constant 0 : i32
    return %arg0, %c0_i32, %c0_i32_0 : i32, i32, i32
  }
}

module attributes {stable_mosaic.version = 11 : i64} {
  func.func @_edge_pass1_kernel(%arg0: i32, %arg1: i32, %arg2: memref<1x16x8xbf16, #tpu.memory_space<vmem>>, %arg3: memref<1x4x16xi32, #tpu.memory_space<vmem>>, %arg4: memref<16x64xbf16, #tpu.memory_space<vmem>>, %arg5: memref<1x16x64xf32, #tpu.memory_space<vmem>>, %arg6: memref<1x1x2x64xf32, #tpu.memory_space<vmem>>) attributes {dimension_semantics = [#tpu.dimension_semantics<parallel>, #tpu.dimension_semantics<parallel>], iteration_bounds = array<i64: 2, 1>, scalar_prefetch = 0 : i64, scratch_operands = 0 : i64, tpu.core_type = #tpu.core_type<tc>, window_params = [{transform_indices = @transform_0, window_bounds = array<i64: 1, 16, 8>}, {transform_indices = @transform_1, window_bounds = array<i64: 1, 4, 16>}, {pipeline_mode = #tpu.pipeline_mode<synchronous>, transform_indices = @transform_2, window_bounds = array<i64: 16, 64>}, {transform_indices = @transform_3, window_bounds = array<i64: 1, 16, 64>}, {transform_indices = @transform_4, window_bounds = array<i64: 1, 1, 2, 64>}]} {
    %c0 = arith.constant 0 : index
    %c0_0 = arith.constant 0 : index
    %c0_1 = arith.constant 0 : index
    %0 = vector.load %arg2[%c0, %c0_0, %c0_1] : memref<1x16x8xbf16, #tpu.memory_space<vmem>>, vector<1x16x8xbf16>
    %1 = vector.shape_cast %0 : vector<1x16x8xbf16> to vector<16x8xbf16>
    %c16_i32 = arith.constant 16 : i32
    %2 = arith.muli %arg1, %c16_i32 : i32
    %3 = tpu.assume_multiple %2, 16 : i32
    %c0_2 = arith.constant 0 : index
    %4 = arith.index_cast %3 : i32 to index
    %c0_3 = arith.constant 0 : index
    %5 = vector.load %arg2[%c0_2, %4, %c0_3] : memref<1x16x8xbf16, #tpu.memory_space<vmem>>, vector<1x16x8xbf16>
    %6 = vector.shape_cast %5 : vector<1x16x8xbf16> to vector<16x8xbf16>
    %c0_4 = arith.constant 0 : index
    %c0_5 = arith.constant 0 : index
    %c0_6 = arith.constant 0 : index
    %7 = vector.load %arg3[%c0_4, %c0_5, %c0_6] : memref<1x4x16xi32, #tpu.memory_space<vmem>>, vector<1x4x16xi32>
    %8 = vector.shape_cast %7 : vector<1x4x16xi32> to vector<4x16xi32>
    %9 = tpu.iota {dimensions = array<i32: 2>} : vector<4x16x16xi32>
    %10 = vector.shape_cast %8 : vector<4x16xi32> to vector<4x16x1xi32>
    %11 = vector.broadcast %10 : vector<4x16x1xi32> to vector<4x16x16xi32>
    %12 = arith.cmpi eq, %11, %9 : vector<4x16x16xi32>
    %13 = arith.extui %12 : vector<4x16x16xi1> to vector<4x16x16xi32>
    %14 = arith.sitofp %13 : vector<4x16x16xi32> to vector<4x16x16xf32>
    %15 = arith.truncf %14 : vector<4x16x16xf32> to vector<4x16x16xbf16>
    %16 = vector.shape_cast %15 : vector<4x16x16xbf16> to vector<64x16xbf16>
    %cst = arith.constant dense<0.000000e+00> : vector<64x8xf32>
    %17 = tpu.matmul %16, %1, %cst {dimension_numbers = #tpu.dot_dimension_numbers<[1], [0], [0], [1], [0, 0, 1, 1], [], []>} : vector<64x16xbf16>, vector<16x8xbf16>, vector<64x8xf32> -> vector<64x8xf32>
    %18 = arith.truncf %17 : vector<64x8xf32> to vector<64x8xbf16>
    %19 = vector.shape_cast %6 : vector<16x8xbf16> to vector<1x16x8xbf16>
    %20 = vector.shape_cast %19 : vector<1x16x8xbf16> to vector<1x16x8xbf16>
    %21 = vector.broadcast %20 : vector<1x16x8xbf16> to vector<4x16x8xbf16>
    %22 = vector.shape_cast %21 : vector<4x16x8xbf16> to vector<64x8xbf16>
    %23 = arith.subf %18, %22 : vector<64x8xbf16>
    %24 = tpu.concatenate %23, %22 in 1 : vector<64x8xbf16>, vector<64x8xbf16> -> vector<64x16xbf16>
    %c0_7 = arith.constant 0 : index
    %c0_8 = arith.constant 0 : index
    %25 = vector.load %arg4[%c0_7, %c0_8] : memref<16x64xbf16, #tpu.memory_space<vmem>>, vector<16x64xbf16>
    %cst_9 = arith.constant dense<0.000000e+00> : vector<64x64xf32>
    %26 = tpu.matmul %24, %25, %cst_9 {dimension_numbers = #tpu.dot_dimension_numbers<[1], [0], [0], [1], [0, 0, 1, 1], [], []>} : vector<64x16xbf16>, vector<16x64xbf16>, vector<64x64xf32> -> vector<64x64xf32>
    %cst_10 = arith.constant dense<0.000000e+00> : vector<64xf32>
    %27 = vector.multi_reduction <add>, %26, %cst_10 [0] : vector<64x64xf32> to vector<64xf32>
    %28 = vector.shape_cast %27 : vector<64xf32> to vector<1x64xf32>
    %29 = arith.mulf %26, %26 : vector<64x64xf32>
    %cst_11 = arith.constant dense<0.000000e+00> : vector<64xf32>
    %30 = vector.multi_reduction <add>, %29, %cst_11 [0] : vector<64x64xf32> to vector<64xf32>
    %31 = vector.shape_cast %30 : vector<64xf32> to vector<1x64xf32>
    %32 = tpu.concatenate %28, %31 in 0 : vector<1x64xf32>, vector<1x64xf32> -> vector<2x64xf32>
    %c0_12 = arith.constant 0 : index
    %c0_13 = arith.constant 0 : index
    %c0_14 = arith.constant 0 : index
    %c0_15 = arith.constant 0 : index
    %33 = vector.load %arg6[%c0_12, %c0_13, %c0_14, %c0_15] : memref<1x1x2x64xf32, #tpu.memory_space<vmem>>, vector<1x1x2x64xf32>
    %34 = vector.shape_cast %33 : vector<1x1x2x64xf32> to vector<2x64xf32>
    %35 = vector.shape_cast %32 : vector<2x64xf32> to vector<1x1x2x64xf32>
    tpu.vector_store %arg6[%c0_12, %c0_13, %c0_14, %c0_15], %35 {strides = array<i32>} : memref<1x1x2x64xf32, #tpu.memory_space<vmem>>, vector<1x1x2x64xf32>,
    %36 = vector.shape_cast %26 : vector<64x64xf32> to vector<4x16x64xf32>
    %cst_16 = arith.constant dense<0xFF800000> : vector<16x64xf32>
    %37 = vector.multi_reduction <maximumf>, %36, %cst_16 [0] : vector<4x16x64xf32> to vector<16x64xf32>
    %c0_17 = arith.constant 0 : index
    %c0_18 = arith.constant 0 : index
    %c0_19 = arith.constant 0 : index
    %38 = vector.load %arg5[%c0_17, %c0_18, %c0_19] : memref<1x16x64xf32, #tpu.memory_space<vmem>>, vector<1x16x64xf32>
    %39 = vector.shape_cast %38 : vector<1x16x64xf32> to vector<16x64xf32>
    %40 = vector.shape_cast %37 : vector<16x64xf32> to vector<1x16x64xf32>
    tpu.vector_store %arg5[%c0_17, %c0_18, %c0_19], %40 {strides = array<i32>} : memref<1x16x64xf32, #tpu.memory_space<vmem>>, vector<1x16x64xf32>,
    return
  }
  func.func @transform_0(%arg0: i32, %arg1: i32) -> (i32, i32, i32) {
    %c0_i32 = arith.constant 0 : i32
    %c0_i32_0 = arith.constant 0 : i32
    %c0_i32_1 = arith.constant 0 : i32
    return %arg0, %c0_i32, %c0_i32_0 : i32, i32, i32
  }
  func.func @transform_1(%arg0: i32, %arg1: i32) -> (i32, i32, i32) {
    %c0_i32 = arith.constant 0 : i32
    %c0_i32_0 = arith.constant 0 : i32
    return %arg0, %c0_i32, %arg1 : i32, i32, i32
  }
  func.func @transform_2(%arg0: i32, %arg1: i32) -> (i32, i32) {
    %c0_i32 = arith.constant 0 : i32
    %c0_i32_0 = arith.constant 0 : i32
    %c0_i32_1 = arith.constant 0 : i32
    return %c0_i32, %c0_i32_0 : i32, i32
  }
  func.func @transform_3(%arg0: i32, %arg1: i32) -> (i32, i32, i32) {
    %c0_i32 = arith.constant 0 : i32
    %c0_i32_0 = arith.constant 0 : i32
    return %arg0, %arg1, %c0_i32 : i32, i32, i32
  }
  func.func @transform_4(%arg0: i32, %arg1: i32) -> (i32, i32, i32, i32) {
    %c0_i32 = arith.constant 0 : i32
    %c0_i32_0 = arith.constant 0 : i32
    %c0_i32_1 = arith.constant 0 : i32
    return %arg0, %arg1, %c0_i32, %c0_i32_0 : i32, i32, i32, i32
  }
}

module attributes {stable_mosaic.version = 11 : i64} {
  func.func @_bn_lrelu_kernel(%arg0: i32, %arg1: memref<32x64xf32, #tpu.memory_space<vmem>>, %arg2: memref<1x64xf32, #tpu.memory_space<vmem>>, %arg3: memref<1x64xf32, #tpu.memory_space<vmem>>, %arg4: memref<32x64xf32, #tpu.memory_space<vmem>>) attributes {dimension_semantics = [#tpu.dimension_semantics<parallel>], iteration_bounds = array<i64: 1>, scalar_prefetch = 0 : i64, scratch_operands = 0 : i64, tpu.core_type = #tpu.core_type<tc>, window_params = [{transform_indices = @transform_0, window_bounds = array<i64: 32, 64>}, {pipeline_mode = #tpu.pipeline_mode<synchronous>, transform_indices = @transform_1, window_bounds = array<i64: 1, 64>}, {pipeline_mode = #tpu.pipeline_mode<synchronous>, transform_indices = @transform_2, window_bounds = array<i64: 1, 64>}, {transform_indices = @transform_3, window_bounds = array<i64: 32, 64>}]} {
    %c0 = arith.constant 0 : index
    %c0_0 = arith.constant 0 : index
    %0 = vector.load %arg1[%c0, %c0_0] : memref<32x64xf32, #tpu.memory_space<vmem>>, vector<32x64xf32>
    %c0_1 = arith.constant 0 : index
    %c0_2 = arith.constant 0 : index
    %1 = vector.load %arg2[%c0_1, %c0_2] : memref<1x64xf32, #tpu.memory_space<vmem>>, vector<1x64xf32>
    %2 = vector.broadcast %1 : vector<1x64xf32> to vector<32x64xf32>
    %3 = arith.mulf %0, %2 : vector<32x64xf32>
    %c0_3 = arith.constant 0 : index
    %c0_4 = arith.constant 0 : index
    %4 = vector.load %arg3[%c0_3, %c0_4] : memref<1x64xf32, #tpu.memory_space<vmem>>, vector<1x64xf32>
    %5 = vector.broadcast %4 : vector<1x64xf32> to vector<32x64xf32>
    %6 = arith.addf %3, %5 : vector<32x64xf32>
    %cst = arith.constant 0.000000e+00 : f32
    %7 = vector.broadcast %cst : f32 to vector<32x64xf32>
    %8 = arith.cmpf ogt, %6, %7 : vector<32x64xf32>
    %cst_5 = arith.constant 2.000000e-01 : f32
    %9 = vector.broadcast %cst_5 : f32 to vector<32x64xf32>
    %10 = arith.mulf %9, %6 : vector<32x64xf32>
    %11 = arith.select %8, %6, %10 : vector<32x64xi1>, vector<32x64xf32>
    %c0_6 = arith.constant 0 : index
    %c0_7 = arith.constant 0 : index
    %12 = vector.load %arg4[%c0_6, %c0_7] : memref<32x64xf32, #tpu.memory_space<vmem>>, vector<32x64xf32>
    tpu.vector_store %arg4[%c0_6, %c0_7], %11 {strides = array<i32>} : memref<32x64xf32, #tpu.memory_space<vmem>>, vector<32x64xf32>,
    return
  }
  func.func @transform_0(%arg0: i32) -> (i32, i32) {
    %c0_i32 = arith.constant 0 : i32
    %c0_i32_0 = arith.constant 0 : i32
    return %arg0, %c0_i32 : i32, i32
  }
  func.func @transform_1(%arg0: i32) -> (i32, i32) {
    %c0_i32 = arith.constant 0 : i32
    %c0_i32_0 = arith.constant 0 : i32
    %c0_i32_1 = arith.constant 0 : i32
    return %c0_i32, %c0_i32_0 : i32, i32
  }
  func.func @transform_2(%arg0: i32) -> (i32, i32) {
    %c0_i32 = arith.constant 0 : i32
    %c0_i32_0 = arith.constant 0 : i32
    %c0_i32_1 = arith.constant 0 : i32
    return %c0_i32, %c0_i32_0 : i32, i32
  }
  func.func @transform_3(%arg0: i32) -> (i32, i32) {
    %c0_i32 = arith.constant 0 : i32
    %c0_i32_0 = arith.constant 0 : i32
    return %arg0, %c0_i32 : i32, i32
  }
}

module attributes {stable_mosaic.version = 11 : i64} {
  func.func @_pdist_kernel(%arg0: i32, %arg1: memref<1x16x64xf32, #tpu.memory_space<vmem>>, %arg2: memref<1x16x16xf32, #tpu.memory_space<vmem>>) attributes {dimension_semantics = [#tpu.dimension_semantics<parallel>], iteration_bounds = array<i64: 2>, scalar_prefetch = 0 : i64, scratch_operands = 0 : i64, tpu.core_type = #tpu.core_type<tc>, window_params = [{transform_indices = @transform_0, window_bounds = array<i64: 1, 16, 64>}, {transform_indices = @transform_1, window_bounds = array<i64: 1, 16, 16>}]} {
    %c0 = arith.constant 0 : index
    %c0_0 = arith.constant 0 : index
    %c0_1 = arith.constant 0 : index
    %0 = vector.load %arg1[%c0, %c0_0, %c0_1] : memref<1x16x64xf32, #tpu.memory_space<vmem>>, vector<1x16x64xf32>
    %1 = vector.shape_cast %0 : vector<1x16x64xf32> to vector<16x64xf32>
    %cst = arith.constant dense<0.000000e+00> : vector<16x16xf32>
    %2 = tpu.matmul %1, %1, %cst {dimension_numbers = #tpu.dot_dimension_numbers<[1], [1], [0], [0], [0, 0, 1, 0], [], []>} : vector<16x64xf32>, vector<16x64xf32>, vector<16x16xf32> -> vector<16x16xf32>
    %3 = arith.mulf %1, %1 : vector<16x64xf32>
    %cst_2 = arith.constant dense<0.000000e+00> : vector<16xf32>
    %4 = vector.multi_reduction <add>, %3, %cst_2 [1] : vector<16x64xf32> to vector<16xf32>
    %5 = vector.shape_cast %4 : vector<16xf32> to vector<16x1xf32>
    %cst_3 = arith.constant 1.000000e+00 : f32
    %6 = vector.broadcast %cst_3 : f32 to vector<1x64xf32>
    %cst_4 = arith.constant dense<0.000000e+00> : vector<1x16xf32>
    %7 = tpu.matmul %6, %3, %cst_4 {dimension_numbers = #tpu.dot_dimension_numbers<[1], [1], [0], [0], [0, 0, 1, 0], [], []>} : vector<1x64xf32>, vector<16x64xf32>, vector<1x16xf32> -> vector<1x16xf32>
    %cst_5 = arith.constant 2.000000e+00 : f32
    %8 = vector.broadcast %cst_5 : f32 to vector<16x16xf32>
    %9 = arith.mulf %8, %2 : vector<16x16xf32>
    %10 = vector.broadcast %5 : vector<16x1xf32> to vector<16x16xf32>
    %11 = arith.subf %9, %10 : vector<16x16xf32>
    %12 = vector.broadcast %7 : vector<1x16xf32> to vector<16x16xf32>
    %13 = arith.subf %11, %12 : vector<16x16xf32>
    %c0_6 = arith.constant 0 : index
    %c0_7 = arith.constant 0 : index
    %c0_8 = arith.constant 0 : index
    %14 = vector.load %arg2[%c0_6, %c0_7, %c0_8] : memref<1x16x16xf32, #tpu.memory_space<vmem>>, vector<1x16x16xf32>
    %15 = vector.shape_cast %14 : vector<1x16x16xf32> to vector<16x16xf32>
    %16 = vector.shape_cast %13 : vector<16x16xf32> to vector<1x16x16xf32>
    tpu.vector_store %arg2[%c0_6, %c0_7, %c0_8], %16 {strides = array<i32>} : memref<1x16x16xf32, #tpu.memory_space<vmem>>, vector<1x16x16xf32>,
    return
  }
  func.func @transform_0(%arg0: i32) -> (i32, i32, i32) {
    %c0_i32 = arith.constant 0 : i32
    %c0_i32_0 = arith.constant 0 : i32
    %c0_i32_1 = arith.constant 0 : i32
    return %arg0, %c0_i32, %c0_i32_0 : i32, i32, i32
  }
  func.func @transform_1(%arg0: i32) -> (i32, i32, i32) {
    %c0_i32 = arith.constant 0 : i32
    %c0_i32_0 = arith.constant 0 : i32
    %c0_i32_1 = arith.constant 0 : i32
    return %arg0, %c0_i32, %c0_i32_0 : i32, i32, i32
  }
}

module attributes {stable_mosaic.version = 11 : i64} {
  func.func @_edge_pass1_kernel(%arg0: i32, %arg1: i32, %arg2: memref<1x16x64xbf16, #tpu.memory_space<vmem>>, %arg3: memref<1x4x16xi32, #tpu.memory_space<vmem>>, %arg4: memref<128x64xbf16, #tpu.memory_space<vmem>>, %arg5: memref<1x16x64xf32, #tpu.memory_space<vmem>>, %arg6: memref<1x1x2x64xf32, #tpu.memory_space<vmem>>) attributes {dimension_semantics = [#tpu.dimension_semantics<parallel>, #tpu.dimension_semantics<parallel>], iteration_bounds = array<i64: 2, 1>, scalar_prefetch = 0 : i64, scratch_operands = 0 : i64, tpu.core_type = #tpu.core_type<tc>, window_params = [{transform_indices = @transform_0, window_bounds = array<i64: 1, 16, 64>}, {transform_indices = @transform_1, window_bounds = array<i64: 1, 4, 16>}, {pipeline_mode = #tpu.pipeline_mode<synchronous>, transform_indices = @transform_2, window_bounds = array<i64: 128, 64>}, {transform_indices = @transform_3, window_bounds = array<i64: 1, 16, 64>}, {transform_indices = @transform_4, window_bounds = array<i64: 1, 1, 2, 64>}]} {
    %c0 = arith.constant 0 : index
    %c0_0 = arith.constant 0 : index
    %c0_1 = arith.constant 0 : index
    %0 = vector.load %arg2[%c0, %c0_0, %c0_1] : memref<1x16x64xbf16, #tpu.memory_space<vmem>>, vector<1x16x64xbf16>
    %1 = vector.shape_cast %0 : vector<1x16x64xbf16> to vector<16x64xbf16>
    %c16_i32 = arith.constant 16 : i32
    %2 = arith.muli %arg1, %c16_i32 : i32
    %3 = tpu.assume_multiple %2, 16 : i32
    %c0_2 = arith.constant 0 : index
    %4 = arith.index_cast %3 : i32 to index
    %c0_3 = arith.constant 0 : index
    %5 = vector.load %arg2[%c0_2, %4, %c0_3] : memref<1x16x64xbf16, #tpu.memory_space<vmem>>, vector<1x16x64xbf16>
    %6 = vector.shape_cast %5 : vector<1x16x64xbf16> to vector<16x64xbf16>
    %c0_4 = arith.constant 0 : index
    %c0_5 = arith.constant 0 : index
    %c0_6 = arith.constant 0 : index
    %7 = vector.load %arg3[%c0_4, %c0_5, %c0_6] : memref<1x4x16xi32, #tpu.memory_space<vmem>>, vector<1x4x16xi32>
    %8 = vector.shape_cast %7 : vector<1x4x16xi32> to vector<4x16xi32>
    %9 = tpu.iota {dimensions = array<i32: 2>} : vector<4x16x16xi32>
    %10 = vector.shape_cast %8 : vector<4x16xi32> to vector<4x16x1xi32>
    %11 = vector.broadcast %10 : vector<4x16x1xi32> to vector<4x16x16xi32>
    %12 = arith.cmpi eq, %11, %9 : vector<4x16x16xi32>
    %13 = arith.extui %12 : vector<4x16x16xi1> to vector<4x16x16xi32>
    %14 = arith.sitofp %13 : vector<4x16x16xi32> to vector<4x16x16xf32>
    %15 = arith.truncf %14 : vector<4x16x16xf32> to vector<4x16x16xbf16>
    %16 = vector.shape_cast %15 : vector<4x16x16xbf16> to vector<64x16xbf16>
    %cst = arith.constant dense<0.000000e+00> : vector<64x64xf32>
    %17 = tpu.matmul %16, %1, %cst {dimension_numbers = #tpu.dot_dimension_numbers<[1], [0], [0], [1], [0, 0, 1, 1], [], []>} : vector<64x16xbf16>, vector<16x64xbf16>, vector<64x64xf32> -> vector<64x64xf32>
    %18 = arith.truncf %17 : vector<64x64xf32> to vector<64x64xbf16>
    %19 = vector.shape_cast %6 : vector<16x64xbf16> to vector<1x16x64xbf16>
    %20 = vector.shape_cast %19 : vector<1x16x64xbf16> to vector<1x16x64xbf16>
    %21 = vector.broadcast %20 : vector<1x16x64xbf16> to vector<4x16x64xbf16>
    %22 = vector.shape_cast %21 : vector<4x16x64xbf16> to vector<64x64xbf16>
    %23 = arith.subf %18, %22 : vector<64x64xbf16>
    %24 = tpu.concatenate %23, %22 in 1 : vector<64x64xbf16>, vector<64x64xbf16> -> vector<64x128xbf16>
    %c0_7 = arith.constant 0 : index
    %c0_8 = arith.constant 0 : index
    %25 = vector.load %arg4[%c0_7, %c0_8] : memref<128x64xbf16, #tpu.memory_space<vmem>>, vector<128x64xbf16>
    %cst_9 = arith.constant dense<0.000000e+00> : vector<64x64xf32>
    %26 = tpu.matmul %24, %25, %cst_9 {dimension_numbers = #tpu.dot_dimension_numbers<[1], [0], [0], [1], [0, 0, 1, 1], [], []>} : vector<64x128xbf16>, vector<128x64xbf16>, vector<64x64xf32> -> vector<64x64xf32>
    %cst_10 = arith.constant dense<0.000000e+00> : vector<64xf32>
    %27 = vector.multi_reduction <add>, %26, %cst_10 [0] : vector<64x64xf32> to vector<64xf32>
    %28 = vector.shape_cast %27 : vector<64xf32> to vector<1x64xf32>
    %29 = arith.mulf %26, %26 : vector<64x64xf32>
    %cst_11 = arith.constant dense<0.000000e+00> : vector<64xf32>
    %30 = vector.multi_reduction <add>, %29, %cst_11 [0] : vector<64x64xf32> to vector<64xf32>
    %31 = vector.shape_cast %30 : vector<64xf32> to vector<1x64xf32>
    %32 = tpu.concatenate %28, %31 in 0 : vector<1x64xf32>, vector<1x64xf32> -> vector<2x64xf32>
    %c0_12 = arith.constant 0 : index
    %c0_13 = arith.constant 0 : index
    %c0_14 = arith.constant 0 : index
    %c0_15 = arith.constant 0 : index
    %33 = vector.load %arg6[%c0_12, %c0_13, %c0_14, %c0_15] : memref<1x1x2x64xf32, #tpu.memory_space<vmem>>, vector<1x1x2x64xf32>
    %34 = vector.shape_cast %33 : vector<1x1x2x64xf32> to vector<2x64xf32>
    %35 = vector.shape_cast %32 : vector<2x64xf32> to vector<1x1x2x64xf32>
    tpu.vector_store %arg6[%c0_12, %c0_13, %c0_14, %c0_15], %35 {strides = array<i32>} : memref<1x1x2x64xf32, #tpu.memory_space<vmem>>, vector<1x1x2x64xf32>,
    %36 = vector.shape_cast %26 : vector<64x64xf32> to vector<4x16x64xf32>
    %cst_16 = arith.constant dense<0xFF800000> : vector<16x64xf32>
    %37 = vector.multi_reduction <maximumf>, %36, %cst_16 [0] : vector<4x16x64xf32> to vector<16x64xf32>
    %c0_17 = arith.constant 0 : index
    %c0_18 = arith.constant 0 : index
    %c0_19 = arith.constant 0 : index
    %38 = vector.load %arg5[%c0_17, %c0_18, %c0_19] : memref<1x16x64xf32, #tpu.memory_space<vmem>>, vector<1x16x64xf32>
    %39 = vector.shape_cast %38 : vector<1x16x64xf32> to vector<16x64xf32>
    %40 = vector.shape_cast %37 : vector<16x64xf32> to vector<1x16x64xf32>
    tpu.vector_store %arg5[%c0_17, %c0_18, %c0_19], %40 {strides = array<i32>} : memref<1x16x64xf32, #tpu.memory_space<vmem>>, vector<1x16x64xf32>,
    return
  }
  func.func @transform_0(%arg0: i32, %arg1: i32) -> (i32, i32, i32) {
    %c0_i32 = arith.constant 0 : i32
    %c0_i32_0 = arith.constant 0 : i32
    %c0_i32_1 = arith.constant 0 : i32
    return %arg0, %c0_i32, %c0_i32_0 : i32, i32, i32
  }
  func.func @transform_1(%arg0: i32, %arg1: i32) -> (i32, i32, i32) {
    %c0_i32 = arith.constant 0 : i32
    %c0_i32_0 = arith.constant 0 : i32
    return %arg0, %c0_i32, %arg1 : i32, i32, i32
  }
  func.func @transform_2(%arg0: i32, %arg1: i32) -> (i32, i32) {
    %c0_i32 = arith.constant 0 : i32
    %c0_i32_0 = arith.constant 0 : i32
    %c0_i32_1 = arith.constant 0 : i32
    return %c0_i32, %c0_i32_0 : i32, i32
  }
  func.func @transform_3(%arg0: i32, %arg1: i32) -> (i32, i32, i32) {
    %c0_i32 = arith.constant 0 : i32
    %c0_i32_0 = arith.constant 0 : i32
    return %arg0, %arg1, %c0_i32 : i32, i32, i32
  }
  func.func @transform_4(%arg0: i32, %arg1: i32) -> (i32, i32, i32, i32) {
    %c0_i32 = arith.constant 0 : i32
    %c0_i32_0 = arith.constant 0 : i32
    %c0_i32_1 = arith.constant 0 : i32
    return %arg0, %arg1, %c0_i32, %c0_i32_0 : i32, i32, i32, i32
  }
}

module attributes {stable_mosaic.version = 11 : i64} {
  func.func @_bn_lrelu_kernel(%arg0: i32, %arg1: memref<32x128xf32, #tpu.memory_space<vmem>>, %arg2: memref<1x128xf32, #tpu.memory_space<vmem>>, %arg3: memref<1x128xf32, #tpu.memory_space<vmem>>, %arg4: memref<32x128xf32, #tpu.memory_space<vmem>>) attributes {dimension_semantics = [#tpu.dimension_semantics<parallel>], iteration_bounds = array<i64: 1>, scalar_prefetch = 0 : i64, scratch_operands = 0 : i64, tpu.core_type = #tpu.core_type<tc>, window_params = [{transform_indices = @transform_0, window_bounds = array<i64: 32, 128>}, {pipeline_mode = #tpu.pipeline_mode<synchronous>, transform_indices = @transform_1, window_bounds = array<i64: 1, 128>}, {pipeline_mode = #tpu.pipeline_mode<synchronous>, transform_indices = @transform_2, window_bounds = array<i64: 1, 128>}, {transform_indices = @transform_3, window_bounds = array<i64: 32, 128>}]} {
    %c0 = arith.constant 0 : index
    %c0_0 = arith.constant 0 : index
    %0 = vector.load %arg1[%c0, %c0_0] : memref<32x128xf32, #tpu.memory_space<vmem>>, vector<32x128xf32>
    %c0_1 = arith.constant 0 : index
    %c0_2 = arith.constant 0 : index
    %1 = vector.load %arg2[%c0_1, %c0_2] : memref<1x128xf32, #tpu.memory_space<vmem>>, vector<1x128xf32>
    %2 = vector.broadcast %1 : vector<1x128xf32> to vector<32x128xf32>
    %3 = arith.mulf %0, %2 : vector<32x128xf32>
    %c0_3 = arith.constant 0 : index
    %c0_4 = arith.constant 0 : index
    %4 = vector.load %arg3[%c0_3, %c0_4] : memref<1x128xf32, #tpu.memory_space<vmem>>, vector<1x128xf32>
    %5 = vector.broadcast %4 : vector<1x128xf32> to vector<32x128xf32>
    %6 = arith.addf %3, %5 : vector<32x128xf32>
    %cst = arith.constant 0.000000e+00 : f32
    %7 = vector.broadcast %cst : f32 to vector<32x128xf32>
    %8 = arith.cmpf ogt, %6, %7 : vector<32x128xf32>
    %cst_5 = arith.constant 2.000000e-01 : f32
    %9 = vector.broadcast %cst_5 : f32 to vector<32x128xf32>
    %10 = arith.mulf %9, %6 : vector<32x128xf32>
    %11 = arith.select %8, %6, %10 : vector<32x128xi1>, vector<32x128xf32>
    %c0_6 = arith.constant 0 : index
    %c0_7 = arith.constant 0 : index
    %12 = vector.load %arg4[%c0_6, %c0_7] : memref<32x128xf32, #tpu.memory_space<vmem>>, vector<32x128xf32>
    tpu.vector_store %arg4[%c0_6, %c0_7], %11 {strides = array<i32>} : memref<32x128xf32, #tpu.memory_space<vmem>>, vector<32x128xf32>,
    return
  }
  func.func @transform_0(%arg0: i32) -> (i32, i32) {
    %c0_i32 = arith.constant 0 : i32
    %c0_i32_0 = arith.constant 0 : i32
    return %arg0, %c0_i32 : i32, i32
  }
  func.func @transform_1(%arg0: i32) -> (i32, i32) {
    %c0_i32 = arith.constant 0 : i32
    %c0_i32_0 = arith.constant 0 : i32
    %c0_i32_1 = arith.constant 0 : i32
    return %c0_i32, %c0_i32_0 : i32, i32
  }
  func.func @transform_2(%arg0: i32) -> (i32, i32) {
    %c0_i32 = arith.constant 0 : i32
    %c0_i32_0 = arith.constant 0 : i32
    %c0_i32_1 = arith.constant 0 : i32
    return %c0_i32, %c0_i32_0 : i32, i32
  }
  func.func @transform_3(%arg0: i32) -> (i32, i32) {
    %c0_i32 = arith.constant 0 : i32
    %c0_i32_0 = arith.constant 0 : i32
    return %arg0, %c0_i32 : i32, i32
  }
}

module attributes {stable_mosaic.version = 11 : i64} {
  func.func @_edge_pass1_kernel(%arg0: i32, %arg1: i32, %arg2: memref<1x16x64xbf16, #tpu.memory_space<vmem>>, %arg3: memref<1x4x16xi32, #tpu.memory_space<vmem>>, %arg4: memref<128x128xbf16, #tpu.memory_space<vmem>>, %arg5: memref<1x16x128xf32, #tpu.memory_space<vmem>>, %arg6: memref<1x1x2x128xf32, #tpu.memory_space<vmem>>) attributes {dimension_semantics = [#tpu.dimension_semantics<parallel>, #tpu.dimension_semantics<parallel>], iteration_bounds = array<i64: 2, 1>, scalar_prefetch = 0 : i64, scratch_operands = 0 : i64, tpu.core_type = #tpu.core_type<tc>, window_params = [{transform_indices = @transform_0, window_bounds = array<i64: 1, 16, 64>}, {transform_indices = @transform_1, window_bounds = array<i64: 1, 4, 16>}, {pipeline_mode = #tpu.pipeline_mode<synchronous>, transform_indices = @transform_2, window_bounds = array<i64: 128, 128>}, {transform_indices = @transform_3, window_bounds = array<i64: 1, 16, 128>}, {transform_indices = @transform_4, window_bounds = array<i64: 1, 1, 2, 128>}]} {
    %c0 = arith.constant 0 : index
    %c0_0 = arith.constant 0 : index
    %c0_1 = arith.constant 0 : index
    %0 = vector.load %arg2[%c0, %c0_0, %c0_1] : memref<1x16x64xbf16, #tpu.memory_space<vmem>>, vector<1x16x64xbf16>
    %1 = vector.shape_cast %0 : vector<1x16x64xbf16> to vector<16x64xbf16>
    %c16_i32 = arith.constant 16 : i32
    %2 = arith.muli %arg1, %c16_i32 : i32
    %3 = tpu.assume_multiple %2, 16 : i32
    %c0_2 = arith.constant 0 : index
    %4 = arith.index_cast %3 : i32 to index
    %c0_3 = arith.constant 0 : index
    %5 = vector.load %arg2[%c0_2, %4, %c0_3] : memref<1x16x64xbf16, #tpu.memory_space<vmem>>, vector<1x16x64xbf16>
    %6 = vector.shape_cast %5 : vector<1x16x64xbf16> to vector<16x64xbf16>
    %c0_4 = arith.constant 0 : index
    %c0_5 = arith.constant 0 : index
    %c0_6 = arith.constant 0 : index
    %7 = vector.load %arg3[%c0_4, %c0_5, %c0_6] : memref<1x4x16xi32, #tpu.memory_space<vmem>>, vector<1x4x16xi32>
    %8 = vector.shape_cast %7 : vector<1x4x16xi32> to vector<4x16xi32>
    %9 = tpu.iota {dimensions = array<i32: 2>} : vector<4x16x16xi32>
    %10 = vector.shape_cast %8 : vector<4x16xi32> to vector<4x16x1xi32>
    %11 = vector.broadcast %10 : vector<4x16x1xi32> to vector<4x16x16xi32>
    %12 = arith.cmpi eq, %11, %9 : vector<4x16x16xi32>
    %13 = arith.extui %12 : vector<4x16x16xi1> to vector<4x16x16xi32>
    %14 = arith.sitofp %13 : vector<4x16x16xi32> to vector<4x16x16xf32>
    %15 = arith.truncf %14 : vector<4x16x16xf32> to vector<4x16x16xbf16>
    %16 = vector.shape_cast %15 : vector<4x16x16xbf16> to vector<64x16xbf16>
    %cst = arith.constant dense<0.000000e+00> : vector<64x64xf32>
    %17 = tpu.matmul %16, %1, %cst {dimension_numbers = #tpu.dot_dimension_numbers<[1], [0], [0], [1], [0, 0, 1, 1], [], []>} : vector<64x16xbf16>, vector<16x64xbf16>, vector<64x64xf32> -> vector<64x64xf32>
    %18 = arith.truncf %17 : vector<64x64xf32> to vector<64x64xbf16>
    %19 = vector.shape_cast %6 : vector<16x64xbf16> to vector<1x16x64xbf16>
    %20 = vector.shape_cast %19 : vector<1x16x64xbf16> to vector<1x16x64xbf16>
    %21 = vector.broadcast %20 : vector<1x16x64xbf16> to vector<4x16x64xbf16>
    %22 = vector.shape_cast %21 : vector<4x16x64xbf16> to vector<64x64xbf16>
    %23 = arith.subf %18, %22 : vector<64x64xbf16>
    %24 = tpu.concatenate %23, %22 in 1 : vector<64x64xbf16>, vector<64x64xbf16> -> vector<64x128xbf16>
    %c0_7 = arith.constant 0 : index
    %c0_8 = arith.constant 0 : index
    %25 = vector.load %arg4[%c0_7, %c0_8] : memref<128x128xbf16, #tpu.memory_space<vmem>>, vector<128x128xbf16>
    %cst_9 = arith.constant dense<0.000000e+00> : vector<64x128xf32>
    %26 = tpu.matmul %24, %25, %cst_9 {dimension_numbers = #tpu.dot_dimension_numbers<[1], [0], [0], [1], [0, 0, 1, 1], [], []>} : vector<64x128xbf16>, vector<128x128xbf16>, vector<64x128xf32> -> vector<64x128xf32>
    %cst_10 = arith.constant dense<0.000000e+00> : vector<128xf32>
    %27 = vector.multi_reduction <add>, %26, %cst_10 [0] : vector<64x128xf32> to vector<128xf32>
    %28 = vector.shape_cast %27 : vector<128xf32> to vector<1x128xf32>
    %29 = arith.mulf %26, %26 : vector<64x128xf32>
    %cst_11 = arith.constant dense<0.000000e+00> : vector<128xf32>
    %30 = vector.multi_reduction <add>, %29, %cst_11 [0] : vector<64x128xf32> to vector<128xf32>
    %31 = vector.shape_cast %30 : vector<128xf32> to vector<1x128xf32>
    %32 = tpu.concatenate %28, %31 in 0 : vector<1x128xf32>, vector<1x128xf32> -> vector<2x128xf32>
    %c0_12 = arith.constant 0 : index
    %c0_13 = arith.constant 0 : index
    %c0_14 = arith.constant 0 : index
    %c0_15 = arith.constant 0 : index
    %33 = vector.load %arg6[%c0_12, %c0_13, %c0_14, %c0_15] : memref<1x1x2x128xf32, #tpu.memory_space<vmem>>, vector<1x1x2x128xf32>
    %34 = vector.shape_cast %33 : vector<1x1x2x128xf32> to vector<2x128xf32>
    %35 = vector.shape_cast %32 : vector<2x128xf32> to vector<1x1x2x128xf32>
    tpu.vector_store %arg6[%c0_12, %c0_13, %c0_14, %c0_15], %35 {strides = array<i32>} : memref<1x1x2x128xf32, #tpu.memory_space<vmem>>, vector<1x1x2x128xf32>,
    %36 = vector.shape_cast %26 : vector<64x128xf32> to vector<4x16x128xf32>
    %cst_16 = arith.constant dense<0xFF800000> : vector<16x128xf32>
    %37 = vector.multi_reduction <maximumf>, %36, %cst_16 [0] : vector<4x16x128xf32> to vector<16x128xf32>
    %c0_17 = arith.constant 0 : index
    %c0_18 = arith.constant 0 : index
    %c0_19 = arith.constant 0 : index
    %38 = vector.load %arg5[%c0_17, %c0_18, %c0_19] : memref<1x16x128xf32, #tpu.memory_space<vmem>>, vector<1x16x128xf32>
    %39 = vector.shape_cast %38 : vector<1x16x128xf32> to vector<16x128xf32>
    %40 = vector.shape_cast %37 : vector<16x128xf32> to vector<1x16x128xf32>
    tpu.vector_store %arg5[%c0_17, %c0_18, %c0_19], %40 {strides = array<i32>} : memref<1x16x128xf32, #tpu.memory_space<vmem>>, vector<1x16x128xf32>,
    return
  }
  func.func @transform_0(%arg0: i32, %arg1: i32) -> (i32, i32, i32) {
    %c0_i32 = arith.constant 0 : i32
    %c0_i32_0 = arith.constant 0 : i32
    %c0_i32_1 = arith.constant 0 : i32
    return %arg0, %c0_i32, %c0_i32_0 : i32, i32, i32
  }
  func.func @transform_1(%arg0: i32, %arg1: i32) -> (i32, i32, i32) {
    %c0_i32 = arith.constant 0 : i32
    %c0_i32_0 = arith.constant 0 : i32
    return %arg0, %c0_i32, %arg1 : i32, i32, i32
  }
  func.func @transform_2(%arg0: i32, %arg1: i32) -> (i32, i32) {
    %c0_i32 = arith.constant 0 : i32
    %c0_i32_0 = arith.constant 0 : i32
    %c0_i32_1 = arith.constant 0 : i32
    return %c0_i32, %c0_i32_0 : i32, i32
  }
  func.func @transform_3(%arg0: i32, %arg1: i32) -> (i32, i32, i32) {
    %c0_i32 = arith.constant 0 : i32
    %c0_i32_0 = arith.constant 0 : i32
    return %arg0, %arg1, %c0_i32 : i32, i32, i32
  }
  func.func @transform_4(%arg0: i32, %arg1: i32) -> (i32, i32, i32, i32) {
    %c0_i32 = arith.constant 0 : i32
    %c0_i32_0 = arith.constant 0 : i32
    %c0_i32_1 = arith.constant 0 : i32
    return %arg0, %arg1, %c0_i32, %c0_i32_0 : i32, i32, i32, i32
  }
}

module attributes {stable_mosaic.version = 11 : i64} {
  func.func @_pdist_kernel(%arg0: i32, %arg1: memref<1x16x128xf32, #tpu.memory_space<vmem>>, %arg2: memref<1x16x16xf32, #tpu.memory_space<vmem>>) attributes {dimension_semantics = [#tpu.dimension_semantics<parallel>], iteration_bounds = array<i64: 2>, scalar_prefetch = 0 : i64, scratch_operands = 0 : i64, tpu.core_type = #tpu.core_type<tc>, window_params = [{transform_indices = @transform_0, window_bounds = array<i64: 1, 16, 128>}, {transform_indices = @transform_1, window_bounds = array<i64: 1, 16, 16>}]} {
    %c0 = arith.constant 0 : index
    %c0_0 = arith.constant 0 : index
    %c0_1 = arith.constant 0 : index
    %0 = vector.load %arg1[%c0, %c0_0, %c0_1] : memref<1x16x128xf32, #tpu.memory_space<vmem>>, vector<1x16x128xf32>
    %1 = vector.shape_cast %0 : vector<1x16x128xf32> to vector<16x128xf32>
    %cst = arith.constant dense<0.000000e+00> : vector<16x16xf32>
    %2 = tpu.matmul %1, %1, %cst {dimension_numbers = #tpu.dot_dimension_numbers<[1], [1], [0], [0], [0, 0, 1, 0], [], []>} : vector<16x128xf32>, vector<16x128xf32>, vector<16x16xf32> -> vector<16x16xf32>
    %3 = arith.mulf %1, %1 : vector<16x128xf32>
    %cst_2 = arith.constant dense<0.000000e+00> : vector<16xf32>
    %4 = vector.multi_reduction <add>, %3, %cst_2 [1] : vector<16x128xf32> to vector<16xf32>
    %5 = vector.shape_cast %4 : vector<16xf32> to vector<16x1xf32>
    %cst_3 = arith.constant 1.000000e+00 : f32
    %6 = vector.broadcast %cst_3 : f32 to vector<1x128xf32>
    %cst_4 = arith.constant dense<0.000000e+00> : vector<1x16xf32>
    %7 = tpu.matmul %6, %3, %cst_4 {dimension_numbers = #tpu.dot_dimension_numbers<[1], [1], [0], [0], [0, 0, 1, 0], [], []>} : vector<1x128xf32>, vector<16x128xf32>, vector<1x16xf32> -> vector<1x16xf32>
    %cst_5 = arith.constant 2.000000e+00 : f32
    %8 = vector.broadcast %cst_5 : f32 to vector<16x16xf32>
    %9 = arith.mulf %8, %2 : vector<16x16xf32>
    %10 = vector.broadcast %5 : vector<16x1xf32> to vector<16x16xf32>
    %11 = arith.subf %9, %10 : vector<16x16xf32>
    %12 = vector.broadcast %7 : vector<1x16xf32> to vector<16x16xf32>
    %13 = arith.subf %11, %12 : vector<16x16xf32>
    %c0_6 = arith.constant 0 : index
    %c0_7 = arith.constant 0 : index
    %c0_8 = arith.constant 0 : index
    %14 = vector.load %arg2[%c0_6, %c0_7, %c0_8] : memref<1x16x16xf32, #tpu.memory_space<vmem>>, vector<1x16x16xf32>
    %15 = vector.shape_cast %14 : vector<1x16x16xf32> to vector<16x16xf32>
    %16 = vector.shape_cast %13 : vector<16x16xf32> to vector<1x16x16xf32>
    tpu.vector_store %arg2[%c0_6, %c0_7, %c0_8], %16 {strides = array<i32>} : memref<1x16x16xf32, #tpu.memory_space<vmem>>, vector<1x16x16xf32>,
    return
  }
  func.func @transform_0(%arg0: i32) -> (i32, i32, i32) {
    %c0_i32 = arith.constant 0 : i32
    %c0_i32_0 = arith.constant 0 : i32
    %c0_i32_1 = arith.constant 0 : i32
    return %arg0, %c0_i32, %c0_i32_0 : i32, i32, i32
  }
  func.func @transform_1(%arg0: i32) -> (i32, i32, i32) {
    %c0_i32 = arith.constant 0 : i32
    %c0_i32_0 = arith.constant 0 : i32
    %c0_i32_1 = arith.constant 0 : i32
    return %arg0, %c0_i32, %c0_i32_0 : i32, i32, i32
  }
}

module attributes {stable_mosaic.version = 11 : i64} {
  func.func @_edge_pass1_kernel(%arg0: i32, %arg1: i32, %arg2: memref<1x16x128xbf16, #tpu.memory_space<vmem>>, %arg3: memref<1x4x16xi32, #tpu.memory_space<vmem>>, %arg4: memref<256x256xbf16, #tpu.memory_space<vmem>>, %arg5: memref<1x16x256xf32, #tpu.memory_space<vmem>>, %arg6: memref<1x1x2x256xf32, #tpu.memory_space<vmem>>) attributes {dimension_semantics = [#tpu.dimension_semantics<parallel>, #tpu.dimension_semantics<parallel>], iteration_bounds = array<i64: 2, 1>, scalar_prefetch = 0 : i64, scratch_operands = 0 : i64, tpu.core_type = #tpu.core_type<tc>, window_params = [{transform_indices = @transform_0, window_bounds = array<i64: 1, 16, 128>}, {transform_indices = @transform_1, window_bounds = array<i64: 1, 4, 16>}, {pipeline_mode = #tpu.pipeline_mode<synchronous>, transform_indices = @transform_2, window_bounds = array<i64: 256, 256>}, {transform_indices = @transform_3, window_bounds = array<i64: 1, 16, 256>}, {transform_indices = @transform_4, window_bounds = array<i64: 1, 1, 2, 256>}]} {
    %c0 = arith.constant 0 : index
    %c0_0 = arith.constant 0 : index
    %c0_1 = arith.constant 0 : index
    %0 = vector.load %arg2[%c0, %c0_0, %c0_1] : memref<1x16x128xbf16, #tpu.memory_space<vmem>>, vector<1x16x128xbf16>
    %1 = vector.shape_cast %0 : vector<1x16x128xbf16> to vector<16x128xbf16>
    %c16_i32 = arith.constant 16 : i32
    %2 = arith.muli %arg1, %c16_i32 : i32
    %3 = tpu.assume_multiple %2, 16 : i32
    %c0_2 = arith.constant 0 : index
    %4 = arith.index_cast %3 : i32 to index
    %c0_3 = arith.constant 0 : index
    %5 = vector.load %arg2[%c0_2, %4, %c0_3] : memref<1x16x128xbf16, #tpu.memory_space<vmem>>, vector<1x16x128xbf16>
    %6 = vector.shape_cast %5 : vector<1x16x128xbf16> to vector<16x128xbf16>
    %c0_4 = arith.constant 0 : index
    %c0_5 = arith.constant 0 : index
    %c0_6 = arith.constant 0 : index
    %7 = vector.load %arg3[%c0_4, %c0_5, %c0_6] : memref<1x4x16xi32, #tpu.memory_space<vmem>>, vector<1x4x16xi32>
    %8 = vector.shape_cast %7 : vector<1x4x16xi32> to vector<4x16xi32>
    %9 = tpu.iota {dimensions = array<i32: 2>} : vector<4x16x16xi32>
    %10 = vector.shape_cast %8 : vector<4x16xi32> to vector<4x16x1xi32>
    %11 = vector.broadcast %10 : vector<4x16x1xi32> to vector<4x16x16xi32>
    %12 = arith.cmpi eq, %11, %9 : vector<4x16x16xi32>
    %13 = arith.extui %12 : vector<4x16x16xi1> to vector<4x16x16xi32>
    %14 = arith.sitofp %13 : vector<4x16x16xi32> to vector<4x16x16xf32>
    %15 = arith.truncf %14 : vector<4x16x16xf32> to vector<4x16x16xbf16>
    %16 = vector.shape_cast %15 : vector<4x16x16xbf16> to vector<64x16xbf16>
    %cst = arith.constant dense<0.000000e+00> : vector<64x128xf32>
    %17 = tpu.matmul %16, %1, %cst {dimension_numbers = #tpu.dot_dimension_numbers<[1], [0], [0], [1], [0, 0, 1, 1], [], []>} : vector<64x16xbf16>, vector<16x128xbf16>, vector<64x128xf32> -> vector<64x128xf32>
    %18 = arith.truncf %17 : vector<64x128xf32> to vector<64x128xbf16>
    %19 = vector.shape_cast %6 : vector<16x128xbf16> to vector<1x16x128xbf16>
    %20 = vector.shape_cast %19 : vector<1x16x128xbf16> to vector<1x16x128xbf16>
    %21 = vector.broadcast %20 : vector<1x16x128xbf16> to vector<4x16x128xbf16>
    %22 = vector.shape_cast %21 : vector<4x16x128xbf16> to vector<64x128xbf16>
    %23 = arith.subf %18, %22 : vector<64x128xbf16>
    %24 = tpu.concatenate %23, %22 in 1 : vector<64x128xbf16>, vector<64x128xbf16> -> vector<64x256xbf16>
    %c0_7 = arith.constant 0 : index
    %c0_8 = arith.constant 0 : index
    %25 = vector.load %arg4[%c0_7, %c0_8] : memref<256x256xbf16, #tpu.memory_space<vmem>>, vector<256x256xbf16>
    %cst_9 = arith.constant dense<0.000000e+00> : vector<64x256xf32>
    %26 = tpu.matmul %24, %25, %cst_9 {dimension_numbers = #tpu.dot_dimension_numbers<[1], [0], [0], [1], [0, 0, 1, 1], [], []>} : vector<64x256xbf16>, vector<256x256xbf16>, vector<64x256xf32> -> vector<64x256xf32>
    %cst_10 = arith.constant dense<0.000000e+00> : vector<256xf32>
    %27 = vector.multi_reduction <add>, %26, %cst_10 [0] : vector<64x256xf32> to vector<256xf32>
    %28 = vector.shape_cast %27 : vector<256xf32> to vector<1x256xf32>
    %29 = arith.mulf %26, %26 : vector<64x256xf32>
    %cst_11 = arith.constant dense<0.000000e+00> : vector<256xf32>
    %30 = vector.multi_reduction <add>, %29, %cst_11 [0] : vector<64x256xf32> to vector<256xf32>
    %31 = vector.shape_cast %30 : vector<256xf32> to vector<1x256xf32>
    %32 = tpu.concatenate %28, %31 in 0 : vector<1x256xf32>, vector<1x256xf32> -> vector<2x256xf32>
    %c0_12 = arith.constant 0 : index
    %c0_13 = arith.constant 0 : index
    %c0_14 = arith.constant 0 : index
    %c0_15 = arith.constant 0 : index
    %33 = vector.load %arg6[%c0_12, %c0_13, %c0_14, %c0_15] : memref<1x1x2x256xf32, #tpu.memory_space<vmem>>, vector<1x1x2x256xf32>
    %34 = vector.shape_cast %33 : vector<1x1x2x256xf32> to vector<2x256xf32>
    %35 = vector.shape_cast %32 : vector<2x256xf32> to vector<1x1x2x256xf32>
    tpu.vector_store %arg6[%c0_12, %c0_13, %c0_14, %c0_15], %35 {strides = array<i32>} : memref<1x1x2x256xf32, #tpu.memory_space<vmem>>, vector<1x1x2x256xf32>,
    %36 = vector.shape_cast %26 : vector<64x256xf32> to vector<4x16x256xf32>
    %cst_16 = arith.constant dense<0xFF800000> : vector<16x256xf32>
    %37 = vector.multi_reduction <maximumf>, %36, %cst_16 [0] : vector<4x16x256xf32> to vector<16x256xf32>
    %c0_17 = arith.constant 0 : index
    %c0_18 = arith.constant 0 : index
    %c0_19 = arith.constant 0 : index
    %38 = vector.load %arg5[%c0_17, %c0_18, %c0_19] : memref<1x16x256xf32, #tpu.memory_space<vmem>>, vector<1x16x256xf32>
    %39 = vector.shape_cast %38 : vector<1x16x256xf32> to vector<16x256xf32>
    %40 = vector.shape_cast %37 : vector<16x256xf32> to vector<1x16x256xf32>
    tpu.vector_store %arg5[%c0_17, %c0_18, %c0_19], %40 {strides = array<i32>} : memref<1x16x256xf32, #tpu.memory_space<vmem>>, vector<1x16x256xf32>,
    return
  }
  func.func @transform_0(%arg0: i32, %arg1: i32) -> (i32, i32, i32) {
    %c0_i32 = arith.constant 0 : i32
    %c0_i32_0 = arith.constant 0 : i32
    %c0_i32_1 = arith.constant 0 : i32
    return %arg0, %c0_i32, %c0_i32_0 : i32, i32, i32
  }
  func.func @transform_1(%arg0: i32, %arg1: i32) -> (i32, i32, i32) {
    %c0_i32 = arith.constant 0 : i32
    %c0_i32_0 = arith.constant 0 : i32
    return %arg0, %c0_i32, %arg1 : i32, i32, i32
  }
  func.func @transform_2(%arg0: i32, %arg1: i32) -> (i32, i32) {
    %c0_i32 = arith.constant 0 : i32
    %c0_i32_0 = arith.constant 0 : i32
    %c0_i32_1 = arith.constant 0 : i32
    return %c0_i32, %c0_i32_0 : i32, i32
  }
  func.func @transform_3(%arg0: i32, %arg1: i32) -> (i32, i32, i32) {
    %c0_i32 = arith.constant 0 : i32
    %c0_i32_0 = arith.constant 0 : i32
    return %arg0, %arg1, %c0_i32 : i32, i32, i32
  }
  func.func @transform_4(%arg0: i32, %arg1: i32) -> (i32, i32, i32, i32) {
    %c0_i32 = arith.constant 0 : i32
    %c0_i32_0 = arith.constant 0 : i32
    %c0_i32_1 = arith.constant 0 : i32
    return %arg0, %arg1, %c0_i32, %c0_i32_0 : i32, i32, i32, i32
  }
}

module attributes {stable_mosaic.version = 11 : i64} {
  func.func @_matmul_stats_kernel(%arg0: i32, %arg1: memref<32x512xf32, #tpu.memory_space<vmem>>, %arg2: memref<512x64xbf16, #tpu.memory_space<vmem>>, %arg3: memref<32x64xf32, #tpu.memory_space<vmem>>, %arg4: memref<1x2x64xf32, #tpu.memory_space<vmem>>) attributes {dimension_semantics = [#tpu.dimension_semantics<parallel>], iteration_bounds = array<i64: 1>, scalar_prefetch = 0 : i64, scratch_operands = 0 : i64, tpu.core_type = #tpu.core_type<tc>, window_params = [{transform_indices = @transform_0, window_bounds = array<i64: 32, 512>}, {pipeline_mode = #tpu.pipeline_mode<synchronous>, transform_indices = @transform_1, window_bounds = array<i64: 512, 64>}, {transform_indices = @transform_2, window_bounds = array<i64: 32, 64>}, {transform_indices = @transform_3, window_bounds = array<i64: 1, 2, 64>}]} {
    %c0 = arith.constant 0 : index
    %c0_0 = arith.constant 0 : index
    %0 = vector.load %arg1[%c0, %c0_0] : memref<32x512xf32, #tpu.memory_space<vmem>>, vector<32x512xf32>
    %1 = arith.truncf %0 : vector<32x512xf32> to vector<32x512xbf16>
    %c0_1 = arith.constant 0 : index
    %c0_2 = arith.constant 0 : index
    %2 = vector.load %arg2[%c0_1, %c0_2] : memref<512x64xbf16, #tpu.memory_space<vmem>>, vector<512x64xbf16>
    %cst = arith.constant dense<0.000000e+00> : vector<32x64xf32>
    %3 = tpu.matmul %1, %2, %cst {dimension_numbers = #tpu.dot_dimension_numbers<[1], [0], [0], [1], [0, 0, 1, 1], [], []>} : vector<32x512xbf16>, vector<512x64xbf16>, vector<32x64xf32> -> vector<32x64xf32>
    %c0_3 = arith.constant 0 : index
    %c0_4 = arith.constant 0 : index
    %4 = vector.load %arg3[%c0_3, %c0_4] : memref<32x64xf32, #tpu.memory_space<vmem>>, vector<32x64xf32>
    tpu.vector_store %arg3[%c0_3, %c0_4], %3 {strides = array<i32>} : memref<32x64xf32, #tpu.memory_space<vmem>>, vector<32x64xf32>,
    %cst_5 = arith.constant dense<0.000000e+00> : vector<64xf32>
    %5 = vector.multi_reduction <add>, %3, %cst_5 [0] : vector<32x64xf32> to vector<64xf32>
    %6 = vector.shape_cast %5 : vector<64xf32> to vector<1x64xf32>
    %7 = arith.mulf %3, %3 : vector<32x64xf32>
    %cst_6 = arith.constant dense<0.000000e+00> : vector<64xf32>
    %8 = vector.multi_reduction <add>, %7, %cst_6 [0] : vector<32x64xf32> to vector<64xf32>
    %9 = vector.shape_cast %8 : vector<64xf32> to vector<1x64xf32>
    %10 = tpu.concatenate %6, %9 in 0 : vector<1x64xf32>, vector<1x64xf32> -> vector<2x64xf32>
    %c0_7 = arith.constant 0 : index
    %c0_8 = arith.constant 0 : index
    %c0_9 = arith.constant 0 : index
    %11 = vector.load %arg4[%c0_7, %c0_8, %c0_9] : memref<1x2x64xf32, #tpu.memory_space<vmem>>, vector<1x2x64xf32>
    %12 = vector.shape_cast %11 : vector<1x2x64xf32> to vector<2x64xf32>
    %13 = vector.shape_cast %10 : vector<2x64xf32> to vector<1x2x64xf32>
    tpu.vector_store %arg4[%c0_7, %c0_8, %c0_9], %13 {strides = array<i32>} : memref<1x2x64xf32, #tpu.memory_space<vmem>>, vector<1x2x64xf32>,
    return
  }
  func.func @transform_0(%arg0: i32) -> (i32, i32) {
    %c0_i32 = arith.constant 0 : i32
    %c0_i32_0 = arith.constant 0 : i32
    return %arg0, %c0_i32 : i32, i32
  }
  func.func @transform_1(%arg0: i32) -> (i32, i32) {
    %c0_i32 = arith.constant 0 : i32
    %c0_i32_0 = arith.constant 0 : i32
    %c0_i32_1 = arith.constant 0 : i32
    return %c0_i32, %c0_i32_0 : i32, i32
  }
  func.func @transform_2(%arg0: i32) -> (i32, i32) {
    %c0_i32 = arith.constant 0 : i32
    %c0_i32_0 = arith.constant 0 : i32
    return %arg0, %c0_i32 : i32, i32
  }
  func.func @transform_3(%arg0: i32) -> (i32, i32, i32) {
    %c0_i32 = arith.constant 0 : i32
    %c0_i32_0 = arith.constant 0 : i32
    %c0_i32_1 = arith.constant 0 : i32
    return %arg0, %c0_i32, %c0_i32_0 : i32, i32, i32
  }
}

module attributes {stable_mosaic.version = 11 : i64} {
  func.func @_bn_lrelu_kernel(%arg0: i32, %arg1: memref<32x256xf32, #tpu.memory_space<vmem>>, %arg2: memref<1x256xf32, #tpu.memory_space<vmem>>, %arg3: memref<1x256xf32, #tpu.memory_space<vmem>>, %arg4: memref<32x256xf32, #tpu.memory_space<vmem>>) attributes {dimension_semantics = [#tpu.dimension_semantics<parallel>], iteration_bounds = array<i64: 1>, scalar_prefetch = 0 : i64, scratch_operands = 0 : i64, tpu.core_type = #tpu.core_type<tc>, window_params = [{transform_indices = @transform_0, window_bounds = array<i64: 32, 256>}, {pipeline_mode = #tpu.pipeline_mode<synchronous>, transform_indices = @transform_1, window_bounds = array<i64: 1, 256>}, {pipeline_mode = #tpu.pipeline_mode<synchronous>, transform_indices = @transform_2, window_bounds = array<i64: 1, 256>}, {transform_indices = @transform_3, window_bounds = array<i64: 32, 256>}]} {
    %c0 = arith.constant 0 : index
    %c0_0 = arith.constant 0 : index
    %0 = vector.load %arg1[%c0, %c0_0] : memref<32x256xf32, #tpu.memory_space<vmem>>, vector<32x256xf32>
    %c0_1 = arith.constant 0 : index
    %c0_2 = arith.constant 0 : index
    %1 = vector.load %arg2[%c0_1, %c0_2] : memref<1x256xf32, #tpu.memory_space<vmem>>, vector<1x256xf32>
    %2 = vector.broadcast %1 : vector<1x256xf32> to vector<32x256xf32>
    %3 = arith.mulf %0, %2 : vector<32x256xf32>
    %c0_3 = arith.constant 0 : index
    %c0_4 = arith.constant 0 : index
    %4 = vector.load %arg3[%c0_3, %c0_4] : memref<1x256xf32, #tpu.memory_space<vmem>>, vector<1x256xf32>
    %5 = vector.broadcast %4 : vector<1x256xf32> to vector<32x256xf32>
    %6 = arith.addf %3, %5 : vector<32x256xf32>
    %cst = arith.constant 0.000000e+00 : f32
    %7 = vector.broadcast %cst : f32 to vector<32x256xf32>
    %8 = arith.cmpf ogt, %6, %7 : vector<32x256xf32>
    %cst_5 = arith.constant 2.000000e-01 : f32
    %9 = vector.broadcast %cst_5 : f32 to vector<32x256xf32>
    %10 = arith.mulf %9, %6 : vector<32x256xf32>
    %11 = arith.select %8, %6, %10 : vector<32x256xi1>, vector<32x256xf32>
    %c0_6 = arith.constant 0 : index
    %c0_7 = arith.constant 0 : index
    %12 = vector.load %arg4[%c0_6, %c0_7] : memref<32x256xf32, #tpu.memory_space<vmem>>, vector<32x256xf32>
    tpu.vector_store %arg4[%c0_6, %c0_7], %11 {strides = array<i32>} : memref<32x256xf32, #tpu.memory_space<vmem>>, vector<32x256xf32>,
    return
  }
  func.func @transform_0(%arg0: i32) -> (i32, i32) {
    %c0_i32 = arith.constant 0 : i32
    %c0_i32_0 = arith.constant 0 : i32
    return %arg0, %c0_i32 : i32, i32
  }
  func.func @transform_1(%arg0: i32) -> (i32, i32) {
    %c0_i32 = arith.constant 0 : i32
    %c0_i32_0 = arith.constant 0 : i32
    %c0_i32_1 = arith.constant 0 : i32
    return %c0_i32, %c0_i32_0 : i32, i32
  }
  func.func @transform_2(%arg0: i32) -> (i32, i32) {
    %c0_i32 = arith.constant 0 : i32
    %c0_i32_0 = arith.constant 0 : i32
    %c0_i32_1 = arith.constant 0 : i32
    return %c0_i32, %c0_i32_0 : i32, i32
  }
  func.func @transform_3(%arg0: i32) -> (i32, i32) {
    %c0_i32 = arith.constant 0 : i32
    %c0_i32_0 = arith.constant 0 : i32
    return %arg0, %c0_i32 : i32, i32
  }
}

module attributes {stable_mosaic.version = 11 : i64} {
  func.func @_bn_lrelu_kernel(%arg0: i32, %arg1: memref<32x64xf32, #tpu.memory_space<vmem>>, %arg2: memref<1x64xf32, #tpu.memory_space<vmem>>, %arg3: memref<1x64xf32, #tpu.memory_space<vmem>>, %arg4: memref<32x64xf32, #tpu.memory_space<vmem>>) attributes {dimension_semantics = [#tpu.dimension_semantics<parallel>], iteration_bounds = array<i64: 1>, scalar_prefetch = 0 : i64, scratch_operands = 0 : i64, tpu.core_type = #tpu.core_type<tc>, window_params = [{transform_indices = @transform_0, window_bounds = array<i64: 32, 64>}, {pipeline_mode = #tpu.pipeline_mode<synchronous>, transform_indices = @transform_1, window_bounds = array<i64: 1, 64>}, {pipeline_mode = #tpu.pipeline_mode<synchronous>, transform_indices = @transform_2, window_bounds = array<i64: 1, 64>}, {transform_indices = @transform_3, window_bounds = array<i64: 32, 64>}]} {
    %c0 = arith.constant 0 : index
    %c0_0 = arith.constant 0 : index
    %0 = vector.load %arg1[%c0, %c0_0] : memref<32x64xf32, #tpu.memory_space<vmem>>, vector<32x64xf32>
    %c0_1 = arith.constant 0 : index
    %c0_2 = arith.constant 0 : index
    %1 = vector.load %arg2[%c0_1, %c0_2] : memref<1x64xf32, #tpu.memory_space<vmem>>, vector<1x64xf32>
    %2 = vector.broadcast %1 : vector<1x64xf32> to vector<32x64xf32>
    %3 = arith.mulf %0, %2 : vector<32x64xf32>
    %c0_3 = arith.constant 0 : index
    %c0_4 = arith.constant 0 : index
    %4 = vector.load %arg3[%c0_3, %c0_4] : memref<1x64xf32, #tpu.memory_space<vmem>>, vector<1x64xf32>
    %5 = vector.broadcast %4 : vector<1x64xf32> to vector<32x64xf32>
    %6 = arith.addf %3, %5 : vector<32x64xf32>
    %cst = arith.constant 0.000000e+00 : f32
    %7 = vector.broadcast %cst : f32 to vector<32x64xf32>
    %8 = arith.cmpf ogt, %6, %7 : vector<32x64xf32>
    %cst_5 = arith.constant 2.000000e-01 : f32
    %9 = vector.broadcast %cst_5 : f32 to vector<32x64xf32>
    %10 = arith.mulf %9, %6 : vector<32x64xf32>
    %11 = arith.select %8, %6, %10 : vector<32x64xi1>, vector<32x64xf32>
    %c0_6 = arith.constant 0 : index
    %c0_7 = arith.constant 0 : index
    %12 = vector.load %arg4[%c0_6, %c0_7] : memref<32x64xf32, #tpu.memory_space<vmem>>, vector<32x64xf32>
    tpu.vector_store %arg4[%c0_6, %c0_7], %11 {strides = array<i32>} : memref<32x64xf32, #tpu.memory_space<vmem>>, vector<32x64xf32>,
    return
  }
  func.func @transform_0(%arg0: i32) -> (i32, i32) {
    %c0_i32 = arith.constant 0 : i32
    %c0_i32_0 = arith.constant 0 : i32
    return %arg0, %c0_i32 : i32, i32
  }
  func.func @transform_1(%arg0: i32) -> (i32, i32) {
    %c0_i32 = arith.constant 0 : i32
    %c0_i32_0 = arith.constant 0 : i32
    %c0_i32_1 = arith.constant 0 : i32
    return %c0_i32, %c0_i32_0 : i32, i32
  }
  func.func @transform_2(%arg0: i32) -> (i32, i32) {
    %c0_i32 = arith.constant 0 : i32
    %c0_i32_0 = arith.constant 0 : i32
    %c0_i32_1 = arith.constant 0 : i32
    return %c0_i32, %c0_i32_0 : i32, i32
  }
  func.func @transform_3(%arg0: i32) -> (i32, i32) {
    %c0_i32 = arith.constant 0 : i32
    %c0_i32_0 = arith.constant 0 : i32
    return %arg0, %c0_i32 : i32, i32
  }
}

</mosaic_0001>

<llo_original>
// kernel: dgcnn_forward.16
$region0: #{dgcnn_forward.16}
  #allocation0 [shape = 'u32[]', space=smem, size = 0x4, offset = 0x4, fixed_abs, tag = 'smem constant byte address 0x4 - core index']
  #allocation1 [shape = 'u32[144,128]{1,0:T(1,128)}', space=vmem, size = 0x12000, scoped, tag = 'internal scratch']
  %s0 = inlined_call_operand.vmem [shape: f32[32,64], index: 0, kind: input, shape index: {}]
  %s1 = inlined_call_operand.vmem [shape: f32[1,64], index: 1, kind: input, shape index: {}]
  %s2 = inlined_call_operand.vmem [shape: f32[1,64], index: 2, kind: input, shape index: {}]
  %s3 = inlined_call_operand.vmem [shape: f32[32,64], index: 3, kind: output, shape index: {}]
  %s4 = sld [smem:[#allocation0]]
  $region22: #{dgcnn_forward.16} parent=0
    _
  %s6 = ssub.s32 1, %s4
  %s7 = scalar_select 0, %s6, %s4
  // Predicated region
  $region2: #{dgcnn_forward.16} parent=0 // pred_check
    _
  $region3: #{dgcnn_forward.16} parent=0 // pred_check_branch
    %9 = sbr.rel (0) target = $region5
  $region4: #{dgcnn_forward.16} parent=0 // pred_region
    _
  $region5: #{dgcnn_forward.16} parent=0 // pred_fallthru
    _
  // Predicated region
  $region6: #{dgcnn_forward.16} parent=0 // pred_check
    _
  $region7: #{dgcnn_forward.16} parent=0 // pred_check_branch
    %11 = sbr.rel (0) target = $region9
  $region8: #{dgcnn_forward.16} parent=0 // pred_region
    _
  $region9: #{dgcnn_forward.16} parent=0 // pred_fallthru
    _
  // Predicated region
  $region10: #{dgcnn_forward.16} parent=0 // pred_check
    _
  $region11: #{dgcnn_forward.16} parent=0 // pred_check_branch
    %13 = sbr.rel (0) target = $region13
  $region12: #{dgcnn_forward.16} parent=0 // pred_region
    _
  $region13: #{dgcnn_forward.16} parent=0 // pred_fallthru
    _
  %v14 = vld [vmem:[%s0] sm:$0xff]
  %v15 = vld [vmem:[%s0 + $0x8] sm:$0xff]
  %v16 = vld [vmem:[%s0 + $0x10] sm:$0xff]
  %v17 = vld [vmem:[%s0 + $0x18] sm:$0xff]
  %v18 = vld [vmem:[%s1] sm:$0x1]
  %v20 = vlaneseq
  %v21 = vshrl.u32 %v20, 7
  %v22 = vsub.s32 0, %v21
  %v23 = vrot.slane %v18, %v22
  %v25 = vmul.f32 %v14, %v23
  %v26 = vmul.f32 %v15, %v23
  %v27 = vmul.f32 %v16, %v23
  %v28 = vmul.f32 %v17, %v23
  %v29 = vld [vmem:[%s2] sm:$0x1]
  %v31 = vlaneseq
  %v32 = vshrl.u32 %v31, 7
  %v33 = vsub.s32 0, %v32
  %v34 = vrot.slane %v29, %v33
  %v36 = vadd.f32 %v25, %v34
  %v37 = vadd.f32 %v26, %v34
  %v38 = vadd.f32 %v27, %v34
  %v39 = vadd.f32 %v28, %v34
  %vm40 = vcmp.gt.f32.partialorder %v36, 0.0
  %vm41 = vcmp.gt.f32.partialorder %v37, 0.0
  %vm42 = vcmp.gt.f32.partialorder %v38, 0.0
  %vm43 = vcmp.gt.f32.partialorder %v39, 0.0
  %v44 = vmul.f32 %v36, 0.2
  %v45 = vmul.f32 %v37, 0.2
  %v46 = vmul.f32 %v38, 0.2
  %v47 = vmul.f32 %v39, 0.2
  %v48 = vsel %vm40, %v36, %v44
  %v49 = vsel %vm41, %v37, %v45
  %v50 = vsel %vm42, %v38, %v46
  %v51 = vsel %vm43, %v39, %v47
  %vm52 = vcmask 523264
  %53 = vst.msk [vmem:[%s3] sm:$0xff] %vm52, %v48
  %54 = vst.msk [vmem:[%s3 + $0x8] sm:$0xff] %vm52, %v49
  %55 = vst.msk [vmem:[%s3 + $0x10] sm:$0xff] %vm52, %v50
  %56 = vst.msk [vmem:[%s3 + $0x18] sm:$0xff] %vm52, %v51
  // Predicated region
  $region14: #{dgcnn_forward.16} parent=0 // pred_check
    _
  $region15: #{dgcnn_forward.16} parent=0 // pred_check_branch
    %58 = sbr.rel (0) target = $region17
  $region16: #{dgcnn_forward.16} parent=0 // pred_region
    _
  $region17: #{dgcnn_forward.16} parent=0 // pred_fallthru
    _
  // Predicated region
  $region18: #{dgcnn_forward.16} parent=0 // pred_check
    _
  $region19: #{dgcnn_forward.16} parent=0 // pred_check_branch
    %60 = sbr.rel (0) target = $region21
  $region20: #{dgcnn_forward.16} parent=0 // pred_region
    _
  $region21: #{dgcnn_forward.16} parent=0 // pred_fallthru
    _

// kernel: dgcnn_forward.14
$region0: #{dgcnn_forward.14}
  #allocation0 [shape = 'u32[]', space=smem, size = 0x4, offset = 0x4, fixed_abs, tag = 'smem constant byte address 0x4 - core index']
  #allocation1 [shape = 'u32[144,128]{1,0:T(1,128)}', space=vmem, size = 0x12000, scoped, tag = 'internal scratch']
  %s0 = inlined_call_operand.vmem [shape: f32[2,16,3], index: 0, kind: input, shape index: {}]
  %s1 = inlined_call_operand.vmem [shape: f32[2,16,16], index: 1, kind: output, shape index: {}]
  %s2 = sld [smem:[#allocation0]]
  $region37: #{dgcnn_forward.14} parent=0
    _
  %s4 = ssub.s32 1, %s2
  %s5 = scalar_select 0, %s4, %s2
  loop: start=0, step=1, limit=4
  $region2: #{dgcnn_forward.14} parent=0 // loop_pre_header
    _
  $region3: #{dgcnn_forward.14} parent=0 // loop_header
    %s7 = sphi 0, %s11
    %p8 = scmp.ge.s32.totalorder %s7, 4
    %s17 = sphi 0, %s19
    %s20 = sphi 0, %s17
    %s21 = sphi 0, %s20
    %s37 = sphi 0, %s21
    %s43 = sphi 0, %s45
    %s46 = sphi 0, %s43
    %s47 = sphi 0, %s46
    %s63 = sphi 0, %s47
  $region4: #{dgcnn_forward.14} parent=0 // loop_header_branch
    %10 = sbr.rel (%p8) target = $region8
  $region5: #{dgcnn_forward.14} parent=0 // loop_body
    %s12 = ssub.s32 %s7, 1
    %s13 = ssub.s32 %s7, 2
    %s14 = sadd.s32 %s7, 1
    %s15 = ssub.s32 %s7, %s14
    %p16 = scmp.eq.s32.totalorder %s15, 0
    %s18 = sadd.s32 %s17, 1
    %s19 = scalar_select %p16, %s17, %s18
    %p22 = pneg %p16
    %p23 = scmp.eq.s32.totalorder %s7, 1
    %p24 = por %p22, %p23
    %p25 = scmp.ne.s32.totalorder %s17, %s20
    %p26 = scmp.eq.s32.totalorder %s7, 0
    %p27 = por %p25, %p26
    %p28 = scmp.ne.s32.totalorder %s17, %s20
    %p29 = scmp.eq.s32.totalorder %s12, 1
    %p30 = por %p28, %p29
    %p31 = scmp.ne.s32.totalorder %s20, %s21
    %p32 = scmp.eq.s32.totalorder %s12, 0
    %p33 = por %p31, %p32
    %p34 = scmp.ne.s32.totalorder %s20, %s21
    %p35 = scmp.eq.s32.totalorder %s13, 1
    %p36 = por %p34, %p35
    %p38 = scmp.ne.s32.totalorder %s21, %s37
    %p39 = scmp.eq.s32.totalorder %s13, 0
    %p40 = por %p38, %p39
    %s41 = ssub.s32 %s7, %s14
    %p42 = scmp.eq.s32.totalorder %s41, 0
    %s44 = sadd.s32 %s43, 1
    %s45 = scalar_select %p42, %s43, %s44
    %p48 = pneg %p42
    %p49 = scmp.eq.s32.totalorder %s7, 1
    %p50 = por %p48, %p49
    %p51 = scmp.ne.s32.totalorder %s43, %s46
    %p52 = scmp.eq.s32.totalorder %s7, 0
    %p53 = por %p51, %p52
    %p54 = scmp.ne.s32.totalorder %s43, %s46
    %p55 = scmp.eq.s32.totalorder %s12, 1
    %p56 = por %p54, %p55
    %p57 = scmp.ne.s32.totalorder %s46, %s47
    %p58 = scmp.eq.s32.totalorder %s12, 0
    %p59 = por %p57, %p58
    %p60 = scmp.ne.s32.totalorder %s46, %s47
    %p61 = scmp.eq.s32.totalorder %s13, 1
    %p62 = por %p60, %p61
    %p64 = scmp.ne.s32.totalorder %s47, %s63
    %p65 = scmp.eq.s32.totalorder %s13, 0
    %p66 = por %p64, %p65
    %p67 = scmp.le.s32.totalorder 1, %s7
    %p68 = scmp.lt.s32.totalorder %s7, 3
    %p69 = pnand %p67, %p68
    %p70 = pneg %p69
    // Predicated region
    $region9: #{dgcnn_forward.14} parent=5 // pred_check
      _
    $region10: #{dgcnn_forward.14} parent=5 // pred_check_branch
      %72 = sbr.rel (%p69) target = $region12
    $region11: #{dgcnn_forward.14} parent=5 // pred_region
      %s73 = ssub.s32 %s7, 1
    $region12: #{dgcnn_forward.14} parent=5 // pred_fallthru
      _
    %p74 = scmp.lt.s32.totalorder %s7, 2
    // Predicated region
    $region13: #{dgcnn_forward.14} parent=5 // pred_check
      %p75 = pneg %p74
    $region14: #{dgcnn_forward.14} parent=5 // pred_check_branch
      %77 = sbr.rel (%p75) target = $region16
    $region15: #{dgcnn_forward.14} parent=5 // pred_region
      // Predicated region
      $region17: #{dgcnn_forward.14} parent=15 // pred_check
        %p78 = pneg %p27
      $region18: #{dgcnn_forward.14} parent=15 // pred_check_branch
        %80 = sbr.rel (%p78) target = $region20
      $region19: #{dgcnn_forward.14} parent=15 // pred_region
        %p81 = scmp.lt.s32.totalorder %s7, 1
        %s82 = scalar_select %p81, %s7, 1
        %s83 = smul.addr %s82, 2
        %s84 = smul.addr %s83, 8
        %s85 = scalar_lea.vmem %s0, %s84
      $region20: #{dgcnn_forward.14} parent=15 // pred_fallthru
        _
    $region16: #{dgcnn_forward.14} parent=5 // pred_fallthru
      _
    %p86 = scmp.le.s32.totalorder 1, %s7
    %p87 = scmp.lt.s32.totalorder %s7, 3
    %p88 = pnand %p86, %p87
    %p89 = pneg %p88
    // Predicated region
    $region21: #{dgcnn_forward.14} parent=5 // pred_check
      _
    $region22: #{dgcnn_forward.14} parent=5 // pred_check_branch
      %91 = sbr.rel (%p88) target = $region24
    $region23: #{dgcnn_forward.14} parent=5 // pred_region
      %s92 = ssub.s32 %s7, 1
      %p93 = scmp.lt.s32.totalorder %s12, 1
      %s94 = scalar_select %p93, %s12, 1
      %s95 = smul.addr %s94, 2
      %s96 = smul.addr %s95, 8
      %s97 = scalar_lea.vmem %s0, %s96
      %p98 = pneg %p33
      %p99 = pneg %p30
      %p100 = pneg %p59
      %p101 = pneg %p56
      %p102 = scmp.lt.s32.totalorder %s12, 1
      %s103 = scalar_select %p102, %s12, 1
      %s104 = smul.addr %s103, 2
      %s105 = smul.addr %s104, 8
      %s106 = scalar_lea.vmem %s1, %s105
      %p107 = scmp.lt.s32.totalorder %s12, 1
      %s108 = scalar_select %p107, %s12, 1
      %s109 = smul.addr %s108, 2
      %s110 = smul.addr %s109, 8
      %s111 = scalar_lea.vmem %s0, %s110
      %p112 = scmp.lt.s32.totalorder %s12, 1
      %s113 = scalar_select %p112, %s12, 1
      %s114 = smul.addr %s113, 2
      %s115 = smul.addr %s114, 8
      %s116 = scalar_lea.vmem %s1, %s115
      %v117 = vld [vmem:[%s111] sm:$0xff]
      %v118 = vld [vmem:[%s111 + $0x8] sm:$0xff]
      %vm119 = vcmask 23552
      %v121 = vsel %vm119, %v117, 0
      %v124 = vsel %vm119, %v118, 0
      %126 = vmatprep.subr.mxu0 0.0
      %127 = vmatpush1.xpose.msra.mxu0 %v121
      %128 = vmatprep.subr.mxu0 0.0
      %129 = vmatpush1.xpose.msra.mxu0 %v124
      %130 = vmatprep.subr.mxu0 0.0
      %131 = vmatpush1.xpose.msra.mxu0 0.0
      %132 = vmatprep.subr.mxu0 0.0
      %133 = vmatpush1.xpose.msra.mxu0 0.0
      %134 = vmatprep.subr.mxu0 0.0
      %135 = vmatpush1.xpose.msra.mxu0 0.0
      %136 = vmatprep.subr.mxu0 0.0
      %137 = vmatpush1.xpose.msra.mxu0 0.0
      %138 = vmatprep.subr.mxu0 0.0
      %139 = vmatpush1.xpose.msra.mxu0 0.0
      %140 = vmatprep.subr.mxu0 0.0
      %141 = vmatpush1.xpose.msra.mxu0 0.0
      %142 = vmatprep.subr.mxu0 0.0
      %143 = vmatpush1.xpose.msra.mxu0 0.0
      %144 = vmatprep.subr.mxu0 0.0
      %145 = vmatpush1.xpose.msra.mxu0 0.0
      %146 = vmatprep.subr.mxu0 0.0
      %147 = vmatpush1.xpose.msra.mxu0 0.0
      %148 = vmatprep.subr.mxu0 0.0
      %149 = vmatpush1.xpose.msra.mxu0 0.0
      %150 = vmatprep.subr.mxu0 0.0
      %151 = vmatpush1.xpose.msra.mxu0 0.0
      %152 = vmatprep.subr.mxu0 0.0
      %153 = vmatpush1.xpose.msra.mxu0 0.0
      %154 = vmatprep.subr.mxu0 0.0
      %155 = vmatpush1.xpose.msra.mxu0 0.0
      %156 = vmatprep.subr.mxu0 0.0
      %157 = vmatpush1.xpose.msra.mxu0 0.0
      %158 = vmatprep.subr.mxu0 0.0
      %159 = vmatpush1.xpose.msra.mxu0 0.0
      %160 = vmatprep.subr.mxu0 0.0
      %161 = vmatpush1.xpose.msra.mxu0 0.0
      %162 = vmatprep.subr.mxu0 0.0
      %163 = vmatpush1.xpose.msra.mxu0 0.0
      %164 = vmatprep.subr.mxu0 0.0
      %165 = vmatpush1.xpose.msra.mxu0 0.0
      %166 = vmatprep.subr.mxu0 0.0
      %167 = vmatpush1.xpose.msra.mxu0 0.0
      %168 = vmatprep.subr.mxu0 0.0
      %169 = vmatpush1.xpose.msra.mxu0 0.0
      %170 = vmatprep.subr.mxu0 0.0
      %171 = vmatpush1.xpose.msra.mxu0 0.0
      %172 = vmatprep.subr.mxu0 0.0
      %173 = vmatpush1.xpose.msra.mxu0 0.0
      %174 = vmatprep.subr.mxu0 0.0
      %175 = vmatpush1.xpose.msra.mxu0 0.0
      %176 = vmatprep.subr.mxu0 0.0
      %177 = vmatpush1.xpose.msra.mxu0 0.0
      %178 = vmatprep.subr.mxu0 0.0
      %179 = vmatpush1.xpose.msra.mxu0 0.0
      %180 = vmatprep.subr.mxu0 0.0
      %181 = vmatpush1.xpose.msra.mxu0 0.0
      %182 = vmatprep.subr.mxu0 0.0
      %183 = vmatpush1.xpose.msra.mxu0 0.0
      %184 = vmatprep.subr.mxu0 0.0
      %185 = vmatpush1.xpose.msra.mxu0 0.0
      %186 = vmatprep.subr.mxu0 0.0
      %187 = vmatpush1.xpose.msra.mxu0 0.0
      %188 = vmatprep.subr.mxu0 0.0
      %189 = vmatpush1.xpose.msra.mxu0 0.0
      %190 = vmatprep.mubr.f32.mxu0 0.0
      %191 = vmatmul.mubr.f32.gmra.mrb[0].mxu0 %v121
      %v192 = vpop.f32.mrb[0].mxu0
      %v193 = vadd.f32 0.0, %v192
      %v194 = vpop.f32.mrb[0].mxu0
      %195 = vmatprep.mubr.f32.mxu0 0.0
      %196 = vmatmul.mubr.f32.gmra.mrb[0].mxu0 %v124
      %v197 = vpop.f32.mrb[0].mxu0
      %v198 = vadd.f32 0.0, %v197
      %v199 = vpop.f32.mrb[0].mxu0
      %200 = vdwg.mxu0
      %v201 = vmul.f32 %v117, %v117
      %v202 = vmul.f32 %v118, %v118
      %v203 = vsel %vm119, %v201, 0.0
      %204 = vadd.xlane.f32.xlu0 %v203
      %v205 = vpop.xlane.xlu0 %204
      %v206 = vsel %vm119, %v202, 0.0
      %207 = vadd.xlane.f32.xlu0 %v206
      %v208 = vpop.xlane.xlu0 %207
      %v210 = vsel %vm119, 1.0, 0
      %v213 = vsel %vm119, %v201, 0
      %v216 = vsel %vm119, %v202, 0
      %218 = vmatprep.subr.mxu0 0.0
      %219 = vmatpush1.xpose.msra.mxu0 %v213
      %220 = vmatprep.subr.mxu0 0.0
      %221 = vmatpush1.xpose.msra.mxu0 %v216
      %222 = vmatprep.subr.mxu0 0.0
      %223 = vmatpush1.xpose.msra.mxu0 0.0
      %224 = vmatprep.subr.mxu0 0.0
      %225 = vmatpush1.xpose.msra.mxu0 0.0
      %226 = vmatprep.subr.mxu0 0.0
      %227 = vmatpush1.xpose.msra.mxu0 0.0
      %228 = vmatprep.subr.mxu0 0.0
      %229 = vmatpush1.xpose.msra.mxu0 0.0
      %230 = vmatprep.subr.mxu0 0.0
      %231 = vmatpush1.xpose.msra.mxu0 0.0
      %232 = vmatprep.subr.mxu0 0.0
      %233 = vmatpush1.xpose.msra.mxu0 0.0
      %234 = vmatprep.subr.mxu0 0.0
      %235 = vmatpush1.xpose.msra.mxu0 0.0
      %236 = vmatprep.subr.mxu0 0.0
      %237 = vmatpush1.xpose.msra.mxu0 0.0
      %238 = vmatprep.subr.mxu0 0.0
      %239 = vmatpush1.xpose.msra.mxu0 0.0
      %240 = vmatprep.subr.mxu0 0.0
      %241 = vmatpush1.xpose.msra.mxu0 0.0
      %242 = vmatprep.subr.mxu0 0.0
      %243 = vmatpush1.xpose.msra.mxu0 0.0
      %244 = vmatprep.subr.mxu0 0.0
      %245 = vmatpush1.xpose.msra.mxu0 0.0
      %246 = vmatprep.subr.mxu0 0.0
      %247 = vmatpush1.xpose.msra.mxu0 0.0
      %248 = vmatprep.subr.mxu0 0.0
      %249 = vmatpush1.xpose.msra.mxu0 0.0
      %250 = vmatprep.subr.mxu0 0.0
      %251 = vmatpush1.xpose.msra.mxu0 0.0
      %252 = vmatprep.subr.mxu0 0.0
      %253 = vmatpush1.xpose.msra.mxu0 0.0
      %254 = vmatprep.subr.mxu0 0.0
      %255 = vmatpush1.xpose.msra.mxu0 0.0
      %256 = vmatprep.subr.mxu0 0.0
      %257 = vmatpush1.xpose.msra.mxu0 0.0
      %258 = vmatprep.subr.mxu0 0.0
      %259 = vmatpush1.xpose.msra.mxu0 0.0
      %260 = vmatprep.subr.mxu0 0.0
      %261 = vmatpush1.xpose.msra.mxu0 0.0
      %262 = vmatprep.subr.mxu0 0.0
      %263 = vmatpush1.xpose.msra.mxu0 0.0
      %264 = vmatprep.subr.mxu0 0.0
      %265 = vmatpush1.xpose.msra.mxu0 0.0
      %266 = vmatprep.subr.mxu0 0.0
      %267 = vmatpush1.xpose.msra.mxu0 0.0
      %268 = vmatprep.subr.mxu0 0.0
      %269 = vmatpush1.xpose.msra.mxu0 0.0
      %270 = vmatprep.subr.mxu0 0.0
      %271 = vmatpush1.xpose.msra.mxu0 0.0
      %272 = vmatprep.subr.mxu0 0.0
      %273 = vmatpush1.xpose.msra.mxu0 0.0
      %274 = vmatprep.subr.mxu0 0.0
      %275 = vmatpush1.xpose.msra.mxu0 0.0
      %276 = vmatprep.subr.mxu0 0.0
      %277 = vmatpush1.xpose.msra.mxu0 0.0
      %278 = vmatprep.subr.mxu0 0.0
      %279 = vmatpush1.xpose.msra.mxu0 0.0
      %280 = vmatprep.subr.mxu0 0.0
      %281 = vmatpush1.xpose.msra.mxu0 0.0
      %282 = vmatprep.mubr.f32.mxu0 0.0
      %283 = vmatmul.mubr.f32.gmra.mrb[0].mxu0 %v210
      %v284 = vpop.f32.mrb[0].mxu0
      %v285 = vadd.f32 0.0, %v284
      %v286 = vpop.f32.mrb[0].mxu0
      %287 = vdwg.mxu0
      %v288 = vmul.f32 %v193, 2.0
      %v289 = vmul.f32 %v198, 2.0
      %v290 = vsub.f32 %v288, %v205
      %v291 = vsub.f32 %v289, %v208
      %v292 = vlaneseq
      %v293 = vshrl.u32 %v292, 7
      %v294 = vsub.s32 0, %v293
      %v295 = vrot.slane %v285, %v294
      %v296 = vsub.f32 %v290, %v295
      %v297 = vsub.f32 %v291, %v295
      %vm298 = vcmask 130048
      %299 = vst.msk [vmem:[%s116] sm:$0xff] %vm298, %v296
      %300 = vst.msk [vmem:[%s116 + $0x8] sm:$0xff] %vm298, %v297
      %p301 = scmp.lt.s32.totalorder %s12, 1
      %s302 = scalar_select %p301, %s12, 1
      %s303 = smul.addr %s302, 2
      %s304 = smul.addr %s303, 8
      %s305 = scalar_lea.vmem %s1, %s304
      // Predicated region
      $region25: #{dgcnn_forward.14} parent=23 // pred_check
        %p306 = pneg %p56
      $region26: #{dgcnn_forward.14} parent=23 // pred_check_branch
        %308 = sbr.rel (%p306) target = $region28
      $region27: #{dgcnn_forward.14} parent=23 // pred_region
        _
      $region28: #{dgcnn_forward.14} parent=23 // pred_fallthru
        _
    $region24: #{dgcnn_forward.14} parent=5 // pred_fallthru
      _
    %p309 = scmp.le.s32.totalorder 2, %s7
    // Predicated region
    $region29: #{dgcnn_forward.14} parent=5 // pred_check
      %p310 = pneg %p309
    $region30: #{dgcnn_forward.14} parent=5 // pred_check_branch
      %312 = sbr.rel (%p310) target = $region32
    $region31: #{dgcnn_forward.14} parent=5 // pred_region
      %s313 = ssub.s32 %s7, 2
      // Predicated region
      $region33: #{dgcnn_forward.14} parent=31 // pred_check
        %p314 = pneg %p62
      $region34: #{dgcnn_forward.14} parent=31 // pred_check_branch
        %316 = sbr.rel (%p314) target = $region36
      $region35: #{dgcnn_forward.14} parent=31 // pred_region
        %p317 = scmp.lt.s32.totalorder %s13, 1
        %s318 = scalar_select %p317, %s13, 1
        %s319 = smul.addr %s318, 2
        %s320 = smul.addr %s319, 8
        %s321 = scalar_lea.vmem %s1, %s320
      $region36: #{dgcnn_forward.14} parent=31 // pred_fallthru
        _
    $region32: #{dgcnn_forward.14} parent=5 // pred_fallthru
      _
  $region6: #{dgcnn_forward.14} parent=0 // loop_footer
    %s11 = sadd.s32 1, %s7
  $region7: #{dgcnn_forward.14} parent=0 // loop_footer_branch
    %6 = sbr.rel target = $region3
  $region8: #{dgcnn_forward.14} parent=0 // loop_exit
    _

// kernel: dgcnn_forward.17
$region0: #{dgcnn_forward.17}
  #allocation0 [shape = 'u32[]', space=smem, size = 0x4, offset = 0x4, fixed_abs, tag = 'smem constant byte address 0x4 - core index']
  #allocation1 [shape = 'u32[144,128]{1,0:T(1,128)}', space=vmem, size = 0x12000, scoped, tag = 'internal scratch']
  %s0 = inlined_call_operand.vmem [shape: f32[2,16,64], index: 0, kind: input, shape index: {}]
  %s1 = inlined_call_operand.vmem [shape: f32[2,16,16], index: 1, kind: output, shape index: {}]
  %s2 = sld [smem:[#allocation0]]
  $region37: #{dgcnn_forward.17} parent=0
    _
  %s4 = ssub.s32 1, %s2
  %s5 = scalar_select 0, %s4, %s2
  loop: start=0, step=1, limit=4
  $region2: #{dgcnn_forward.17} parent=0 // loop_pre_header
    _
  $region3: #{dgcnn_forward.17} parent=0 // loop_header
    %s7 = sphi 0, %s11
    %p8 = scmp.ge.s32.totalorder %s7, 4
    %s17 = sphi 0, %s19
    %s20 = sphi 0, %s17
    %s21 = sphi 0, %s20
    %s37 = sphi 0, %s21
    %s43 = sphi 0, %s45
    %s46 = sphi 0, %s43
    %s47 = sphi 0, %s46
    %s63 = sphi 0, %s47
  $region4: #{dgcnn_forward.17} parent=0 // loop_header_branch
    %10 = sbr.rel (%p8) target = $region8
  $region5: #{dgcnn_forward.17} parent=0 // loop_body
    %s12 = ssub.s32 %s7, 1
    %s13 = ssub.s32 %s7, 2
    %s14 = sadd.s32 %s7, 1
    %s15 = ssub.s32 %s7, %s14
    %p16 = scmp.eq.s32.totalorder %s15, 0
    %s18 = sadd.s32 %s17, 1
    %s19 = scalar_select %p16, %s17, %s18
    %p22 = pneg %p16
    %p23 = scmp.eq.s32.totalorder %s7, 1
    %p24 = por %p22, %p23
    %p25 = scmp.ne.s32.totalorder %s17, %s20
    %p26 = scmp.eq.s32.totalorder %s7, 0
    %p27 = por %p25, %p26
    %p28 = scmp.ne.s32.totalorder %s17, %s20
    %p29 = scmp.eq.s32.totalorder %s12, 1
    %p30 = por %p28, %p29
    %p31 = scmp.ne.s32.totalorder %s20, %s21
    %p32 = scmp.eq.s32.totalorder %s12, 0
    %p33 = por %p31, %p32
    %p34 = scmp.ne.s32.totalorder %s20, %s21
    %p35 = scmp.eq.s32.totalorder %s13, 1
    %p36 = por %p34, %p35
    %p38 = scmp.ne.s32.totalorder %s21, %s37
    %p39 = scmp.eq.s32.totalorder %s13, 0
    %p40 = por %p38, %p39
    %s41 = ssub.s32 %s7, %s14
    %p42 = scmp.eq.s32.totalorder %s41, 0
    %s44 = sadd.s32 %s43, 1
    %s45 = scalar_select %p42, %s43, %s44
    %p48 = pneg %p42
    %p49 = scmp.eq.s32.totalorder %s7, 1
    %p50 = por %p48, %p49
    %p51 = scmp.ne.s32.totalorder %s43, %s46
    %p52 = scmp.eq.s32.totalorder %s7, 0
    %p53 = por %p51, %p52
    %p54 = scmp.ne.s32.totalorder %s43, %s46
    %p55 = scmp.eq.s32.totalorder %s12, 1
    %p56 = por %p54, %p55
    %p57 = scmp.ne.s32.totalorder %s46, %s47
    %p58 = scmp.eq.s32.totalorder %s12, 0
    %p59 = por %p57, %p58
    %p60 = scmp.ne.s32.totalorder %s46, %s47
    %p61 = scmp.eq.s32.totalorder %s13, 1
    %p62 = por %p60, %p61
    %p64 = scmp.ne.s32.totalorder %s47, %s63
    %p65 = scmp.eq.s32.totalorder %s13, 0
    %p66 = por %p64, %p65
    %p67 = scmp.le.s32.totalorder 1, %s7
    %p68 = scmp.lt.s32.totalorder %s7, 3
    %p69 = pnand %p67, %p68
    %p70 = pneg %p69
    // Predicated region
    $region9: #{dgcnn_forward.17} parent=5 // pred_check
      _
    $region10: #{dgcnn_forward.17} parent=5 // pred_check_branch
      %72 = sbr.rel (%p69) target = $region12
    $region11: #{dgcnn_forward.17} parent=5 // pred_region
      %s73 = ssub.s32 %s7, 1
    $region12: #{dgcnn_forward.17} parent=5 // pred_fallthru
      _
    %p74 = scmp.lt.s32.totalorder %s7, 2
    // Predicated region
    $region13: #{dgcnn_forward.17} parent=5 // pred_check
      %p75 = pneg %p74
    $region14: #{dgcnn_forward.17} parent=5 // pred_check_branch
      %77 = sbr.rel (%p75) target = $region16
    $region15: #{dgcnn_forward.17} parent=5 // pred_region
      // Predicated region
      $region17: #{dgcnn_forward.17} parent=15 // pred_check
        %p78 = pneg %p27
      $region18: #{dgcnn_forward.17} parent=15 // pred_check_branch
        %80 = sbr.rel (%p78) target = $region20
      $region19: #{dgcnn_forward.17} parent=15 // pred_region
        %p81 = scmp.lt.s32.totalorder %s7, 1
        %s82 = scalar_select %p81, %s7, 1
        %s83 = smul.addr %s82, 2
        %s84 = smul.addr %s83, 8
        %s85 = scalar_lea.vmem %s0, %s84
      $region20: #{dgcnn_forward.17} parent=15 // pred_fallthru
        _
    $region16: #{dgcnn_forward.17} parent=5 // pred_fallthru
      _
    %p86 = scmp.le.s32.totalorder 1, %s7
    %p87 = scmp.lt.s32.totalorder %s7, 3
    %p88 = pnand %p86, %p87
    %p89 = pneg %p88
    // Predicated region
    $region21: #{dgcnn_forward.17} parent=5 // pred_check
      _
    $region22: #{dgcnn_forward.17} parent=5 // pred_check_branch
      %91 = sbr.rel (%p88) target = $region24
    $region23: #{dgcnn_forward.17} parent=5 // pred_region
      %s92 = ssub.s32 %s7, 1
      %p93 = scmp.lt.s32.totalorder %s12, 1
      %s94 = scalar_select %p93, %s12, 1
      %s95 = smul.addr %s94, 2
      %s96 = smul.addr %s95, 8
      %s97 = scalar_lea.vmem %s0, %s96
      %p98 = pneg %p33
      %p99 = pneg %p30
      %p100 = pneg %p59
      %p101 = pneg %p56
      %p102 = scmp.lt.s32.totalorder %s12, 1
      %s103 = scalar_select %p102, %s12, 1
      %s104 = smul.addr %s103, 2
      %s105 = smul.addr %s104, 8
      %s106 = scalar_lea.vmem %s1, %s105
      %p107 = scmp.lt.s32.totalorder %s12, 1
      %s108 = scalar_select %p107, %s12, 1
      %s109 = smul.addr %s108, 2
      %s110 = smul.addr %s109, 8
      %s111 = scalar_lea.vmem %s0, %s110
      %p112 = scmp.lt.s32.totalorder %s12, 1
      %s113 = scalar_select %p112, %s12, 1
      %s114 = smul.addr %s113, 2
      %s115 = smul.addr %s114, 8
      %s116 = scalar_lea.vmem %s1, %s115
      %v117 = vld [vmem:[%s111] sm:$0xff]
      %v118 = vld [vmem:[%s111 + $0x8] sm:$0xff]
      %vm119 = vcmask 523264
      %v121 = vsel %vm119, %v117, 0
      %v124 = vsel %vm119, %v118, 0
      %126 = vmatprep.subr.mxu0 0.0
      %127 = vmatpush1.xpose.msra.mxu0 %v121
      %128 = vmatprep.subr.mxu0 0.0
      %129 = vmatpush1.xpose.msra.mxu0 %v124
      %130 = vmatprep.subr.mxu0 0.0
      %131 = vmatpush1.xpose.msra.mxu0 0.0
      %132 = vmatprep.subr.mxu0 0.0
      %133 = vmatpush1.xpose.msra.mxu0 0.0
      %134 = vmatprep.subr.mxu0 0.0
      %135 = vmatpush1.xpose.msra.mxu0 0.0
      %136 = vmatprep.subr.mxu0 0.0
      %137 = vmatpush1.xpose.msra.mxu0 0.0
      %138 = vmatprep.subr.mxu0 0.0
      %139 = vmatpush1.xpose.msra.mxu0 0.0
      %140 = vmatprep.subr.mxu0 0.0
      %141 = vmatpush1.xpose.msra.mxu0 0.0
      %142 = vmatprep.subr.mxu0 0.0
      %143 = vmatpush1.xpose.msra.mxu0 0.0
      %144 = vmatprep.subr.mxu0 0.0
      %145 = vmatpush1.xpose.msra.mxu0 0.0
      %146 = vmatprep.subr.mxu0 0.0
      %147 = vmatpush1.xpose.msra.mxu0 0.0
      %148 = vmatprep.subr.mxu0 0.0
      %149 = vmatpush1.xpose.msra.mxu0 0.0
      %150 = vmatprep.subr.mxu0 0.0
      %151 = vmatpush1.xpose.msra.mxu0 0.0
      %152 = vmatprep.subr.mxu0 0.0
      %153 = vmatpush1.xpose.msra.mxu0 0.0
      %154 = vmatprep.subr.mxu0 0.0
      %155 = vmatpush1.xpose.msra.mxu0 0.0
      %156 = vmatprep.subr.mxu0 0.0
      %157 = vmatpush1.xpose.msra.mxu0 0.0
      %158 = vmatprep.subr.mxu0 0.0
      %159 = vmatpush1.xpose.msra.mxu0 0.0
      %160 = vmatprep.subr.mxu0 0.0
      %161 = vmatpush1.xpose.msra.mxu0 0.0
      %162 = vmatprep.subr.mxu0 0.0
      %163 = vmatpush1.xpose.msra.mxu0 0.0
      %164 = vmatprep.subr.mxu0 0.0
      %165 = vmatpush1.xpose.msra.mxu0 0.0
      %166 = vmatprep.subr.mxu0 0.0
      %167 = vmatpush1.xpose.msra.mxu0 0.0
      %168 = vmatprep.subr.mxu0 0.0
      %169 = vmatpush1.xpose.msra.mxu0 0.0
      %170 = vmatprep.subr.mxu0 0.0
      %171 = vmatpush1.xpose.msra.mxu0 0.0
      %172 = vmatprep.subr.mxu0 0.0
      %173 = vmatpush1.xpose.msra.mxu0 0.0
      %174 = vmatprep.subr.mxu0 0.0
      %175 = vmatpush1.xpose.msra.mxu0 0.0
      %176 = vmatprep.subr.mxu0 0.0
      %177 = vmatpush1.xpose.msra.mxu0 0.0
      %178 = vmatprep.subr.mxu0 0.0
      %179 = vmatpush1.xpose.msra.mxu0 0.0
      %180 = vmatprep.subr.mxu0 0.0
      %181 = vmatpush1.xpose.msra.mxu0 0.0
      %182 = vmatprep.subr.mxu0 0.0
      %183 = vmatpush1.xpose.msra.mxu0 0.0
      %184 = vmatprep.subr.mxu0 0.0
      %185 = vmatpush1.xpose.msra.mxu0 0.0
      %186 = vmatprep.subr.mxu0 0.0
      %187 = vmatpush1.xpose.msra.mxu0 0.0
      %188 = vmatprep.subr.mxu0 0.0
      %189 = vmatpush1.xpose.msra.mxu0 0.0
      %190 = vmatprep.mubr.f32.mxu0 0.0
      %191 = vmatmul.mubr.f32.gmra.mrb[0].mxu0 %v121
      %v192 = vpop.f32.mrb[0].mxu0
      %v193 = vadd.f32 0.0, %v192
      %v194 = vpop.f32.mrb[0].mxu0
      %195 = vmatprep.mubr.f32.mxu0 0.0
      %196 = vmatmul.mubr.f32.gmra.mrb[0].mxu0 %v124
      %v197 = vpop.f32.mrb[0].mxu0
      %v198 = vadd.f32 0.0, %v197
      %v199 = vpop.f32.mrb[0].mxu0
      %200 = vdwg.mxu0
      %v201 = vmul.f32 %v117, %v117
      %v202 = vmul.f32 %v118, %v118
      %v203 = vsel %vm119, %v201, 0.0
      %204 = vadd.xlane.f32.xlu0 %v203
      %v205 = vpop.xlane.xlu0 %204
      %v206 = vsel %vm119, %v202, 0.0
      %207 = vadd.xlane.f32.xlu0 %v206
      %v208 = vpop.xlane.xlu0 %207
      %v210 = vsel %vm119, 1.0, 0
      %v213 = vsel %vm119, %v201, 0
      %v216 = vsel %vm119, %v202, 0
      %218 = vmatprep.subr.mxu0 0.0
      %219 = vmatpush1.xpose.msra.mxu0 %v213
      %220 = vmatprep.subr.mxu0 0.0
      %221 = vmatpush1.xpose.msra.mxu0 %v216
      %222 = vmatprep.subr.mxu0 0.0
      %223 = vmatpush1.xpose.msra.mxu0 0.0
      %224 = vmatprep.subr.mxu0 0.0
      %225 = vmatpush1.xpose.msra.mxu0 0.0
      %226 = vmatprep.subr.mxu0 0.0
      %227 = vmatpush1.xpose.msra.mxu0 0.0
      %228 = vmatprep.subr.mxu0 0.0
      %229 = vmatpush1.xpose.msra.mxu0 0.0
      %230 = vmatprep.subr.mxu0 0.0
      %231 = vmatpush1.xpose.msra.mxu0 0.0
      %232 = vmatprep.subr.mxu0 0.0
      %233 = vmatpush1.xpose.msra.mxu0 0.0
      %234 = vmatprep.subr.mxu0 0.0
      %235 = vmatpush1.xpose.msra.mxu0 0.0
      %236 = vmatprep.subr.mxu0 0.0
      %237 = vmatpush1.xpose.msra.mxu0 0.0
      %238 = vmatprep.subr.mxu0 0.0
      %239 = vmatpush1.xpose.msra.mxu0 0.0
      %240 = vmatprep.subr.mxu0 0.0
      %241 = vmatpush1.xpose.msra.mxu0 0.0
      %242 = vmatprep.subr.mxu0 0.0
      %243 = vmatpush1.xpose.msra.mxu0 0.0
      %244 = vmatprep.subr.mxu0 0.0
      %245 = vmatpush1.xpose.msra.mxu0 0.0
      %246 = vmatprep.subr.mxu0 0.0
      %247 = vmatpush1.xpose.msra.mxu0 0.0
      %248 = vmatprep.subr.mxu0 0.0
      %249 = vmatpush1.xpose.msra.mxu0 0.0
      %250 = vmatprep.subr.mxu0 0.0
      %251 = vmatpush1.xpose.msra.mxu0 0.0
      %252 = vmatprep.subr.mxu0 0.0
      %253 = vmatpush1.xpose.msra.mxu0 0.0
      %254 = vmatprep.subr.mxu0 0.0
      %255 = vmatpush1.xpose.msra.mxu0 0.0
      %256 = vmatprep.subr.mxu0 0.0
      %257 = vmatpush1.xpose.msra.mxu0 0.0
      %258 = vmatprep.subr.mxu0 0.0
      %259 = vmatpush1.xpose.msra.mxu0 0.0
      %260 = vmatprep.subr.mxu0 0.0
      %261 = vmatpush1.xpose.msra.mxu0 0.0
      %262 = vmatprep.subr.mxu0 0.0
      %263 = vmatpush1.xpose.msra.mxu0 0.0
      %264 = vmatprep.subr.mxu0 0.0
      %265 = vmatpush1.xpose.msra.mxu0 0.0
      %266 = vmatprep.subr.mxu0 0.0
      %267 = vmatpush1.xpose.msra.mxu0 0.0
      %268 = vmatprep.subr.mxu0 0.0
      %269 = vmatpush1.xpose.msra.mxu0 0.0
      %270 = vmatprep.subr.mxu0 0.0
      %271 = vmatpush1.xpose.msra.mxu0 0.0
      %272 = vmatprep.subr.mxu0 0.0
      %273 = vmatpush1.xpose.msra.mxu0 0.0
      %274 = vmatprep.subr.mxu0 0.0
      %275 = vmatpush1.xpose.msra.mxu0 0.0
      %276 = vmatprep.subr.mxu0 0.0
      %277 = vmatpush1.xpose.msra.mxu0 0.0
      %278 = vmatprep.subr.mxu0 0.0
      %279 = vmatpush1.xpose.msra.mxu0 0.0
      %280 = vmatprep.subr.mxu0 0.0
      %281 = vmatpush1.xpose.msra.mxu0 0.0
      %282 = vmatprep.mubr.f32.mxu0 0.0
      %283 = vmatmul.mubr.f32.gmra.mrb[0].mxu0 %v210
      %v284 = vpop.f32.mrb[0].mxu0
      %v285 = vadd.f32 0.0, %v284
      %v286 = vpop.f32.mrb[0].mxu0
      %287 = vdwg.mxu0
      %v288 = vmul.f32 %v193, 2.0
      %v289 = vmul.f32 %v198, 2.0
      %v290 = vsub.f32 %v288, %v205
      %v291 = vsub.f32 %v289, %v208
      %v292 = vlaneseq
      %v293 = vshrl.u32 %v292, 7
      %v294 = vsub.s32 0, %v293
      %v295 = vrot.slane %v285, %v294
      %v296 = vsub.f32 %v290, %v295
      %v297 = vsub.f32 %v291, %v295
      %vm298 = vcmask 130048
      %299 = vst.msk [vmem:[%s116] sm:$0xff] %vm298, %v296
      %300 = vst.msk [vmem:[%s116 + $0x8] sm:$0xff] %vm298, %v297
      %p301 = scmp.lt.s32.totalorder %s12, 1
      %s302 = scalar_select %p301, %s12, 1
      %s303 = smul.addr %s302, 2
      %s304 = smul.addr %s303, 8
      %s305 = scalar_lea.vmem %s1, %s304
      // Predicated region
      $region25: #{dgcnn_forward.17} parent=23 // pred_check
        %p306 = pneg %p56
      $region26: #{dgcnn_forward.17} parent=23 // pred_check_branch
        %308 = sbr.rel (%p306) target = $region28
      $region27: #{dgcnn_forward.17} parent=23 // pred_region
        _
      $region28: #{dgcnn_forward.17} parent=23 // pred_fallthru
        _
    $region24: #{dgcnn_forward.17} parent=5 // pred_fallthru
      _
    %p309 = scmp.le.s32.totalorder 2, %s7
    // Predicated region
    $region29: #{dgcnn_forward.17} parent=5 // pred_check
      %p310 = pneg %p309
    $region30: #{dgcnn_forward.17} parent=5 // pred_check_branch
      %312 = sbr.rel (%p310) target = $region32
    $region31: #{dgcnn_forward.17} parent=5 // pred_region
      %s313 = ssub.s32 %s7, 2
      // Predicated region
      $region33: #{dgcnn_forward.17} parent=31 // pred_check
        %p314 = pneg %p62
      $region34: #{dgcnn_forward.17} parent=31 // pred_check_branch
        %316 = sbr.rel (%p314) target = $region36
      $region35: #{dgcnn_forward.17} parent=31 // pred_region
        %p317 = scmp.lt.s32.totalorder %s13, 1
        %s318 = scalar_select %p317, %s13, 1
        %s319 = smul.addr %s318, 2
        %s320 = smul.addr %s319, 8
        %s321 = scalar_lea.vmem %s1, %s320
      $region36: #{dgcnn_forward.17} parent=31 // pred_fallthru
        _
    $region32: #{dgcnn_forward.17} parent=5 // pred_fallthru
      _
  $region6: #{dgcnn_forward.17} parent=0 // loop_footer
    %s11 = sadd.s32 1, %s7
  $region7: #{dgcnn_forward.17} parent=0 // loop_footer_branch
    %6 = sbr.rel target = $region3
  $region8: #{dgcnn_forward.17} parent=0 // loop_exit
    _

// kernel: dgcnn_forward.15
$region0: #{dgcnn_forward.15}
  #allocation0 [shape = 'u32[]', space=smem, size = 0x4, offset = 0x4, fixed_abs, tag = 'smem constant byte address 0x4 - core index']
  #allocation1 [shape = 'u32[144,128]{1,0:T(1,128)}', space=vmem, size = 0x12000, scoped, tag = 'internal scratch']
  %s0 = inlined_call_operand.vmem [shape: bf16[2,16,8], index: 0, kind: input, shape index: {}]
  %s1 = inlined_call_operand.vmem [shape: s32[2,4,16], index: 1, kind: input, shape index: {}]
  %s2 = inlined_call_operand.vmem [shape: bf16[16,64], index: 2, kind: input, shape index: {}]
  %s3 = inlined_call_operand.vmem [shape: f32[2,16,64], index: 3, kind: output, shape index: {0}]
  %s4 = inlined_call_operand.vmem [shape: f32[2,1,2,64], index: 4, kind: output, shape index: {1}]
  %5 = xla_tuple %s3, %s4
  %s6 = sld [smem:[#allocation0]]
  $region53: #{dgcnn_forward.15} parent=0
    _
  %s8 = ssub.s32 1, %s6
  %s9 = scalar_select 0, %s8, %s6
  loop: start=0, step=1, limit=4
  $region2: #{dgcnn_forward.15} parent=0 // loop_pre_header
    _
  $region3: #{dgcnn_forward.15} parent=0 // loop_header
    %s11 = sphi 0, %s15
    %p12 = scmp.ge.s32.totalorder %s11, 4
    %s18 = sphi 0, %s30
    %s19 = sphi 0, %s26
    %s20 = sphi 0, %s18
    %s21 = sphi 0, %s19
    %s22 = sphi 0, %s20
    %s23 = sphi 0, %s21
    %s33 = sphi 0, %s35
    %s36 = sphi 0, %s33
    %s37 = sphi 0, %s36
    %s53 = sphi 0, %s37
    %s61 = sphi 0, %s63
    %s64 = sphi 0, %s61
    %s65 = sphi 0, %s64
    %s81 = sphi 0, %s65
    %s85 = sphi 0, %s85
    %s87 = sphi 0, %s85
    %s88 = sphi 0, %s87
    %s102 = sphi 0, %s88
    %s110 = sphi 0, %s112
    %s113 = sphi 0, %s110
    %s114 = sphi 0, %s113
    %s130 = sphi 0, %s114
    %s138 = sphi 0, %s140
    %s141 = sphi 0, %s138
    %s142 = sphi 0, %s141
    %s158 = sphi 0, %s142
  $region4: #{dgcnn_forward.15} parent=0 // loop_header_branch
    %14 = sbr.rel (%p12) target = $region8
  $region5: #{dgcnn_forward.15} parent=0 // loop_body
    %s16 = ssub.s32 %s11, 1
    %s17 = ssub.s32 %s11, 2
    %s24 = sadd.s32 1, %s19
    %p25 = scmp.ge.s32.totalorder %s24, 1
    %s26 = scalar_select %p25, 0, %s24
    %s27 = sadd.s32 1, %s18
    %s28 = scalar_select %p25, %s27, %s18
    %p29 = scmp.ge.s32.totalorder %s28, 2
    %s30 = scalar_select %p29, 0, %s28
    %s31 = ssub.s32 %s18, %s30
    %p32 = scmp.eq.s32.totalorder %s31, 0
    %s34 = sadd.s32 %s33, 1
    %s35 = scalar_select %p32, %s33, %s34
    %p38 = pneg %p32
    %p39 = scmp.eq.s32.totalorder %s11, 1
    %p40 = por %p38, %p39
    %p41 = scmp.ne.s32.totalorder %s33, %s36
    %p42 = scmp.eq.s32.totalorder %s11, 0
    %p43 = por %p41, %p42
    %p44 = scmp.ne.s32.totalorder %s33, %s36
    %p45 = scmp.eq.s32.totalorder %s16, 1
    %p46 = por %p44, %p45
    %p47 = scmp.ne.s32.totalorder %s36, %s37
    %p48 = scmp.eq.s32.totalorder %s16, 0
    %p49 = por %p47, %p48
    %p50 = scmp.ne.s32.totalorder %s36, %s37
    %p51 = scmp.eq.s32.totalorder %s17, 1
    %p52 = por %p50, %p51
    %p54 = scmp.ne.s32.totalorder %s37, %s53
    %p55 = scmp.eq.s32.totalorder %s17, 0
    %p56 = por %p54, %p55
    %s57 = ssub.s32 %s18, %s30
    %s58 = ssub.s32 %s19, %s26
    %s59 = sor.u32 %s57, %s58
    %p60 = scmp.eq.s32.totalorder %s59, 0
    %s62 = sadd.s32 %s61, 1
    %s63 = scalar_select %p60, %s61, %s62
    %p66 = pneg %p60
    %p67 = scmp.eq.s32.totalorder %s11, 1
    %p68 = por %p66, %p67
    %p69 = scmp.ne.s32.totalorder %s61, %s64
    %p70 = scmp.eq.s32.totalorder %s11, 0
    %p71 = por %p69, %p70
    %p72 = scmp.ne.s32.totalorder %s61, %s64
    %p73 = scmp.eq.s32.totalorder %s16, 1
    %p74 = por %p72, %p73
    %p75 = scmp.ne.s32.totalorder %s64, %s65
    %p76 = scmp.eq.s32.totalorder %s16, 0
    %p77 = por %p75, %p76
    %p78 = scmp.ne.s32.totalorder %s64, %s65
    %p79 = scmp.eq.s32.totalorder %s17, 1
    %p80 = por %p78, %p79
    %p82 = scmp.ne.s32.totalorder %s65, %s81
    %p83 = scmp.eq.s32.totalorder %s17, 0
    %p84 = por %p82, %p83
    %s86 = sadd.s32 %s85, 1
    %p89 = scmp.eq.s32.totalorder %s11, 1
    %p90 = scmp.ne.s32.totalorder %s85, %s87
    %p91 = scmp.eq.s32.totalorder %s11, 0
    %p92 = por %p90, %p91
    %p93 = scmp.ne.s32.totalorder %s85, %s87
    %p94 = scmp.eq.s32.totalorder %s16, 1
    %p95 = por %p93, %p94
    %p96 = scmp.ne.s32.totalorder %s87, %s88
    %p97 = scmp.eq.s32.totalorder %s16, 0
    %p98 = por %p96, %p97
    %p99 = scmp.ne.s32.totalorder %s87, %s88
    %p100 = scmp.eq.s32.totalorder %s17, 1
    %p101 = por %p99, %p100
    %p103 = scmp.ne.s32.totalorder %s88, %s102
    %p104 = scmp.eq.s32.totalorder %s17, 0
    %p105 = por %p103, %p104
    %s106 = ssub.s32 %s18, %s30
    %s107 = ssub.s32 %s19, %s26
    %s108 = sor.u32 %s106, %s107
    %p109 = scmp.eq.s32.totalorder %s108, 0
    %s111 = sadd.s32 %s110, 1
    %s112 = scalar_select %p109, %s110, %s111
    %p115 = pneg %p109
    %p116 = scmp.eq.s32.totalorder %s11, 1
    %p117 = por %p115, %p116
    %p118 = scmp.ne.s32.totalorder %s110, %s113
    %p119 = scmp.eq.s32.totalorder %s11, 0
    %p120 = por %p118, %p119
    %p121 = scmp.ne.s32.totalorder %s110, %s113
    %p122 = scmp.eq.s32.totalorder %s16, 1
    %p123 = por %p121, %p122
    %p124 = scmp.ne.s32.totalorder %s113, %s114
    %p125 = scmp.eq.s32.totalorder %s16, 0
    %p126 = por %p124, %p125
    %p127 = scmp.ne.s32.totalorder %s113, %s114
    %p128 = scmp.eq.s32.totalorder %s17, 1
    %p129 = por %p127, %p128
    %p131 = scmp.ne.s32.totalorder %s114, %s130
    %p132 = scmp.eq.s32.totalorder %s17, 0
    %p133 = por %p131, %p132
    %s134 = ssub.s32 %s18, %s30
    %s135 = ssub.s32 %s19, %s26
    %s136 = sor.u32 %s134, %s135
    %p137 = scmp.eq.s32.totalorder %s136, 0
    %s139 = sadd.s32 %s138, 1
    %s140 = scalar_select %p137, %s138, %s139
    %p143 = pneg %p137
    %p144 = scmp.eq.s32.totalorder %s11, 1
    %p145 = por %p143, %p144
    %p146 = scmp.ne.s32.totalorder %s138, %s141
    %p147 = scmp.eq.s32.totalorder %s11, 0
    %p148 = por %p146, %p147
    %p149 = scmp.ne.s32.totalorder %s138, %s141
    %p150 = scmp.eq.s32.totalorder %s16, 1
    %p151 = por %p149, %p150
    %p152 = scmp.ne.s32.totalorder %s141, %s142
    %p153 = scmp.eq.s32.totalorder %s16, 0
    %p154 = por %p152, %p153
    %p155 = scmp.ne.s32.totalorder %s141, %s142
    %p156 = scmp.eq.s32.totalorder %s17, 1
    %p157 = por %p155, %p156
    %p159 = scmp.ne.s32.totalorder %s142, %s158
    %p160 = scmp.eq.s32.totalorder %s17, 0
    %p161 = por %p159, %p160
    %p162 = scmp.le.s32.totalorder 1, %s11
    %p163 = scmp.lt.s32.totalorder %s11, 3
    %p164 = pnand %p162, %p163
    %p165 = pneg %p164
    // Predicated region
    $region9: #{dgcnn_forward.15} parent=5 // pred_check
      _
    $region10: #{dgcnn_forward.15} parent=5 // pred_check_branch
      %167 = sbr.rel (%p164) target = $region12
    $region11: #{dgcnn_forward.15} parent=5 // pred_region
      %s168 = ssub.s32 %s11, 1
      // Predicated region
      $region13: #{dgcnn_forward.15} parent=11 // pred_check
        %p169 = pneg %p98
      $region14: #{dgcnn_forward.15} parent=11 // pred_check_branch
        %171 = sbr.rel (%p169) target = $region16
      $region15: #{dgcnn_forward.15} parent=11 // pred_region
        _
      $region16: #{dgcnn_forward.15} parent=11 // pred_fallthru
        _
    $region12: #{dgcnn_forward.15} parent=5 // pred_fallthru
      _
    %p172 = scmp.lt.s32.totalorder %s11, 2
    // Predicated region
    $region17: #{dgcnn_forward.15} parent=5 // pred_check
      %p173 = pneg %p172
    $region18: #{dgcnn_forward.15} parent=5 // pred_check_branch
      %175 = sbr.rel (%p173) target = $region20
    $region19: #{dgcnn_forward.15} parent=5 // pred_region
      // Predicated region
      $region21: #{dgcnn_forward.15} parent=19 // pred_check
        %p176 = pneg %p43
      $region22: #{dgcnn_forward.15} parent=19 // pred_check_branch
        %178 = sbr.rel (%p176) target = $region24
      $region23: #{dgcnn_forward.15} parent=19 // pred_region
        %p179 = scmp.lt.s32.totalorder %s18, 1
        %s180 = scalar_select %p179, %s18, 1
        %s181 = smul.addr %s180, 2
        %s182 = smul.addr %s181, 4
        %s183 = scalar_lea.vmem %s0, %s182
      $region24: #{dgcnn_forward.15} parent=19 // pred_fallthru
        _
      // Predicated region
      $region25: #{dgcnn_forward.15} parent=19 // pred_check
        %p184 = pneg %p71
      $region26: #{dgcnn_forward.15} parent=19 // pred_check_branch
        %186 = sbr.rel (%p184) target = $region28
      $region27: #{dgcnn_forward.15} parent=19 // pred_region
        %p187 = scmp.lt.s32.totalorder %s18, 1
        %s188 = scalar_select %p187, %s18, 1
        %p189 = scmp.lt.s32.totalorder %s19, 0
        %s190 = scalar_select %p189, %s19, 0
        %s191 = sadd.s32 %s190, %s188
        %s192 = smul.addr %s191, 4
        %s193 = scalar_lea.vmem %s1, %s192
      $region28: #{dgcnn_forward.15} parent=19 // pred_fallthru
        _
    $region20: #{dgcnn_forward.15} parent=5 // pred_fallthru
      _
    %p194 = scmp.le.s32.totalorder 1, %s11
    %p195 = scmp.lt.s32.totalorder %s11, 3
    %p196 = pnand %p194, %p195
    %p197 = pneg %p196
    // Predicated region
    $region29: #{dgcnn_forward.15} parent=5 // pred_check
      _
    $region30: #{dgcnn_forward.15} parent=5 // pred_check_branch
      %199 = sbr.rel (%p196) target = $region32
    $region31: #{dgcnn_forward.15} parent=5 // pred_region
      %s200 = ssub.s32 %s11, 1
      %p201 = scmp.lt.s32.totalorder %s20, 1
      %s202 = scalar_select %p201, %s20, 1
      %s203 = smul.addr %s202, 2
      %s204 = smul.addr %s203, 4
      %s205 = scalar_lea.vmem %s0, %s204
      %p206 = pneg %p49
      %p207 = pneg %p46
      %p208 = scmp.lt.s32.totalorder %s20, 1
      %s209 = scalar_select %p208, %s20, 1
      %p210 = scmp.lt.s32.totalorder %s21, 0
      %s211 = scalar_select %p210, %s21, 0
      %s212 = sadd.s32 %s211, %s209
      %s213 = smul.addr %s212, 4
      %s214 = scalar_lea.vmem %s1, %s213
      %p215 = pneg %p77
      %p216 = pneg %p74
      %p217 = pneg %p98
      %p218 = pneg %p95
      %p219 = pneg %p126
      %p220 = pneg %p123
      %s221 = smul.u32 2, %s21
      %p222 = scmp.lt.s32.totalorder %s20, 1
      %s223 = scalar_select %p222, %s20, 1
      %p224 = scmp.lt.s32.totalorder %s221, 1
      %s225 = scalar_select %p224, %s221, 1
      %s226 = smul.addr %s223, 2
      %s227 = sadd.s32 %s225, %s226
      %s228 = smul.addr %s227, 8
      %s229 = scalar_lea.vmem %s3, %s228
      %p230 = pneg %p154
      %p231 = pneg %p151
      %p232 = scmp.lt.s32.totalorder %s20, 1
      %s233 = scalar_select %p232, %s20, 1
      %p234 = scmp.lt.s32.totalorder %s21, 0
      %s235 = scalar_select %p234, %s21, 0
      %s236 = sadd.s32 %s235, %s233
      %s237 = smul.addr %s236, 2
      %s238 = scalar_lea.vmem %s4, %s237
      %p239 = scmp.lt.s32.totalorder %s20, 1
      %s240 = scalar_select %p239, %s20, 1
      %s241 = smul.addr %s240, 2
      %s242 = smul.addr %s241, 4
      %s243 = scalar_lea.vmem %s0, %s242
      %p244 = scmp.lt.s32.totalorder %s20, 1
      %s245 = scalar_select %p244, %s20, 1
      %p246 = scmp.lt.s32.totalorder %s21, 0
      %s247 = scalar_select %p246, %s21, 0
      %s248 = sadd.s32 %s247, %s245
      %s249 = smul.addr %s248, 4
      %s250 = scalar_lea.vmem %s1, %s249
      %s251 = smul.u32 2, %s21
      %p252 = scmp.lt.s32.totalorder %s20, 1
      %s253 = scalar_select %p252, %s20, 1
      %p254 = scmp.lt.s32.totalorder %s251, 1
      %s255 = scalar_select %p254, %s251, 1
      %s256 = smul.addr %s253, 2
      %s257 = sadd.s32 %s255, %s256
      %s258 = smul.addr %s257, 8
      %s259 = scalar_lea.vmem %s3, %s258
      %s260 = smul.u32 2, %s21
      %p261 = scmp.lt.s32.totalorder %s20, 1
      %s262 = scalar_select %p261, %s20, 1
      %p263 = scmp.lt.s32.totalorder %s21, 0
      %s264 = scalar_select %p263, %s21, 0
      %s265 = sadd.s32 %s264, %s262
      %s266 = smul.addr %s265, 2
      %s267 = scalar_lea.vmem %s4, %s266
      %v269 = vld [vmem:[%s243] sm:$0xf]
      %v270 = vld [vmem:[%s243 + $0x4] sm:$0xf]
      %s271 = smul.u32 %s21, 16
      %s272 = sshra.s32 %s271, 3
      %s273 = sand.u32 %s271, 7
      %s274 = smul.addr %s272, 4
      %s275 = scalar_lea.vmem %s243, %s274
      %v276 = vld [vmem:[%s275] sm:$0xf]
      %v277 = vld [vmem:[%s275 + $0x4] sm:$0xf]
      %v278 = vld [vmem:[%s250] sm:$0xf]
      %v279 = vlaneseq
      %v280 = vand.u32 %v279, 127
      %v281 = vlaneseq
      %v282 = vshrl.u32 %v281, 7
      %v283 = vsub.s32 0, %v282
      %v284 = vrot.slane %v278, %v283
      %286 = vbcast.lane.b32.xlu0 %v284, 256
      %v287 = vpop.permute.xlu0 %286
      %s289 = sor.u32 256, 8
      %290 = vbcast.lane.b32.xlu0 %v284, %s289
      %v291 = vpop.permute.xlu0 %290
      %v292 = vlaneseq
      %v293 = vshrl.u32 %v292, 7
      %v294 = vsub.s32 1, %v293
      %v295 = vrot.slane %v278, %v294
      %297 = vbcast.lane.b32.xlu0 %v295, 256
      %v298 = vpop.permute.xlu0 %297
      %s300 = sor.u32 256, 8
      %301 = vbcast.lane.b32.xlu0 %v295, %s300
      %v302 = vpop.permute.xlu0 %301
      %v303 = vlaneseq
      %v304 = vshrl.u32 %v303, 7
      %v305 = vsub.s32 2, %v304
      %v306 = vrot.slane %v278, %v305
      %308 = vbcast.lane.b32.xlu0 %v306, 256
      %v309 = vpop.permute.xlu0 %308
      %s311 = sor.u32 256, 8
      %312 = vbcast.lane.b32.xlu0 %v306, %s311
      %v313 = vpop.permute.xlu0 %312
      %v314 = vlaneseq
      %v315 = vshrl.u32 %v314, 7
      %v316 = vsub.s32 3, %v315
      %v317 = vrot.slane %v278, %v316
      %319 = vbcast.lane.b32.xlu0 %v317, 256
      %v320 = vpop.permute.xlu0 %319
      %s322 = sor.u32 256, 8
      %323 = vbcast.lane.b32.xlu0 %v317, %s322
      %v324 = vpop.permute.xlu0 %323
      %vm325 = vcmp.eq.s32.totalorder %v287, %v280
      %vm326 = vcmp.eq.s32.totalorder %v291, %v280
      %vm327 = vcmp.eq.s32.totalorder %v298, %v280
      %vm328 = vcmp.eq.s32.totalorder %v302, %v280
      %vm329 = vcmp.eq.s32.totalorder %v309, %v280
      %vm330 = vcmp.eq.s32.totalorder %v313, %v280
      %vm331 = vcmp.eq.s32.totalorder %v320, %v280
      %vm332 = vcmp.eq.s32.totalorder %v324, %v280
      %v333 = vsel %vm325, 1, 0
      %v334 = vsel %vm326, 1, 0
      %v335 = vsel %vm327, 1, 0
      %v336 = vsel %vm328, 1, 0
      %v337 = vsel %vm329, 1, 0
      %v338 = vsel %vm330, 1, 0
      %v339 = vsel %vm331, 1, 0
      %v340 = vsel %vm332, 1, 0
      %v341 = vcvt.s32.f32 %v333
      %v342 = vcvt.s32.f32 %v334
      %v343 = vcvt.s32.f32 %v335
      %v344 = vcvt.s32.f32 %v336
      %v345 = vcvt.s32.f32 %v337
      %v346 = vcvt.s32.f32 %v338
      %v347 = vcvt.s32.f32 %v339
      %v348 = vcvt.s32.f32 %v340
      %v349 = vpack.c.bf16 %v342, %v341
      %v350 = vpack.c.bf16 %v344, %v343
      %v351 = vpack.c.bf16 %v346, %v345
      %v352 = vpack.c.bf16 %v348, %v347
      %v355 = vunpack.c.l.b16 %v269
      %v356 = vunpack.c.l.b16 %v270
      %v357 = vpack.c.b16 %v356, %v355
      %vm359 = vcmask 130048
      %v361 = vsel %vm359, %v349, 0
      %v364 = vsel %vm359, %v350, 0
      %v367 = vsel %vm359, %v351, 0
      %v370 = vsel %vm359, %v352, 0
      %372 = vmatprep.subr.bf16.mxu0 0
      %373 = vmatpush1.bf16.msra.mxu0 %v357
      %374 = vmatprep.subr.bf16.mxu0 0
      %375 = vmatpush1.bf16.msra.mxu0 0
      %376 = vmatprep.subr.bf16.mxu0 0
      %377 = vmatpush1.bf16.msra.mxu0 0
      %378 = vmatprep.subr.bf16.mxu0 0
      %379 = vmatpush1.bf16.msra.mxu0 0
      %380 = vmatprep.subr.bf16.mxu0 0
      %381 = vmatpush1.bf16.msra.mxu0 0
      %382 = vmatprep.subr.bf16.mxu0 0
      %383 = vmatpush1.bf16.msra.mxu0 0
      %384 = vmatprep.subr.bf16.mxu0 0
      %385 = vmatpush1.bf16.msra.mxu0 0
      %386 = vmatprep.subr.bf16.mxu0 0
      %387 = vmatpush1.bf16.msra.mxu0 0
      %388 = vmatprep.subr.bf16.mxu0 0
      %389 = vmatpush1.bf16.msra.mxu0 0
      %390 = vmatprep.subr.bf16.mxu0 0
      %391 = vmatpush1.bf16.msra.mxu0 0
      %392 = vmatprep.subr.bf16.mxu0 0
      %393 = vmatpush1.bf16.msra.mxu0 0
      %394 = vmatprep.subr.bf16.mxu0 0
      %395 = vmatpush1.bf16.msra.mxu0 0
      %396 = vmatprep.subr.bf16.mxu0 0
      %397 = vmatpush1.bf16.msra.mxu0 0
      %398 = vmatprep.subr.bf16.mxu0 0
      %399 = vmatpush1.bf16.msra.mxu0 0
      %400 = vmatprep.subr.bf16.mxu0 0
      %401 = vmatpush1.bf16.msra.mxu0 0
      %402 = vmatprep.subr.bf16.mxu0 0
      %403 = vmatpush1.bf16.msra.mxu0 0
      %404 = vmatprep.mubr.bf16.mxu0 0
      %405 = vmatmul.mubr.bf16.gmra.mrb[0].mxu0 %v361
      %v406 = vpop.f32.mrb[0].mxu0
      %v407 = vadd.f32 0.0, %v406
      %v408 = vpop.f32.mrb[0].mxu0
      %v409 = vpop.f32.mrb[0].mxu0
      %v410 = vadd.f32 0.0, %v409
      %v411 = vpop.f32.mrb[0].mxu0
      %412 = vmatprep.mubr.bf16.mxu0 0
      %413 = vmatmul.mubr.bf16.gmra.mrb[0].mxu0 %v364
      %v414 = vpop.f32.mrb[0].mxu0
      %v415 = vadd.f32 0.0, %v414
      %v416 = vpop.f32.mrb[0].mxu0
      %v417 = vpop.f32.mrb[0].mxu0
      %v418 = vadd.f32 0.0, %v417
      %v419 = vpop.f32.mrb[0].mxu0
      %420 = vmatprep.mubr.bf16.mxu0 0
      %421 = vmatmul.mubr.bf16.gmra.mrb[0].mxu0 %v367
      %v422 = vpop.f32.mrb[0].mxu0
      %v423 = vadd.f32 0.0, %v422
      %v424 = vpop.f32.mrb[0].mxu0
      %v425 = vpop.f32.mrb[0].mxu0
      %v426 = vadd.f32 0.0, %v425
      %v427 = vpop.f32.mrb[0].mxu0
      %428 = vmatprep.mubr.bf16.mxu0 0
      %429 = vmatmul.mubr.bf16.gmra.mrb[0].mxu0 %v370
      %v430 = vpop.f32.mrb[0].mxu0
      %v431 = vadd.f32 0.0, %v430
      %v432 = vpop.f32.mrb[0].mxu0
      %v433 = vpop.f32.mrb[0].mxu0
      %v434 = vadd.f32 0.0, %v433
      %v435 = vpop.f32.mrb[0].mxu0
      %436 = vdwg.mxu0
      %v437 = vpack.c.bf16 %v410, %v407
      %v438 = vpack.c.bf16 %v418, %v415
      %v439 = vpack.c.bf16 %v426, %v423
      %v440 = vpack.c.bf16 %v434, %v431
      %v443 = vunpack.c.l.b16 %v276
      %v444 = vunpack.c.l.b16 %v277
      %v445 = vpack.c.b16 %v444, %v443
      %v447 = vsub.bf16 %v437, %v445
      %v448 = vsub.bf16 %v438, %v445
      %v449 = vsub.bf16 %v439, %v445
      %v450 = vsub.bf16 %v440, %v445
      %451 = vrot.lane.b32.xlu0 %v445, 8
      %v452 = vpop.permute.xlu0 %451
      %vm453 = vcmask 64512
      %v456 = vsel %vm453, %v447, %v452
      %v458 = vsel %vm453, %v448, %v452
      %v460 = vsel %vm453, %v449, %v452
      %v462 = vsel %vm453, %v450, %v452
      %v463 = vld [vmem:[%s2] sm:$0xf]
      %v464 = vld [vmem:[%s2 + $0x4] sm:$0xf]
      %v467 = vunpack.c.l.b16 %v463
      %v468 = vunpack.c.l.b16 %v464
      %v469 = vpack.c.b16 %v468, %v467
      %v471 = vsel %vm359, %v456, 0
      %v473 = vsel %vm359, %v458, 0
      %v475 = vsel %vm359, %v460, 0
      %v477 = vsel %vm359, %v462, 0
      %479 = vmatprep.subr.bf16.mxu0 0
      %480 = vmatpush1.bf16.msra.mxu0 %v469
      %481 = vmatprep.subr.bf16.mxu0 0
      %482 = vmatpush1.bf16.msra.mxu0 0
      %483 = vmatprep.subr.bf16.mxu0 0
      %484 = vmatpush1.bf16.msra.mxu0 0
      %485 = vmatprep.subr.bf16.mxu0 0
      %486 = vmatpush1.bf16.msra.mxu0 0
      %487 = vmatprep.subr.bf16.mxu0 0
      %488 = vmatpush1.bf16.msra.mxu0 0
      %489 = vmatprep.subr.bf16.mxu0 0
      %490 = vmatpush1.bf16.msra.mxu0 0
      %491 = vmatprep.subr.bf16.mxu0 0
      %492 = vmatpush1.bf16.msra.mxu0 0
      %493 = vmatprep.subr.bf16.mxu0 0
      %494 = vmatpush1.bf16.msra.mxu0 0
      %495 = vmatprep.subr.bf16.mxu0 0
      %496 = vmatpush1.bf16.msra.mxu0 0
      %497 = vmatprep.subr.bf16.mxu0 0
      %498 = vmatpush1.bf16.msra.mxu0 0
      %499 = vmatprep.subr.bf16.mxu0 0
      %500 = vmatpush1.bf16.msra.mxu0 0
      %501 = vmatprep.subr.bf16.mxu0 0
      %502 = vmatpush1.bf16.msra.mxu0 0
      %503 = vmatprep.subr.bf16.mxu0 0
      %504 = vmatpush1.bf16.msra.mxu0 0
      %505 = vmatprep.subr.bf16.mxu0 0
      %506 = vmatpush1.bf16.msra.mxu0 0
      %507 = vmatprep.subr.bf16.mxu0 0
      %508 = vmatpush1.bf16.msra.mxu0 0
      %509 = vmatprep.subr.bf16.mxu0 0
      %510 = vmatpush1.bf16.msra.mxu0 0
      %511 = vmatprep.mubr.bf16.mxu0 0
      %512 = vmatmul.mubr.bf16.gmra.mrb[0].mxu0 %v471
      %v513 = vpop.f32.mrb[0].mxu0
      %v514 = vadd.f32 0.0, %v513
      %v515 = vpop.f32.mrb[0].mxu0
      %v516 = vpop.f32.mrb[0].mxu0
      %v517 = vadd.f32 0.0, %v516
      %v518 = vpop.f32.mrb[0].mxu0
      %519 = vmatprep.mubr.bf16.mxu0 0
      %520 = vmatmul.mubr.bf16.gmra.mrb[0].mxu0 %v473
      %v521 = vpop.f32.mrb[0].mxu0
      %v522 = vadd.f32 0.0, %v521
      %v523 = vpop.f32.mrb[0].mxu0
      %v524 = vpop.f32.mrb[0].mxu0
      %v525 = vadd.f32 0.0, %v524
      %v526 = vpop.f32.mrb[0].mxu0
      %527 = vmatprep.mubr.bf16.mxu0 0
      %528 = vmatmul.mubr.bf16.gmra.mrb[0].mxu0 %v475
      %v529 = vpop.f32.mrb[0].mxu0
      %v530 = vadd.f32 0.0, %v529
      %v531 = vpop.f32.mrb[0].mxu0
      %v532 = vpop.f32.mrb[0].mxu0
      %v533 = vadd.f32 0.0, %v532
      %v534 = vpop.f32.mrb[0].mxu0
      %535 = vmatprep.mubr.bf16.mxu0 0
      %536 = vmatmul.mubr.bf16.gmra.mrb[0].mxu0 %v477
      %v537 = vpop.f32.mrb[0].mxu0
      %v538 = vadd.f32 0.0, %v537
      %v539 = vpop.f32.mrb[0].mxu0
      %v540 = vpop.f32.mrb[0].mxu0
      %v541 = vadd.f32 0.0, %v540
      %v542 = vpop.f32.mrb[0].mxu0
      %543 = vdwg.mxu0
      %vm544 = vcmask 523264
      %v545 = vsel %vm544, %v514, 0.0
      %v546 = vsel %vm544, %v517, 0.0
      %v547 = vadd.f32 %v545, %v546
      %v548 = vsel %vm544, %v522, 0.0
      %v549 = vadd.f32 %v547, %v548
      %v550 = vsel %vm544, %v525, 0.0
      %v551 = vadd.f32 %v549, %v550
      %v552 = vsel %vm544, %v530, 0.0
      %v553 = vadd.f32 %v551, %v552
      %v554 = vsel %vm544, %v533, 0.0
      %v555 = vadd.f32 %v553, %v554
      %v556 = vsel %vm544, %v538, 0.0
      %v557 = vadd.f32 %v555, %v556
      %v558 = vsel %vm544, %v541, 0.0
      %v559 = vadd.f32 %v557, %v558
      %v560 = vrot.slane %v559, 4
      %v561 = vadd.f32 %v559, %v560
      %v562 = vrot.slane %v561, 2
      %v563 = vadd.f32 %v561, %v562
      %v564 = vrot.slane %v563, 1
      %v565 = vadd.f32 %v563, %v564
      %v566 = vmul.f32 %v514, %v514
      %v567 = vmul.f32 %v517, %v517
      %v568 = vmul.f32 %v522, %v522
      %v569 = vmul.f32 %v525, %v525
      %v570 = vmul.f32 %v530, %v530
      %v571 = vmul.f32 %v533, %v533
      %v572 = vmul.f32 %v538, %v538
      %v573 = vmul.f32 %v541, %v541
      %v574 = vsel %vm544, %v566, 0.0
      %v575 = vsel %vm544, %v567, 0.0
      %v576 = vadd.f32 %v574, %v575
      %v577 = vsel %vm544, %v568, 0.0
      %v578 = vadd.f32 %v576, %v577
      %v579 = vsel %vm544, %v569, 0.0
      %v580 = vadd.f32 %v578, %v579
      %v581 = vsel %vm544, %v570, 0.0
      %v582 = vadd.f32 %v580, %v581
      %v583 = vsel %vm544, %v571, 0.0
      %v584 = vadd.f32 %v582, %v583
      %v585 = vsel %vm544, %v572, 0.0
      %v586 = vadd.f32 %v584, %v585
      %v587 = vsel %vm544, %v573, 0.0
      %v588 = vadd.f32 %v586, %v587
      %v589 = vrot.slane %v588, 4
      %v590 = vadd.f32 %v588, %v589
      %v591 = vrot.slane %v590, 2
      %v592 = vadd.f32 %v590, %v591
      %v593 = vrot.slane %v592, 1
      %v594 = vadd.f32 %v592, %v593
      %vm595 = vcmask 1040384
      %v596 = vsel %vm595, %v565, %v594
      %vm597 = vcmask 517120
      %598 = vst.msk [vmem:[%s267] sm:$0x3] %vm597, %v596
      %v599 = vsel %vm544, %v514, -inf
      %v600 = vsel %vm544, %v522, -inf
      %v601 = vsel %vm544, %v530, -inf
      %v602 = vmax.f32 %v599, %v601
      %v603 = vsel %vm544, %v538, -inf
      %v604 = vmax.f32 %v600, %v603
      %v605 = vmax.f32 %v602, %v604
      %v606 = vsel %vm544, %v517, -inf
      %v607 = vsel %vm544, %v525, -inf
      %v608 = vsel %vm544, %v533, -inf
      %v609 = vmax.f32 %v606, %v608
      %v610 = vsel %vm544, %v541, -inf
      %v611 = vmax.f32 %v607, %v610
      %v612 = vmax.f32 %v609, %v611
      %613 = vst.msk [vmem:[%s259] sm:$0xff] %vm544, %v605
      %614 = vst.msk [vmem:[%s259 + $0x8] sm:$0xff] %vm544, %v612
      %s615 = smul.u32 2, %s21
      %p616 = scmp.lt.s32.totalorder %s20, 1
      %s617 = scalar_select %p616, %s20, 1
      %p618 = scmp.lt.s32.totalorder %s615, 1
      %s619 = scalar_select %p618, %s615, 1
      %s620 = smul.addr %s617, 2
      %s621 = sadd.s32 %s619, %s620
      %s622 = smul.addr %s621, 8
      %s623 = scalar_lea.vmem %s3, %s622
      %p624 = scmp.lt.s32.totalorder %s20, 1
      %s625 = scalar_select %p624, %s20, 1
      %p626 = scmp.lt.s32.totalorder %s21, 0
      %s627 = scalar_select %p626, %s21, 0
      %s628 = sadd.s32 %s627, %s625
      %s629 = smul.addr %s628, 2
      %s630 = scalar_lea.vmem %s4, %s629
      // Predicated region
      $region33: #{dgcnn_forward.15} parent=31 // pred_check
        %p631 = pneg %p123
      $region34: #{dgcnn_forward.15} parent=31 // pred_check_branch
        %633 = sbr.rel (%p631) target = $region36
      $region35: #{dgcnn_forward.15} parent=31 // pred_region
        %s634 = smul.u32 2, %s21
      $region36: #{dgcnn_forward.15} parent=31 // pred_fallthru
        _
      // Predicated region
      $region37: #{dgcnn_forward.15} parent=31 // pred_check
        %p635 = pneg %p151
      $region38: #{dgcnn_forward.15} parent=31 // pred_check_branch
        %637 = sbr.rel (%p635) target = $region40
      $region39: #{dgcnn_forward.15} parent=31 // pred_region
        _
      $region40: #{dgcnn_forward.15} parent=31 // pred_fallthru
        _
    $region32: #{dgcnn_forward.15} parent=5 // pred_fallthru
      _
    %p638 = scmp.le.s32.totalorder 2, %s11
    // Predicated region
    $region41: #{dgcnn_forward.15} parent=5 // pred_check
      %p639 = pneg %p638
    $region42: #{dgcnn_forward.15} parent=5 // pred_check_branch
      %641 = sbr.rel (%p639) target = $region44
    $region43: #{dgcnn_forward.15} parent=5 // pred_region
      %s642 = ssub.s32 %s11, 2
      // Predicated region
      $region45: #{dgcnn_forward.15} parent=43 // pred_check
        %p643 = pneg %p129
      $region46: #{dgcnn_forward.15} parent=43 // pred_check_branch
        %645 = sbr.rel (%p643) target = $region48
      $region47: #{dgcnn_forward.15} parent=43 // pred_region
        %s646 = smul.u32 2, %s23
        %p647 = scmp.lt.s32.totalorder %s22, 1
        %s648 = scalar_select %p647, %s22, 1
        %p649 = scmp.lt.s32.totalorder %s646, 1
        %s650 = scalar_select %p649, %s646, 1
        %s651 = smul.addr %s648, 2
        %s652 = sadd.s32 %s650, %s651
        %s653 = smul.addr %s652, 8
        %s654 = scalar_lea.vmem %s3, %s653
      $region48: #{dgcnn_forward.15} parent=43 // pred_fallthru
        _
      // Predicated region
      $region49: #{dgcnn_forward.15} parent=43 // pred_check
        %p655 = pneg %p157
      $region50: #{dgcnn_forward.15} parent=43 // pred_check_branch
        %657 = sbr.rel (%p655) target = $region52
      $region51: #{dgcnn_forward.15} parent=43 // pred_region
        %p658 = scmp.lt.s32.totalorder %s22, 1
        %s659 = scalar_select %p658, %s22, 1
        %p660 = scmp.lt.s32.totalorder %s23, 0
        %s661 = scalar_select %p660, %s23, 0
        %s662 = sadd.s32 %s661, %s659
        %s663 = smul.addr %s662, 2
        %s664 = scalar_lea.vmem %s4, %s663
      $region52: #{dgcnn_forward.15} parent=43 // pred_fallthru
        _
    $region44: #{dgcnn_forward.15} parent=5 // pred_fallthru
      _
  $region6: #{dgcnn_forward.15} parent=0 // loop_footer
    %s15 = sadd.s32 1, %s11
  $region7: #{dgcnn_forward.15} parent=0 // loop_footer_branch
    %10 = sbr.rel target = $region3
  $region8: #{dgcnn_forward.15} parent=0 // loop_exit
    _

// kernel: dgcnn_forward.22
$region0: #{dgcnn_forward.22}
  #allocation0 [shape = 'u32[]', space=smem, size = 0x4, offset = 0x4, fixed_abs, tag = 'smem constant byte address 0x4 - core index']
  #allocation1 [shape = 'u32[144,128]{1,0:T(1,128)}', space=vmem, size = 0x12000, scoped, tag = 'internal scratch']
  %s0 = inlined_call_operand.vmem [shape: f32[32,128], index: 0, kind: input, shape index: {}]
  %s1 = inlined_call_operand.vmem [shape: f32[1,128], index: 1, kind: input, shape index: {}]
  %s2 = inlined_call_operand.vmem [shape: f32[1,128], index: 2, kind: input, shape index: {}]
  %s3 = inlined_call_operand.vmem [shape: f32[32,128], index: 3, kind: output, shape index: {}]
  %s4 = sld [smem:[#allocation0]]
  $region22: #{dgcnn_forward.22} parent=0
    _
  %s6 = ssub.s32 1, %s4
  %s7 = scalar_select 0, %s6, %s4
  // Predicated region
  $region2: #{dgcnn_forward.22} parent=0 // pred_check
    _
  $region3: #{dgcnn_forward.22} parent=0 // pred_check_branch
    %9 = sbr.rel (0) target = $region5
  $region4: #{dgcnn_forward.22} parent=0 // pred_region
    _
  $region5: #{dgcnn_forward.22} parent=0 // pred_fallthru
    _
  // Predicated region
  $region6: #{dgcnn_forward.22} parent=0 // pred_check
    _
  $region7: #{dgcnn_forward.22} parent=0 // pred_check_branch
    %11 = sbr.rel (0) target = $region9
  $region8: #{dgcnn_forward.22} parent=0 // pred_region
    _
  $region9: #{dgcnn_forward.22} parent=0 // pred_fallthru
    _
  // Predicated region
  $region10: #{dgcnn_forward.22} parent=0 // pred_check
    _
  $region11: #{dgcnn_forward.22} parent=0 // pred_check_branch
    %13 = sbr.rel (0) target = $region13
  $region12: #{dgcnn_forward.22} parent=0 // pred_region
    _
  $region13: #{dgcnn_forward.22} parent=0 // pred_fallthru
    _
  %v14 = vld [vmem:[%s0] sm:$0xff]
  %v15 = vld [vmem:[%s0 + $0x8] sm:$0xff]
  %v16 = vld [vmem:[%s0 + $0x10] sm:$0xff]
  %v17 = vld [vmem:[%s0 + $0x18] sm:$0xff]
  %v18 = vld [vmem:[%s1] sm:$0x1]
  %v20 = vlaneseq
  %v21 = vshrl.u32 %v20, 7
  %v22 = vsub.s32 0, %v21
  %v23 = vrot.slane %v18, %v22
  %v25 = vmul.f32 %v14, %v23
  %v26 = vmul.f32 %v15, %v23
  %v27 = vmul.f32 %v16, %v23
  %v28 = vmul.f32 %v17, %v23
  %v29 = vld [vmem:[%s2] sm:$0x1]
  %v31 = vlaneseq
  %v32 = vshrl.u32 %v31, 7
  %v33 = vsub.s32 0, %v32
  %v34 = vrot.slane %v29, %v33
  %v36 = vadd.f32 %v25, %v34
  %v37 = vadd.f32 %v26, %v34
  %v38 = vadd.f32 %v27, %v34
  %v39 = vadd.f32 %v28, %v34
  %vm40 = vcmp.gt.f32.partialorder %v36, 0.0
  %vm41 = vcmp.gt.f32.partialorder %v37, 0.0
  %vm42 = vcmp.gt.f32.partialorder %v38, 0.0
  %vm43 = vcmp.gt.f32.partialorder %v39, 0.0
  %v44 = vmul.f32 %v36, 0.2
  %v45 = vmul.f32 %v37, 0.2
  %v46 = vmul.f32 %v38, 0.2
  %v47 = vmul.f32 %v39, 0.2
  %v48 = vsel %vm40, %v36, %v44
  %v49 = vsel %vm41, %v37, %v45
  %v50 = vsel %vm42, %v38, %v46
  %v51 = vsel %vm43, %v39, %v47
  %52 = vst [vmem:[%s3] sm:$0xff] %v48
  %53 = vst [vmem:[%s3 + $0x8] sm:$0xff] %v49
  %54 = vst [vmem:[%s3 + $0x10] sm:$0xff] %v50
  %55 = vst [vmem:[%s3 + $0x18] sm:$0xff] %v51
  // Predicated region
  $region14: #{dgcnn_forward.22} parent=0 // pred_check
    _
  $region15: #{dgcnn_forward.22} parent=0 // pred_check_branch
    %57 = sbr.rel (0) target = $region17
  $region16: #{dgcnn_forward.22} parent=0 // pred_region
    _
  $region17: #{dgcnn_forward.22} parent=0 // pred_fallthru
    _
  // Predicated region
  $region18: #{dgcnn_forward.22} parent=0 // pred_check
    _
  $region19: #{dgcnn_forward.22} parent=0 // pred_check_branch
    %59 = sbr.rel (0) target = $region21
  $region20: #{dgcnn_forward.22} parent=0 // pred_region
    _
  $region21: #{dgcnn_forward.22} parent=0 // pred_fallthru
    _

// kernel: dgcnn_forward.23
$region0: #{dgcnn_forward.23}
  #allocation0 [shape = 'u32[]', space=smem, size = 0x4, offset = 0x4, fixed_abs, tag = 'smem constant byte address 0x4 - core index']
  #allocation1 [shape = 'u32[144,128]{1,0:T(1,128)}', space=vmem, size = 0x12000, scoped, tag = 'internal scratch']
  %s0 = inlined_call_operand.vmem [shape: f32[2,16,128], index: 0, kind: input, shape index: {}]
  %s1 = inlined_call_operand.vmem [shape: f32[2,16,16], index: 1, kind: output, shape index: {}]
  %s2 = sld [smem:[#allocation0]]
  $region37: #{dgcnn_forward.23} parent=0
    _
  %s4 = ssub.s32 1, %s2
  %s5 = scalar_select 0, %s4, %s2
  loop: start=0, step=1, limit=4
  $region2: #{dgcnn_forward.23} parent=0 // loop_pre_header
    _
  $region3: #{dgcnn_forward.23} parent=0 // loop_header
    %s7 = sphi 0, %s11
    %p8 = scmp.ge.s32.totalorder %s7, 4
    %s17 = sphi 0, %s19
    %s20 = sphi 0, %s17
    %s21 = sphi 0, %s20
    %s37 = sphi 0, %s21
    %s43 = sphi 0, %s45
    %s46 = sphi 0, %s43
    %s47 = sphi 0, %s46
    %s63 = sphi 0, %s47
  $region4: #{dgcnn_forward.23} parent=0 // loop_header_branch
    %10 = sbr.rel (%p8) target = $region8
  $region5: #{dgcnn_forward.23} parent=0 // loop_body
    %s12 = ssub.s32 %s7, 1
    %s13 = ssub.s32 %s7, 2
    %s14 = sadd.s32 %s7, 1
    %s15 = ssub.s32 %s7, %s14
    %p16 = scmp.eq.s32.totalorder %s15, 0
    %s18 = sadd.s32 %s17, 1
    %s19 = scalar_select %p16, %s17, %s18
    %p22 = pneg %p16
    %p23 = scmp.eq.s32.totalorder %s7, 1
    %p24 = por %p22, %p23
    %p25 = scmp.ne.s32.totalorder %s17, %s20
    %p26 = scmp.eq.s32.totalorder %s7, 0
    %p27 = por %p25, %p26
    %p28 = scmp.ne.s32.totalorder %s17, %s20
    %p29 = scmp.eq.s32.totalorder %s12, 1
    %p30 = por %p28, %p29
    %p31 = scmp.ne.s32.totalorder %s20, %s21
    %p32 = scmp.eq.s32.totalorder %s12, 0
    %p33 = por %p31, %p32
    %p34 = scmp.ne.s32.totalorder %s20, %s21
    %p35 = scmp.eq.s32.totalorder %s13, 1
    %p36 = por %p34, %p35
    %p38 = scmp.ne.s32.totalorder %s21, %s37
    %p39 = scmp.eq.s32.totalorder %s13, 0
    %p40 = por %p38, %p39
    %s41 = ssub.s32 %s7, %s14
    %p42 = scmp.eq.s32.totalorder %s41, 0
    %s44 = sadd.s32 %s43, 1
    %s45 = scalar_select %p42, %s43, %s44
    %p48 = pneg %p42
    %p49 = scmp.eq.s32.totalorder %s7, 1
    %p50 = por %p48, %p49
    %p51 = scmp.ne.s32.totalorder %s43, %s46
    %p52 = scmp.eq.s32.totalorder %s7, 0
    %p53 = por %p51, %p52
    %p54 = scmp.ne.s32.totalorder %s43, %s46
    %p55 = scmp.eq.s32.totalorder %s12, 1
    %p56 = por %p54, %p55
    %p57 = scmp.ne.s32.totalorder %s46, %s47
    %p58 = scmp.eq.s32.totalorder %s12, 0
    %p59 = por %p57, %p58
    %p60 = scmp.ne.s32.totalorder %s46, %s47
    %p61 = scmp.eq.s32.totalorder %s13, 1
    %p62 = por %p60, %p61
    %p64 = scmp.ne.s32.totalorder %s47, %s63
    %p65 = scmp.eq.s32.totalorder %s13, 0
    %p66 = por %p64, %p65
    %p67 = scmp.le.s32.totalorder 1, %s7
    %p68 = scmp.lt.s32.totalorder %s7, 3
    %p69 = pnand %p67, %p68
    %p70 = pneg %p69
    // Predicated region
    $region9: #{dgcnn_forward.23} parent=5 // pred_check
      _
    $region10: #{dgcnn_forward.23} parent=5 // pred_check_branch
      %72 = sbr.rel (%p69) target = $region12
    $region11: #{dgcnn_forward.23} parent=5 // pred_region
      %s73 = ssub.s32 %s7, 1
    $region12: #{dgcnn_forward.23} parent=5 // pred_fallthru
      _
    %p74 = scmp.lt.s32.totalorder %s7, 2
    // Predicated region
    $region13: #{dgcnn_forward.23} parent=5 // pred_check
      %p75 = pneg %p74
    $region14: #{dgcnn_forward.23} parent=5 // pred_check_branch
      %77 = sbr.rel (%p75) target = $region16
    $region15: #{dgcnn_forward.23} parent=5 // pred_region
      // Predicated region
      $region17: #{dgcnn_forward.23} parent=15 // pred_check
        %p78 = pneg %p27
      $region18: #{dgcnn_forward.23} parent=15 // pred_check_branch
        %80 = sbr.rel (%p78) target = $region20
      $region19: #{dgcnn_forward.23} parent=15 // pred_region
        %p81 = scmp.lt.s32.totalorder %s7, 1
        %s82 = scalar_select %p81, %s7, 1
        %s83 = smul.addr %s82, 2
        %s84 = smul.addr %s83, 8
        %s85 = scalar_lea.vmem %s0, %s84
      $region20: #{dgcnn_forward.23} parent=15 // pred_fallthru
        _
    $region16: #{dgcnn_forward.23} parent=5 // pred_fallthru
      _
    %p86 = scmp.le.s32.totalorder 1, %s7
    %p87 = scmp.lt.s32.totalorder %s7, 3
    %p88 = pnand %p86, %p87
    %p89 = pneg %p88
    // Predicated region
    $region21: #{dgcnn_forward.23} parent=5 // pred_check
      _
    $region22: #{dgcnn_forward.23} parent=5 // pred_check_branch
      %91 = sbr.rel (%p88) target = $region24
    $region23: #{dgcnn_forward.23} parent=5 // pred_region
      %s92 = ssub.s32 %s7, 1
      %p93 = scmp.lt.s32.totalorder %s12, 1
      %s94 = scalar_select %p93, %s12, 1
      %s95 = smul.addr %s94, 2
      %s96 = smul.addr %s95, 8
      %s97 = scalar_lea.vmem %s0, %s96
      %p98 = pneg %p33
      %p99 = pneg %p30
      %p100 = pneg %p59
      %p101 = pneg %p56
      %p102 = scmp.lt.s32.totalorder %s12, 1
      %s103 = scalar_select %p102, %s12, 1
      %s104 = smul.addr %s103, 2
      %s105 = smul.addr %s104, 8
      %s106 = scalar_lea.vmem %s1, %s105
      %p107 = scmp.lt.s32.totalorder %s12, 1
      %s108 = scalar_select %p107, %s12, 1
      %s109 = smul.addr %s108, 2
      %s110 = smul.addr %s109, 8
      %s111 = scalar_lea.vmem %s0, %s110
      %p112 = scmp.lt.s32.totalorder %s12, 1
      %s113 = scalar_select %p112, %s12, 1
      %s114 = smul.addr %s113, 2
      %s115 = smul.addr %s114, 8
      %s116 = scalar_lea.vmem %s1, %s115
      %v117 = vld [vmem:[%s111] sm:$0xff]
      %v118 = vld [vmem:[%s111 + $0x8] sm:$0xff]
      %119 = vmatprep.subr.mxu0 0.0
      %120 = vmatpush1.xpose.msra.mxu0 %v117
      %121 = vmatprep.subr.mxu0 0.0
      %122 = vmatpush1.xpose.msra.mxu0 %v118
      %123 = vmatprep.subr.mxu0 0.0
      %124 = vmatpush1.xpose.msra.mxu0 0.0
      %125 = vmatprep.subr.mxu0 0.0
      %126 = vmatpush1.xpose.msra.mxu0 0.0
      %127 = vmatprep.subr.mxu0 0.0
      %128 = vmatpush1.xpose.msra.mxu0 0.0
      %129 = vmatprep.subr.mxu0 0.0
      %130 = vmatpush1.xpose.msra.mxu0 0.0
      %131 = vmatprep.subr.mxu0 0.0
      %132 = vmatpush1.xpose.msra.mxu0 0.0
      %133 = vmatprep.subr.mxu0 0.0
      %134 = vmatpush1.xpose.msra.mxu0 0.0
      %135 = vmatprep.subr.mxu0 0.0
      %136 = vmatpush1.xpose.msra.mxu0 0.0
      %137 = vmatprep.subr.mxu0 0.0
      %138 = vmatpush1.xpose.msra.mxu0 0.0
      %139 = vmatprep.subr.mxu0 0.0
      %140 = vmatpush1.xpose.msra.mxu0 0.0
      %141 = vmatprep.subr.mxu0 0.0
      %142 = vmatpush1.xpose.msra.mxu0 0.0
      %143 = vmatprep.subr.mxu0 0.0
      %144 = vmatpush1.xpose.msra.mxu0 0.0
      %145 = vmatprep.subr.mxu0 0.0
      %146 = vmatpush1.xpose.msra.mxu0 0.0
      %147 = vmatprep.subr.mxu0 0.0
      %148 = vmatpush1.xpose.msra.mxu0 0.0
      %149 = vmatprep.subr.mxu0 0.0
      %150 = vmatpush1.xpose.msra.mxu0 0.0
      %151 = vmatprep.subr.mxu0 0.0
      %152 = vmatpush1.xpose.msra.mxu0 0.0
      %153 = vmatprep.subr.mxu0 0.0
      %154 = vmatpush1.xpose.msra.mxu0 0.0
      %155 = vmatprep.subr.mxu0 0.0
      %156 = vmatpush1.xpose.msra.mxu0 0.0
      %157 = vmatprep.subr.mxu0 0.0
      %158 = vmatpush1.xpose.msra.mxu0 0.0
      %159 = vmatprep.subr.mxu0 0.0
      %160 = vmatpush1.xpose.msra.mxu0 0.0
      %161 = vmatprep.subr.mxu0 0.0
      %162 = vmatpush1.xpose.msra.mxu0 0.0
      %163 = vmatprep.subr.mxu0 0.0
      %164 = vmatpush1.xpose.msra.mxu0 0.0
      %165 = vmatprep.subr.mxu0 0.0
      %166 = vmatpush1.xpose.msra.mxu0 0.0
      %167 = vmatprep.subr.mxu0 0.0
      %168 = vmatpush1.xpose.msra.mxu0 0.0
      %169 = vmatprep.subr.mxu0 0.0
      %170 = vmatpush1.xpose.msra.mxu0 0.0
      %171 = vmatprep.subr.mxu0 0.0
      %172 = vmatpush1.xpose.msra.mxu0 0.0
      %173 = vmatprep.subr.mxu0 0.0
      %174 = vmatpush1.xpose.msra.mxu0 0.0
      %175 = vmatprep.subr.mxu0 0.0
      %176 = vmatpush1.xpose.msra.mxu0 0.0
      %177 = vmatprep.subr.mxu0 0.0
      %178 = vmatpush1.xpose.msra.mxu0 0.0
      %179 = vmatprep.subr.mxu0 0.0
      %180 = vmatpush1.xpose.msra.mxu0 0.0
      %181 = vmatprep.subr.mxu0 0.0
      %182 = vmatpush1.xpose.msra.mxu0 0.0
      %183 = vmatprep.mubr.f32.mxu0 0.0
      %184 = vmatmul.mubr.f32.gmra.mrb[0].mxu0 %v117
      %v185 = vpop.f32.mrb[0].mxu0
      %v186 = vadd.f32 0.0, %v185
      %v187 = vpop.f32.mrb[0].mxu0
      %188 = vmatprep.mubr.f32.mxu0 0.0
      %189 = vmatmul.mubr.f32.gmra.mrb[0].mxu0 %v118
      %v190 = vpop.f32.mrb[0].mxu0
      %v191 = vadd.f32 0.0, %v190
      %v192 = vpop.f32.mrb[0].mxu0
      %193 = vdwg.mxu0
      %v194 = vmul.f32 %v117, %v117
      %v195 = vmul.f32 %v118, %v118
      %196 = vadd.xlane.f32.xlu0 %v194
      %v197 = vpop.xlane.xlu0 %196
      %198 = vadd.xlane.f32.xlu0 %v195
      %v199 = vpop.xlane.xlu0 %198
      %200 = vmatprep.subr.mxu0 0.0
      %201 = vmatpush1.xpose.msra.mxu0 %v194
      %202 = vmatprep.subr.mxu0 0.0
      %203 = vmatpush1.xpose.msra.mxu0 %v195
      %204 = vmatprep.subr.mxu0 0.0
      %205 = vmatpush1.xpose.msra.mxu0 0.0
      %206 = vmatprep.subr.mxu0 0.0
      %207 = vmatpush1.xpose.msra.mxu0 0.0
      %208 = vmatprep.subr.mxu0 0.0
      %209 = vmatpush1.xpose.msra.mxu0 0.0
      %210 = vmatprep.subr.mxu0 0.0
      %211 = vmatpush1.xpose.msra.mxu0 0.0
      %212 = vmatprep.subr.mxu0 0.0
      %213 = vmatpush1.xpose.msra.mxu0 0.0
      %214 = vmatprep.subr.mxu0 0.0
      %215 = vmatpush1.xpose.msra.mxu0 0.0
      %216 = vmatprep.subr.mxu0 0.0
      %217 = vmatpush1.xpose.msra.mxu0 0.0
      %218 = vmatprep.subr.mxu0 0.0
      %219 = vmatpush1.xpose.msra.mxu0 0.0
      %220 = vmatprep.subr.mxu0 0.0
      %221 = vmatpush1.xpose.msra.mxu0 0.0
      %222 = vmatprep.subr.mxu0 0.0
      %223 = vmatpush1.xpose.msra.mxu0 0.0
      %224 = vmatprep.subr.mxu0 0.0
      %225 = vmatpush1.xpose.msra.mxu0 0.0
      %226 = vmatprep.subr.mxu0 0.0
      %227 = vmatpush1.xpose.msra.mxu0 0.0
      %228 = vmatprep.subr.mxu0 0.0
      %229 = vmatpush1.xpose.msra.mxu0 0.0
      %230 = vmatprep.subr.mxu0 0.0
      %231 = vmatpush1.xpose.msra.mxu0 0.0
      %232 = vmatprep.subr.mxu0 0.0
      %233 = vmatpush1.xpose.msra.mxu0 0.0
      %234 = vmatprep.subr.mxu0 0.0
      %235 = vmatpush1.xpose.msra.mxu0 0.0
      %236 = vmatprep.subr.mxu0 0.0
      %237 = vmatpush1.xpose.msra.mxu0 0.0
      %238 = vmatprep.subr.mxu0 0.0
      %239 = vmatpush1.xpose.msra.mxu0 0.0
      %240 = vmatprep.subr.mxu0 0.0
      %241 = vmatpush1.xpose.msra.mxu0 0.0
      %242 = vmatprep.subr.mxu0 0.0
      %243 = vmatpush1.xpose.msra.mxu0 0.0
      %244 = vmatprep.subr.mxu0 0.0
      %245 = vmatpush1.xpose.msra.mxu0 0.0
      %246 = vmatprep.subr.mxu0 0.0
      %247 = vmatpush1.xpose.msra.mxu0 0.0
      %248 = vmatprep.subr.mxu0 0.0
      %249 = vmatpush1.xpose.msra.mxu0 0.0
      %250 = vmatprep.subr.mxu0 0.0
      %251 = vmatpush1.xpose.msra.mxu0 0.0
      %252 = vmatprep.subr.mxu0 0.0
      %253 = vmatpush1.xpose.msra.mxu0 0.0
      %254 = vmatprep.subr.mxu0 0.0
      %255 = vmatpush1.xpose.msra.mxu0 0.0
      %256 = vmatprep.subr.mxu0 0.0
      %257 = vmatpush1.xpose.msra.mxu0 0.0
      %258 = vmatprep.subr.mxu0 0.0
      %259 = vmatpush1.xpose.msra.mxu0 0.0
      %260 = vmatprep.subr.mxu0 0.0
      %261 = vmatpush1.xpose.msra.mxu0 0.0
      %262 = vmatprep.subr.mxu0 0.0
      %263 = vmatpush1.xpose.msra.mxu0 0.0
      %264 = vmatprep.mubr.f32.mxu0 0.0
      %265 = vmatmul.mubr.f32.gmra.mrb[0].mxu0 1.0
      %v266 = vpop.f32.mrb[0].mxu0
      %v267 = vadd.f32 0.0, %v266
      %v268 = vpop.f32.mrb[0].mxu0
      %269 = vdwg.mxu0
      %v270 = vmul.f32 %v186, 2.0
      %v271 = vmul.f32 %v191, 2.0
      %v272 = vsub.f32 %v270, %v197
      %v273 = vsub.f32 %v271, %v199
      %v274 = vlaneseq
      %v275 = vshrl.u32 %v274, 7
      %v276 = vsub.s32 0, %v275
      %v277 = vrot.slane %v267, %v276
      %v278 = vsub.f32 %v272, %v277
      %v279 = vsub.f32 %v273, %v277
      %vm280 = vcmask 130048
      %281 = vst.msk [vmem:[%s116] sm:$0xff] %vm280, %v278
      %282 = vst.msk [vmem:[%s116 + $0x8] sm:$0xff] %vm280, %v279
      %p283 = scmp.lt.s32.totalorder %s12, 1
      %s284 = scalar_select %p283, %s12, 1
      %s285 = smul.addr %s284, 2
      %s286 = smul.addr %s285, 8
      %s287 = scalar_lea.vmem %s1, %s286
      // Predicated region
      $region25: #{dgcnn_forward.23} parent=23 // pred_check
        %p288 = pneg %p56
      $region26: #{dgcnn_forward.23} parent=23 // pred_check_branch
        %290 = sbr.rel (%p288) target = $region28
      $region27: #{dgcnn_forward.23} parent=23 // pred_region
        _
      $region28: #{dgcnn_forward.23} parent=23 // pred_fallthru
        _
    $region24: #{dgcnn_forward.23} parent=5 // pred_fallthru
      _
    %p291 = scmp.le.s32.totalorder 2, %s7
    // Predicated region
    $region29: #{dgcnn_forward.23} parent=5 // pred_check
      %p292 = pneg %p291
    $region30: #{dgcnn_forward.23} parent=5 // pred_check_branch
      %294 = sbr.rel (%p292) target = $region32
    $region31: #{dgcnn_forward.23} parent=5 // pred_region
      %s295 = ssub.s32 %s7, 2
      // Predicated region
      $region33: #{dgcnn_forward.23} parent=31 // pred_check
        %p296 = pneg %p62
      $region34: #{dgcnn_forward.23} parent=31 // pred_check_branch
        %298 = sbr.rel (%p296) target = $region36
      $region35: #{dgcnn_forward.23} parent=31 // pred_region
        %p299 = scmp.lt.s32.totalorder %s13, 1
        %s300 = scalar_select %p299, %s13, 1
        %s301 = smul.addr %s300, 2
        %s302 = smul.addr %s301, 8
        %s303 = scalar_lea.vmem %s1, %s302
      $region36: #{dgcnn_forward.23} parent=31 // pred_fallthru
        _
    $region32: #{dgcnn_forward.23} parent=5 // pred_fallthru
      _
  $region6: #{dgcnn_forward.23} parent=0 // loop_footer
    %s11 = sadd.s32 1, %s7
  $region7: #{dgcnn_forward.23} parent=0 // loop_footer_branch
    %6 = sbr.rel target = $region3
  $region8: #{dgcnn_forward.23} parent=0 // loop_exit
    _

// kernel: dgcnn_forward.18
$region0: #{dgcnn_forward.18}
  #allocation0 [shape = 'u32[]', space=smem, size = 0x4, offset = 0x4, fixed_abs, tag = 'smem constant byte address 0x4 - core index']
  #allocation1 [shape = 'u32[144,128]{1,0:T(1,128)}', space=vmem, size = 0x12000, scoped, tag = 'internal scratch']
  %s0 = inlined_call_operand.vmem [shape: bf16[2,16,64], index: 0, kind: input, shape index: {}]
  %s1 = inlined_call_operand.vmem [shape: s32[2,4,16], index: 1, kind: input, shape index: {}]
  %s2 = inlined_call_operand.vmem [shape: bf16[128,64], index: 2, kind: input, shape index: {}]
  %s3 = inlined_call_operand.vmem [shape: f32[2,16,64], index: 3, kind: output, shape index: {0}]
  %s4 = inlined_call_operand.vmem [shape: f32[2,1,2,64], index: 4, kind: output, shape index: {1}]
  %5 = xla_tuple %s3, %s4
  %s6 = sld [smem:[#allocation0]]
  $region53: #{dgcnn_forward.18} parent=0
    _
  %s8 = ssub.s32 1, %s6
  %s9 = scalar_select 0, %s8, %s6
  loop: start=0, step=1, limit=4
  $region2: #{dgcnn_forward.18} parent=0 // loop_pre_header
    _
  $region3: #{dgcnn_forward.18} parent=0 // loop_header
    %s11 = sphi 0, %s15
    %p12 = scmp.ge.s32.totalorder %s11, 4
    %s18 = sphi 0, %s30
    %s19 = sphi 0, %s26
    %s20 = sphi 0, %s18
    %s21 = sphi 0, %s19
    %s22 = sphi 0, %s20
    %s23 = sphi 0, %s21
    %s33 = sphi 0, %s35
    %s36 = sphi 0, %s33
    %s37 = sphi 0, %s36
    %s53 = sphi 0, %s37
    %s61 = sphi 0, %s63
    %s64 = sphi 0, %s61
    %s65 = sphi 0, %s64
    %s81 = sphi 0, %s65
    %s85 = sphi 0, %s85
    %s87 = sphi 0, %s85
    %s88 = sphi 0, %s87
    %s102 = sphi 0, %s88
    %s110 = sphi 0, %s112
    %s113 = sphi 0, %s110
    %s114 = sphi 0, %s113
    %s130 = sphi 0, %s114
    %s138 = sphi 0, %s140
    %s141 = sphi 0, %s138
    %s142 = sphi 0, %s141
    %s158 = sphi 0, %s142
  $region4: #{dgcnn_forward.18} parent=0 // loop_header_branch
    %14 = sbr.rel (%p12) target = $region8
  $region5: #{dgcnn_forward.18} parent=0 // loop_body
    %s16 = ssub.s32 %s11, 1
    %s17 = ssub.s32 %s11, 2
    %s24 = sadd.s32 1, %s19
    %p25 = scmp.ge.s32.totalorder %s24, 1
    %s26 = scalar_select %p25, 0, %s24
    %s27 = sadd.s32 1, %s18
    %s28 = scalar_select %p25, %s27, %s18
    %p29 = scmp.ge.s32.totalorder %s28, 2
    %s30 = scalar_select %p29, 0, %s28
    %s31 = ssub.s32 %s18, %s30
    %p32 = scmp.eq.s32.totalorder %s31, 0
    %s34 = sadd.s32 %s33, 1
    %s35 = scalar_select %p32, %s33, %s34
    %p38 = pneg %p32
    %p39 = scmp.eq.s32.totalorder %s11, 1
    %p40 = por %p38, %p39
    %p41 = scmp.ne.s32.totalorder %s33, %s36
    %p42 = scmp.eq.s32.totalorder %s11, 0
    %p43 = por %p41, %p42
    %p44 = scmp.ne.s32.totalorder %s33, %s36
    %p45 = scmp.eq.s32.totalorder %s16, 1
    %p46 = por %p44, %p45
    %p47 = scmp.ne.s32.totalorder %s36, %s37
    %p48 = scmp.eq.s32.totalorder %s16, 0
    %p49 = por %p47, %p48
    %p50 = scmp.ne.s32.totalorder %s36, %s37
    %p51 = scmp.eq.s32.totalorder %s17, 1
    %p52 = por %p50, %p51
    %p54 = scmp.ne.s32.totalorder %s37, %s53
    %p55 = scmp.eq.s32.totalorder %s17, 0
    %p56 = por %p54, %p55
    %s57 = ssub.s32 %s18, %s30
    %s58 = ssub.s32 %s19, %s26
    %s59 = sor.u32 %s57, %s58
    %p60 = scmp.eq.s32.totalorder %s59, 0
    %s62 = sadd.s32 %s61, 1
    %s63 = scalar_select %p60, %s61, %s62
    %p66 = pneg %p60
    %p67 = scmp.eq.s32.totalorder %s11, 1
    %p68 = por %p66, %p67
    %p69 = scmp.ne.s32.totalorder %s61, %s64
    %p70 = scmp.eq.s32.totalorder %s11, 0
    %p71 = por %p69, %p70
    %p72 = scmp.ne.s32.totalorder %s61, %s64
    %p73 = scmp.eq.s32.totalorder %s16, 1
    %p74 = por %p72, %p73
    %p75 = scmp.ne.s32.totalorder %s64, %s65
    %p76 = scmp.eq.s32.totalorder %s16, 0
    %p77 = por %p75, %p76
    %p78 = scmp.ne.s32.totalorder %s64, %s65
    %p79 = scmp.eq.s32.totalorder %s17, 1
    %p80 = por %p78, %p79
    %p82 = scmp.ne.s32.totalorder %s65, %s81
    %p83 = scmp.eq.s32.totalorder %s17, 0
    %p84 = por %p82, %p83
    %s86 = sadd.s32 %s85, 1
    %p89 = scmp.eq.s32.totalorder %s11, 1
    %p90 = scmp.ne.s32.totalorder %s85, %s87
    %p91 = scmp.eq.s32.totalorder %s11, 0
    %p92 = por %p90, %p91
    %p93 = scmp.ne.s32.totalorder %s85, %s87
    %p94 = scmp.eq.s32.totalorder %s16, 1
    %p95 = por %p93, %p94
    %p96 = scmp.ne.s32.totalorder %s87, %s88
    %p97 = scmp.eq.s32.totalorder %s16, 0
    %p98 = por %p96, %p97
    %p99 = scmp.ne.s32.totalorder %s87, %s88
    %p100 = scmp.eq.s32.totalorder %s17, 1
    %p101 = por %p99, %p100
    %p103 = scmp.ne.s32.totalorder %s88, %s102
    %p104 = scmp.eq.s32.totalorder %s17, 0
    %p105 = por %p103, %p104
    %s106 = ssub.s32 %s18, %s30
    %s107 = ssub.s32 %s19, %s26
    %s108 = sor.u32 %s106, %s107
    %p109 = scmp.eq.s32.totalorder %s108, 0
    %s111 = sadd.s32 %s110, 1
    %s112 = scalar_select %p109, %s110, %s111
    %p115 = pneg %p109
    %p116 = scmp.eq.s32.totalorder %s11, 1
    %p117 = por %p115, %p116
    %p118 = scmp.ne.s32.totalorder %s110, %s113
    %p119 = scmp.eq.s32.totalorder %s11, 0
    %p120 = por %p118, %p119
    %p121 = scmp.ne.s32.totalorder %s110, %s113
    %p122 = scmp.eq.s32.totalorder %s16, 1
    %p123 = por %p121, %p122
    %p124 = scmp.ne.s32.totalorder %s113, %s114
    %p125 = scmp.eq.s32.totalorder %s16, 0
    %p126 = por %p124, %p125
    %p127 = scmp.ne.s32.totalorder %s113, %s114
    %p128 = scmp.eq.s32.totalorder %s17, 1
    %p129 = por %p127, %p128
    %p131 = scmp.ne.s32.totalorder %s114, %s130
    %p132 = scmp.eq.s32.totalorder %s17, 0
    %p133 = por %p131, %p132
    %s134 = ssub.s32 %s18, %s30
    %s135 = ssub.s32 %s19, %s26
    %s136 = sor.u32 %s134, %s135
    %p137 = scmp.eq.s32.totalorder %s136, 0
    %s139 = sadd.s32 %s138, 1
    %s140 = scalar_select %p137, %s138, %s139
    %p143 = pneg %p137
    %p144 = scmp.eq.s32.totalorder %s11, 1
    %p145 = por %p143, %p144
    %p146 = scmp.ne.s32.totalorder %s138, %s141
    %p147 = scmp.eq.s32.totalorder %s11, 0
    %p148 = por %p146, %p147
    %p149 = scmp.ne.s32.totalorder %s138, %s141
    %p150 = scmp.eq.s32.totalorder %s16, 1
    %p151 = por %p149, %p150
    %p152 = scmp.ne.s32.totalorder %s141, %s142
    %p153 = scmp.eq.s32.totalorder %s16, 0
    %p154 = por %p152, %p153
    %p155 = scmp.ne.s32.totalorder %s141, %s142
    %p156 = scmp.eq.s32.totalorder %s17, 1
    %p157 = por %p155, %p156
    %p159 = scmp.ne.s32.totalorder %s142, %s158
    %p160 = scmp.eq.s32.totalorder %s17, 0
    %p161 = por %p159, %p160
    %p162 = scmp.le.s32.totalorder 1, %s11
    %p163 = scmp.lt.s32.totalorder %s11, 3
    %p164 = pnand %p162, %p163
    %p165 = pneg %p164
    // Predicated region
    $region9: #{dgcnn_forward.18} parent=5 // pred_check
      _
    $region10: #{dgcnn_forward.18} parent=5 // pred_check_branch
      %167 = sbr.rel (%p164) target = $region12
    $region11: #{dgcnn_forward.18} parent=5 // pred_region
      %s168 = ssub.s32 %s11, 1
      // Predicated region
      $region13: #{dgcnn_forward.18} parent=11 // pred_check
        %p169 = pneg %p98
      $region14: #{dgcnn_forward.18} parent=11 // pred_check_branch
        %171 = sbr.rel (%p169) target = $region16
      $region15: #{dgcnn_forward.18} parent=11 // pred_region
        _
      $region16: #{dgcnn_forward.18} parent=11 // pred_fallthru
        _
    $region12: #{dgcnn_forward.18} parent=5 // pred_fallthru
      _
    %p172 = scmp.lt.s32.totalorder %s11, 2
    // Predicated region
    $region17: #{dgcnn_forward.18} parent=5 // pred_check
      %p173 = pneg %p172
    $region18: #{dgcnn_forward.18} parent=5 // pred_check_branch
      %175 = sbr.rel (%p173) target = $region20
    $region19: #{dgcnn_forward.18} parent=5 // pred_region
      // Predicated region
      $region21: #{dgcnn_forward.18} parent=19 // pred_check
        %p176 = pneg %p43
      $region22: #{dgcnn_forward.18} parent=19 // pred_check_branch
        %178 = sbr.rel (%p176) target = $region24
      $region23: #{dgcnn_forward.18} parent=19 // pred_region
        %p179 = scmp.lt.s32.totalorder %s18, 1
        %s180 = scalar_select %p179, %s18, 1
        %s181 = smul.addr %s180, 2
        %s182 = smul.addr %s181, 4
        %s183 = scalar_lea.vmem %s0, %s182
      $region24: #{dgcnn_forward.18} parent=19 // pred_fallthru
        _
      // Predicated region
      $region25: #{dgcnn_forward.18} parent=19 // pred_check
        %p184 = pneg %p71
      $region26: #{dgcnn_forward.18} parent=19 // pred_check_branch
        %186 = sbr.rel (%p184) target = $region28
      $region27: #{dgcnn_forward.18} parent=19 // pred_region
        %p187 = scmp.lt.s32.totalorder %s18, 1
        %s188 = scalar_select %p187, %s18, 1
        %p189 = scmp.lt.s32.totalorder %s19, 0
        %s190 = scalar_select %p189, %s19, 0
        %s191 = sadd.s32 %s190, %s188
        %s192 = smul.addr %s191, 4
        %s193 = scalar_lea.vmem %s1, %s192
      $region28: #{dgcnn_forward.18} parent=19 // pred_fallthru
        _
    $region20: #{dgcnn_forward.18} parent=5 // pred_fallthru
      _
    %p194 = scmp.le.s32.totalorder 1, %s11
    %p195 = scmp.lt.s32.totalorder %s11, 3
    %p196 = pnand %p194, %p195
    %p197 = pneg %p196
    // Predicated region
    $region29: #{dgcnn_forward.18} parent=5 // pred_check
      _
    $region30: #{dgcnn_forward.18} parent=5 // pred_check_branch
      %199 = sbr.rel (%p196) target = $region32
    $region31: #{dgcnn_forward.18} parent=5 // pred_region
      %s200 = ssub.s32 %s11, 1
      %p201 = scmp.lt.s32.totalorder %s20, 1
      %s202 = scalar_select %p201, %s20, 1
      %s203 = smul.addr %s202, 2
      %s204 = smul.addr %s203, 4
      %s205 = scalar_lea.vmem %s0, %s204
      %p206 = pneg %p49
      %p207 = pneg %p46
      %p208 = scmp.lt.s32.totalorder %s20, 1
      %s209 = scalar_select %p208, %s20, 1
      %p210 = scmp.lt.s32.totalorder %s21, 0
      %s211 = scalar_select %p210, %s21, 0
      %s212 = sadd.s32 %s211, %s209
      %s213 = smul.addr %s212, 4
      %s214 = scalar_lea.vmem %s1, %s213
      %p215 = pneg %p77
      %p216 = pneg %p74
      %p217 = pneg %p98
      %p218 = pneg %p95
      %p219 = pneg %p126
      %p220 = pneg %p123
      %s221 = smul.u32 2, %s21
      %p222 = scmp.lt.s32.totalorder %s20, 1
      %s223 = scalar_select %p222, %s20, 1
      %p224 = scmp.lt.s32.totalorder %s221, 1
      %s225 = scalar_select %p224, %s221, 1
      %s226 = smul.addr %s223, 2
      %s227 = sadd.s32 %s225, %s226
      %s228 = smul.addr %s227, 8
      %s229 = scalar_lea.vmem %s3, %s228
      %p230 = pneg %p154
      %p231 = pneg %p151
      %p232 = scmp.lt.s32.totalorder %s20, 1
      %s233 = scalar_select %p232, %s20, 1
      %p234 = scmp.lt.s32.totalorder %s21, 0
      %s235 = scalar_select %p234, %s21, 0
      %s236 = sadd.s32 %s235, %s233
      %s237 = smul.addr %s236, 2
      %s238 = scalar_lea.vmem %s4, %s237
      %p239 = scmp.lt.s32.totalorder %s20, 1
      %s240 = scalar_select %p239, %s20, 1
      %s241 = smul.addr %s240, 2
      %s242 = smul.addr %s241, 4
      %s243 = scalar_lea.vmem %s0, %s242
      %p244 = scmp.lt.s32.totalorder %s20, 1
      %s245 = scalar_select %p244, %s20, 1
      %p246 = scmp.lt.s32.totalorder %s21, 0
      %s247 = scalar_select %p246, %s21, 0
      %s248 = sadd.s32 %s247, %s245
      %s249 = smul.addr %s248, 4
      %s250 = scalar_lea.vmem %s1, %s249
      %s251 = smul.u32 2, %s21
      %p252 = scmp.lt.s32.totalorder %s20, 1
      %s253 = scalar_select %p252, %s20, 1
      %p254 = scmp.lt.s32.totalorder %s251, 1
      %s255 = scalar_select %p254, %s251, 1
      %s256 = smul.addr %s253, 2
      %s257 = sadd.s32 %s255, %s256
      %s258 = smul.addr %s257, 8
      %s259 = scalar_lea.vmem %s3, %s258
      %s260 = smul.u32 2, %s21
      %p261 = scmp.lt.s32.totalorder %s20, 1
      %s262 = scalar_select %p261, %s20, 1
      %p263 = scmp.lt.s32.totalorder %s21, 0
      %s264 = scalar_select %p263, %s21, 0
      %s265 = sadd.s32 %s264, %s262
      %s266 = smul.addr %s265, 2
      %s267 = scalar_lea.vmem %s4, %s266
      %v269 = vld [vmem:[%s243] sm:$0xf]
      %v270 = vld [vmem:[%s243 + $0x4] sm:$0xf]
      %s271 = smul.u32 %s21, 16
      %s272 = sshra.s32 %s271, 3
      %s273 = sand.u32 %s271, 7
      %s274 = smul.addr %s272, 4
      %s275 = scalar_lea.vmem %s243, %s274
      %v276 = vld [vmem:[%s275] sm:$0xf]
      %v277 = vld [vmem:[%s275 + $0x4] sm:$0xf]
      %v278 = vld [vmem:[%s250] sm:$0xf]
      %v279 = vlaneseq
      %v280 = vand.u32 %v279, 127
      %v281 = vlaneseq
      %v282 = vshrl.u32 %v281, 7
      %v283 = vsub.s32 0, %v282
      %v284 = vrot.slane %v278, %v283
      %286 = vbcast.lane.b32.xlu0 %v284, 256
      %v287 = vpop.permute.xlu0 %286
      %s289 = sor.u32 256, 8
      %290 = vbcast.lane.b32.xlu0 %v284, %s289
      %v291 = vpop.permute.xlu0 %290
      %v292 = vlaneseq
      %v293 = vshrl.u32 %v292, 7
      %v294 = vsub.s32 1, %v293
      %v295 = vrot.slane %v278, %v294
      %297 = vbcast.lane.b32.xlu0 %v295, 256
      %v298 = vpop.permute.xlu0 %297
      %s300 = sor.u32 256, 8
      %301 = vbcast.lane.b32.xlu0 %v295, %s300
      %v302 = vpop.permute.xlu0 %301
      %v303 = vlaneseq
      %v304 = vshrl.u32 %v303, 7
      %v305 = vsub.s32 2, %v304
      %v306 = vrot.slane %v278, %v305
      %308 = vbcast.lane.b32.xlu0 %v306, 256
      %v309 = vpop.permute.xlu0 %308
      %s311 = sor.u32 256, 8
      %312 = vbcast.lane.b32.xlu0 %v306, %s311
      %v313 = vpop.permute.xlu0 %312
      %v314 = vlaneseq
      %v315 = vshrl.u32 %v314, 7
      %v316 = vsub.s32 3, %v315
      %v317 = vrot.slane %v278, %v316
      %319 = vbcast.lane.b32.xlu0 %v317, 256
      %v320 = vpop.permute.xlu0 %319
      %s322 = sor.u32 256, 8
      %323 = vbcast.lane.b32.xlu0 %v317, %s322
      %v324 = vpop.permute.xlu0 %323
      %vm325 = vcmp.eq.s32.totalorder %v287, %v280
      %vm326 = vcmp.eq.s32.totalorder %v291, %v280
      %vm327 = vcmp.eq.s32.totalorder %v298, %v280
      %vm328 = vcmp.eq.s32.totalorder %v302, %v280
      %vm329 = vcmp.eq.s32.totalorder %v309, %v280
      %vm330 = vcmp.eq.s32.totalorder %v313, %v280
      %vm331 = vcmp.eq.s32.totalorder %v320, %v280
      %vm332 = vcmp.eq.s32.totalorder %v324, %v280
      %v333 = vsel %vm325, 1, 0
      %v334 = vsel %vm326, 1, 0
      %v335 = vsel %vm327, 1, 0
      %v336 = vsel %vm328, 1, 0
      %v337 = vsel %vm329, 1, 0
      %v338 = vsel %vm330, 1, 0
      %v339 = vsel %vm331, 1, 0
      %v340 = vsel %vm332, 1, 0
      %v341 = vcvt.s32.f32 %v333
      %v342 = vcvt.s32.f32 %v334
      %v343 = vcvt.s32.f32 %v335
      %v344 = vcvt.s32.f32 %v336
      %v345 = vcvt.s32.f32 %v337
      %v346 = vcvt.s32.f32 %v338
      %v347 = vcvt.s32.f32 %v339
      %v348 = vcvt.s32.f32 %v340
      %v349 = vpack.c.bf16 %v342, %v341
      %v350 = vpack.c.bf16 %v344, %v343
      %v351 = vpack.c.bf16 %v346, %v345
      %v352 = vpack.c.bf16 %v348, %v347
      %v355 = vunpack.c.l.b16 %v269
      %v356 = vunpack.c.l.b16 %v270
      %v357 = vpack.c.b16 %v356, %v355
      %vm359 = vcmask 130048
      %v361 = vsel %vm359, %v349, 0
      %v364 = vsel %vm359, %v350, 0
      %v367 = vsel %vm359, %v351, 0
      %v370 = vsel %vm359, %v352, 0
      %372 = vmatprep.subr.bf16.mxu0 0
      %373 = vmatpush1.bf16.msra.mxu0 %v357
      %374 = vmatprep.subr.bf16.mxu0 0
      %375 = vmatpush1.bf16.msra.mxu0 0
      %376 = vmatprep.subr.bf16.mxu0 0
      %377 = vmatpush1.bf16.msra.mxu0 0
      %378 = vmatprep.subr.bf16.mxu0 0
      %379 = vmatpush1.bf16.msra.mxu0 0
      %380 = vmatprep.subr.bf16.mxu0 0
      %381 = vmatpush1.bf16.msra.mxu0 0
      %382 = vmatprep.subr.bf16.mxu0 0
      %383 = vmatpush1.bf16.msra.mxu0 0
      %384 = vmatprep.subr.bf16.mxu0 0
      %385 = vmatpush1.bf16.msra.mxu0 0
      %386 = vmatprep.subr.bf16.mxu0 0
      %387 = vmatpush1.bf16.msra.mxu0 0
      %388 = vmatprep.subr.bf16.mxu0 0
      %389 = vmatpush1.bf16.msra.mxu0 0
      %390 = vmatprep.subr.bf16.mxu0 0
      %391 = vmatpush1.bf16.msra.mxu0 0
      %392 = vmatprep.subr.bf16.mxu0 0
      %393 = vmatpush1.bf16.msra.mxu0 0
      %394 = vmatprep.subr.bf16.mxu0 0
      %395 = vmatpush1.bf16.msra.mxu0 0
      %396 = vmatprep.subr.bf16.mxu0 0
      %397 = vmatpush1.bf16.msra.mxu0 0
      %398 = vmatprep.subr.bf16.mxu0 0
      %399 = vmatpush1.bf16.msra.mxu0 0
      %400 = vmatprep.subr.bf16.mxu0 0
      %401 = vmatpush1.bf16.msra.mxu0 0
      %402 = vmatprep.subr.bf16.mxu0 0
      %403 = vmatpush1.bf16.msra.mxu0 0
      %404 = vmatprep.mubr.bf16.mxu0 0
      %405 = vmatmul.mubr.bf16.gmra.mrb[0].mxu0 %v361
      %v406 = vpop.f32.mrb[0].mxu0
      %v407 = vadd.f32 0.0, %v406
      %v408 = vpop.f32.mrb[0].mxu0
      %v409 = vpop.f32.mrb[0].mxu0
      %v410 = vadd.f32 0.0, %v409
      %v411 = vpop.f32.mrb[0].mxu0
      %412 = vmatprep.mubr.bf16.mxu0 0
      %413 = vmatmul.mubr.bf16.gmra.mrb[0].mxu0 %v364
      %v414 = vpop.f32.mrb[0].mxu0
      %v415 = vadd.f32 0.0, %v414
      %v416 = vpop.f32.mrb[0].mxu0
      %v417 = vpop.f32.mrb[0].mxu0
      %v418 = vadd.f32 0.0, %v417
      %v419 = vpop.f32.mrb[0].mxu0
      %420 = vmatprep.mubr.bf16.mxu0 0
      %421 = vmatmul.mubr.bf16.gmra.mrb[0].mxu0 %v367
      %v422 = vpop.f32.mrb[0].mxu0
      %v423 = vadd.f32 0.0, %v422
      %v424 = vpop.f32.mrb[0].mxu0
      %v425 = vpop.f32.mrb[0].mxu0
      %v426 = vadd.f32 0.0, %v425
      %v427 = vpop.f32.mrb[0].mxu0
      %428 = vmatprep.mubr.bf16.mxu0 0
      %429 = vmatmul.mubr.bf16.gmra.mrb[0].mxu0 %v370
      %v430 = vpop.f32.mrb[0].mxu0
      %v431 = vadd.f32 0.0, %v430
      %v432 = vpop.f32.mrb[0].mxu0
      %v433 = vpop.f32.mrb[0].mxu0
      %v434 = vadd.f32 0.0, %v433
      %v435 = vpop.f32.mrb[0].mxu0
      %436 = vdwg.mxu0
      %v437 = vpack.c.bf16 %v410, %v407
      %v438 = vpack.c.bf16 %v418, %v415
      %v439 = vpack.c.bf16 %v426, %v423
      %v440 = vpack.c.bf16 %v434, %v431
      %v443 = vunpack.c.l.b16 %v276
      %v444 = vunpack.c.l.b16 %v277
      %v445 = vpack.c.b16 %v444, %v443
      %v447 = vsub.bf16 %v437, %v445
      %v448 = vsub.bf16 %v438, %v445
      %v449 = vsub.bf16 %v439, %v445
      %v450 = vsub.bf16 %v440, %v445
      %451 = vrot.lane.b32.xlu0 %v445, 64
      %v452 = vpop.permute.xlu0 %451
      %vm453 = vcmask 523264
      %v456 = vsel %vm453, %v447, %v452
      %v459 = vsel %vm453, %v448, %v452
      %v462 = vsel %vm453, %v449, %v452
      %v465 = vsel %vm453, %v450, %v452
      %v467 = vld [vmem:[%s2] sm:$0xf]
      %v468 = vld [vmem:[%s2 + $0x4] sm:$0xf]
      %v469 = vld [vmem:[%s2 + $0x8] sm:$0xf]
      %v470 = vld [vmem:[%s2 + $0xc] sm:$0xf]
      %v471 = vld [vmem:[%s2 + $0x10] sm:$0xf]
      %v472 = vld [vmem:[%s2 + $0x14] sm:$0xf]
      %v473 = vld [vmem:[%s2 + $0x18] sm:$0xf]
      %v474 = vld [vmem:[%s2 + $0x1c] sm:$0xf]
      %v475 = vld [vmem:[%s2 + $0x20] sm:$0xf]
      %v476 = vld [vmem:[%s2 + $0x24] sm:$0xf]
      %v477 = vld [vmem:[%s2 + $0x28] sm:$0xf]
      %v478 = vld [vmem:[%s2 + $0x2c] sm:$0xf]
      %v479 = vld [vmem:[%s2 + $0x30] sm:$0xf]
      %v480 = vld [vmem:[%s2 + $0x34] sm:$0xf]
      %v481 = vld [vmem:[%s2 + $0x38] sm:$0xf]
      %v482 = vld [vmem:[%s2 + $0x3c] sm:$0xf]
      %v499 = vunpack.c.l.b16 %v467
      %v500 = vunpack.c.l.b16 %v468
      %v501 = vunpack.c.l.b16 %v469
      %v502 = vunpack.c.l.b16 %v470
      %v503 = vunpack.c.l.b16 %v471
      %v504 = vunpack.c.l.b16 %v472
      %v505 = vunpack.c.l.b16 %v473
      %v506 = vunpack.c.l.b16 %v474
      %v507 = vunpack.c.l.b16 %v475
      %v508 = vunpack.c.l.b16 %v476
      %v509 = vunpack.c.l.b16 %v477
      %v510 = vunpack.c.l.b16 %v478
      %v511 = vunpack.c.l.b16 %v479
      %v512 = vunpack.c.l.b16 %v480
      %v513 = vunpack.c.l.b16 %v481
      %v514 = vunpack.c.l.b16 %v482
      %v515 = vpack.c.b16 %v500, %v499
      %v516 = vpack.c.b16 %v502, %v501
      %v517 = vpack.c.b16 %v504, %v503
      %v518 = vpack.c.b16 %v506, %v505
      %v519 = vpack.c.b16 %v508, %v507
      %v520 = vpack.c.b16 %v510, %v509
      %v521 = vpack.c.b16 %v512, %v511
      %v522 = vpack.c.b16 %v514, %v513
      %531 = vmatprep.subr.bf16.mxu0 0
      %532 = vmatpush1.bf16.msra.mxu0 %v515
      %533 = vmatprep.subr.bf16.mxu0 0
      %534 = vmatpush1.bf16.msra.mxu0 %v516
      %535 = vmatprep.subr.bf16.mxu0 0
      %536 = vmatpush1.bf16.msra.mxu0 %v517
      %537 = vmatprep.subr.bf16.mxu0 0
      %538 = vmatpush1.bf16.msra.mxu0 %v518
      %539 = vmatprep.subr.bf16.mxu0 0
      %540 = vmatpush1.bf16.msra.mxu0 %v519
      %541 = vmatprep.subr.bf16.mxu0 0
      %542 = vmatpush1.bf16.msra.mxu0 %v520
      %543 = vmatprep.subr.bf16.mxu0 0
      %544 = vmatpush1.bf16.msra.mxu0 %v521
      %545 = vmatprep.subr.bf16.mxu0 0
      %546 = vmatpush1.bf16.msra.mxu0 %v522
      %547 = vmatprep.subr.bf16.mxu0 0
      %548 = vmatpush1.bf16.msra.mxu0 0
      %549 = vmatprep.subr.bf16.mxu0 0
      %550 = vmatpush1.bf16.msra.mxu0 0
      %551 = vmatprep.subr.bf16.mxu0 0
      %552 = vmatpush1.bf16.msra.mxu0 0
      %553 = vmatprep.subr.bf16.mxu0 0
      %554 = vmatpush1.bf16.msra.mxu0 0
      %555 = vmatprep.subr.bf16.mxu0 0
      %556 = vmatpush1.bf16.msra.mxu0 0
      %557 = vmatprep.subr.bf16.mxu0 0
      %558 = vmatpush1.bf16.msra.mxu0 0
      %559 = vmatprep.subr.bf16.mxu0 0
      %560 = vmatpush1.bf16.msra.mxu0 0
      %561 = vmatprep.subr.bf16.mxu0 0
      %562 = vmatpush1.bf16.msra.mxu0 0
      %563 = vmatprep.mubr.bf16.mxu0 0
      %564 = vmatmul.mubr.bf16.gmra.mrb[0].mxu0 %v456
      %v565 = vpop.f32.mrb[0].mxu0
      %v566 = vadd.f32 0.0, %v565
      %v567 = vpop.f32.mrb[0].mxu0
      %v568 = vpop.f32.mrb[0].mxu0
      %v569 = vadd.f32 0.0, %v568
      %v570 = vpop.f32.mrb[0].mxu0
      %571 = vmatprep.mubr.bf16.mxu0 0
      %572 = vmatmul.mubr.bf16.gmra.mrb[0].mxu0 %v459
      %v573 = vpop.f32.mrb[0].mxu0
      %v574 = vadd.f32 0.0, %v573
      %v575 = vpop.f32.mrb[0].mxu0
      %v576 = vpop.f32.mrb[0].mxu0
      %v577 = vadd.f32 0.0, %v576
      %v578 = vpop.f32.mrb[0].mxu0
      %579 = vmatprep.mubr.bf16.mxu0 0
      %580 = vmatmul.mubr.bf16.gmra.mrb[0].mxu0 %v462
      %v581 = vpop.f32.mrb[0].mxu0
      %v582 = vadd.f32 0.0, %v581
      %v583 = vpop.f32.mrb[0].mxu0
      %v584 = vpop.f32.mrb[0].mxu0
      %v585 = vadd.f32 0.0, %v584
      %v586 = vpop.f32.mrb[0].mxu0
      %587 = vmatprep.mubr.bf16.mxu0 0
      %588 = vmatmul.mubr.bf16.gmra.mrb[0].mxu0 %v465
      %v589 = vpop.f32.mrb[0].mxu0
      %v590 = vadd.f32 0.0, %v589
      %v591 = vpop.f32.mrb[0].mxu0
      %v592 = vpop.f32.mrb[0].mxu0
      %v593 = vadd.f32 0.0, %v592
      %v594 = vpop.f32.mrb[0].mxu0
      %595 = vdwg.mxu0
      %v596 = vsel %vm453, %v566, 0.0
      %v597 = vsel %vm453, %v569, 0.0
      %v598 = vadd.f32 %v596, %v597
      %v599 = vsel %vm453, %v574, 0.0
      %v600 = vadd.f32 %v598, %v599
      %v601 = vsel %vm453, %v577, 0.0
      %v602 = vadd.f32 %v600, %v601
      %v603 = vsel %vm453, %v582, 0.0
      %v604 = vadd.f32 %v602, %v603
      %v605 = vsel %vm453, %v585, 0.0
      %v606 = vadd.f32 %v604, %v605
      %v607 = vsel %vm453, %v590, 0.0
      %v608 = vadd.f32 %v606, %v607
      %v609 = vsel %vm453, %v593, 0.0
      %v610 = vadd.f32 %v608, %v609
      %v611 = vrot.slane %v610, 4
      %v612 = vadd.f32 %v610, %v611
      %v613 = vrot.slane %v612, 2
      %v614 = vadd.f32 %v612, %v613
      %v615 = vrot.slane %v614, 1
      %v616 = vadd.f32 %v614, %v615
      %v617 = vmul.f32 %v566, %v566
      %v618 = vmul.f32 %v569, %v569
      %v619 = vmul.f32 %v574, %v574
      %v620 = vmul.f32 %v577, %v577
      %v621 = vmul.f32 %v582, %v582
      %v622 = vmul.f32 %v585, %v585
      %v623 = vmul.f32 %v590, %v590
      %v624 = vmul.f32 %v593, %v593
      %v625 = vsel %vm453, %v617, 0.0
      %v626 = vsel %vm453, %v618, 0.0
      %v627 = vadd.f32 %v625, %v626
      %v628 = vsel %vm453, %v619, 0.0
      %v629 = vadd.f32 %v627, %v628
      %v630 = vsel %vm453, %v620, 0.0
      %v631 = vadd.f32 %v629, %v630
      %v632 = vsel %vm453, %v621, 0.0
      %v633 = vadd.f32 %v631, %v632
      %v634 = vsel %vm453, %v622, 0.0
      %v635 = vadd.f32 %v633, %v634
      %v636 = vsel %vm453, %v623, 0.0
      %v637 = vadd.f32 %v635, %v636
      %v638 = vsel %vm453, %v624, 0.0
      %v639 = vadd.f32 %v637, %v638
      %v640 = vrot.slane %v639, 4
      %v641 = vadd.f32 %v639, %v640
      %v642 = vrot.slane %v641, 2
      %v643 = vadd.f32 %v641, %v642
      %v644 = vrot.slane %v643, 1
      %v645 = vadd.f32 %v643, %v644
      %vm646 = vcmask 1040384
      %v647 = vsel %vm646, %v616, %v645
      %vm648 = vcmask 517120
      %649 = vst.msk [vmem:[%s267] sm:$0x3] %vm648, %v647
      %v650 = vsel %vm453, %v566, -inf
      %v651 = vsel %vm453, %v574, -inf
      %v652 = vsel %vm453, %v582, -inf
      %v653 = vmax.f32 %v650, %v652
      %v654 = vsel %vm453, %v590, -inf
      %v655 = vmax.f32 %v651, %v654
      %v656 = vmax.f32 %v653, %v655
      %v657 = vsel %vm453, %v569, -inf
      %v658 = vsel %vm453, %v577, -inf
      %v659 = vsel %vm453, %v585, -inf
      %v660 = vmax.f32 %v657, %v659
      %v661 = vsel %vm453, %v593, -inf
      %v662 = vmax.f32 %v658, %v661
      %v663 = vmax.f32 %v660, %v662
      %664 = vst.msk [vmem:[%s259] sm:$0xff] %vm453, %v656
      %665 = vst.msk [vmem:[%s259 + $0x8] sm:$0xff] %vm453, %v663
      %s666 = smul.u32 2, %s21
      %p667 = scmp.lt.s32.totalorder %s20, 1
      %s668 = scalar_select %p667, %s20, 1
      %p669 = scmp.lt.s32.totalorder %s666, 1
      %s670 = scalar_select %p669, %s666, 1
      %s671 = smul.addr %s668, 2
      %s672 = sadd.s32 %s670, %s671
      %s673 = smul.addr %s672, 8
      %s674 = scalar_lea.vmem %s3, %s673
      %p675 = scmp.lt.s32.totalorder %s20, 1
      %s676 = scalar_select %p675, %s20, 1
      %p677 = scmp.lt.s32.totalorder %s21, 0
      %s678 = scalar_select %p677, %s21, 0
      %s679 = sadd.s32 %s678, %s676
      %s680 = smul.addr %s679, 2
      %s681 = scalar_lea.vmem %s4, %s680
      // Predicated region
      $region33: #{dgcnn_forward.18} parent=31 // pred_check
        %p682 = pneg %p123
      $region34: #{dgcnn_forward.18} parent=31 // pred_check_branch
        %684 = sbr.rel (%p682) target = $region36
      $region35: #{dgcnn_forward.18} parent=31 // pred_region
        %s685 = smul.u32 2, %s21
      $region36: #{dgcnn_forward.18} parent=31 // pred_fallthru
        _
      // Predicated region
      $region37: #{dgcnn_forward.18} parent=31 // pred_check
        %p686 = pneg %p151
      $region38: #{dgcnn_forward.18} parent=31 // pred_check_branch
        %688 = sbr.rel (%p686) target = $region40
      $region39: #{dgcnn_forward.18} parent=31 // pred_region
        _
      $region40: #{dgcnn_forward.18} parent=31 // pred_fallthru
        _
    $region32: #{dgcnn_forward.18} parent=5 // pred_fallthru
      _
    %p689 = scmp.le.s32.totalorder 2, %s11
    // Predicated region
    $region41: #{dgcnn_forward.18} parent=5 // pred_check
      %p690 = pneg %p689
    $region42: #{dgcnn_forward.18} parent=5 // pred_check_branch
      %692 = sbr.rel (%p690) target = $region44
    $region43: #{dgcnn_forward.18} parent=5 // pred_region
      %s693 = ssub.s32 %s11, 2
      // Predicated region
      $region45: #{dgcnn_forward.18} parent=43 // pred_check
        %p694 = pneg %p129
      $region46: #{dgcnn_forward.18} parent=43 // pred_check_branch
        %696 = sbr.rel (%p694) target = $region48
      $region47: #{dgcnn_forward.18} parent=43 // pred_region
        %s697 = smul.u32 2, %s23
        %p698 = scmp.lt.s32.totalorder %s22, 1
        %s699 = scalar_select %p698, %s22, 1
        %p700 = scmp.lt.s32.totalorder %s697, 1
        %s701 = scalar_select %p700, %s697, 1
        %s702 = smul.addr %s699, 2
        %s703 = sadd.s32 %s701, %s702
        %s704 = smul.addr %s703, 8
        %s705 = scalar_lea.vmem %s3, %s704
      $region48: #{dgcnn_forward.18} parent=43 // pred_fallthru
        _
      // Predicated region
      $region49: #{dgcnn_forward.18} parent=43 // pred_check
        %p706 = pneg %p157
      $region50: #{dgcnn_forward.18} parent=43 // pred_check_branch
        %708 = sbr.rel (%p706) target = $region52
      $region51: #{dgcnn_forward.18} parent=43 // pred_region
        %p709 = scmp.lt.s32.totalorder %s22, 1
        %s710 = scalar_select %p709, %s22, 1
        %p711 = scmp.lt.s32.totalorder %s23, 0
        %s712 = scalar_select %p711, %s23, 0
        %s713 = sadd.s32 %s712, %s710
        %s714 = smul.addr %s713, 2
        %s715 = scalar_lea.vmem %s4, %s714
      $region52: #{dgcnn_forward.18} parent=43 // pred_fallthru
        _
    $region44: #{dgcnn_forward.18} parent=5 // pred_fallthru
      _
  $region6: #{dgcnn_forward.18} parent=0 // loop_footer
    %s15 = sadd.s32 1, %s11
  $region7: #{dgcnn_forward.18} parent=0 // loop_footer_branch
    %10 = sbr.rel target = $region3
  $region8: #{dgcnn_forward.18} parent=0 // loop_exit
    _

// kernel: dgcnn_forward.21
$region0: #{dgcnn_forward.21}
  #allocation0 [shape = 'u32[]', space=smem, size = 0x4, offset = 0x4, fixed_abs, tag = 'smem constant byte address 0x4 - core index']
  #allocation1 [shape = 'u32[144,128]{1,0:T(1,128)}', space=vmem, size = 0x12000, scoped, tag = 'internal scratch']
  %s0 = inlined_call_operand.vmem [shape: bf16[2,16,64], index: 0, kind: input, shape index: {}]
  %s1 = inlined_call_operand.vmem [shape: s32[2,4,16], index: 1, kind: input, shape index: {}]
  %s2 = inlined_call_operand.vmem [shape: bf16[128,128], index: 2, kind: input, shape index: {}]
  %s3 = inlined_call_operand.vmem [shape: f32[2,16,128], index: 3, kind: output, shape index: {0}]
  %s4 = inlined_call_operand.vmem [shape: f32[2,1,2,128], index: 4, kind: output, shape index: {1}]
  %5 = xla_tuple %s3, %s4
  %s6 = sld [smem:[#allocation0]]
  $region53: #{dgcnn_forward.21} parent=0
    _
  %s8 = ssub.s32 1, %s6
  %s9 = scalar_select 0, %s8, %s6
  loop: start=0, step=1, limit=4
  $region2: #{dgcnn_forward.21} parent=0 // loop_pre_header
    _
  $region3: #{dgcnn_forward.21} parent=0 // loop_header
    %s11 = sphi 0, %s15
    %p12 = scmp.ge.s32.totalorder %s11, 4
    %s18 = sphi 0, %s30
    %s19 = sphi 0, %s26
    %s20 = sphi 0, %s18
    %s21 = sphi 0, %s19
    %s22 = sphi 0, %s20
    %s23 = sphi 0, %s21
    %s33 = sphi 0, %s35
    %s36 = sphi 0, %s33
    %s37 = sphi 0, %s36
    %s53 = sphi 0, %s37
    %s61 = sphi 0, %s63
    %s64 = sphi 0, %s61
    %s65 = sphi 0, %s64
    %s81 = sphi 0, %s65
    %s85 = sphi 0, %s85
    %s87 = sphi 0, %s85
    %s88 = sphi 0, %s87
    %s102 = sphi 0, %s88
    %s110 = sphi 0, %s112
    %s113 = sphi 0, %s110
    %s114 = sphi 0, %s113
    %s130 = sphi 0, %s114
    %s138 = sphi 0, %s140
    %s141 = sphi 0, %s138
    %s142 = sphi 0, %s141
    %s158 = sphi 0, %s142
  $region4: #{dgcnn_forward.21} parent=0 // loop_header_branch
    %14 = sbr.rel (%p12) target = $region8
  $region5: #{dgcnn_forward.21} parent=0 // loop_body
    %s16 = ssub.s32 %s11, 1
    %s17 = ssub.s32 %s11, 2
    %s24 = sadd.s32 1, %s19
    %p25 = scmp.ge.s32.totalorder %s24, 1
    %s26 = scalar_select %p25, 0, %s24
    %s27 = sadd.s32 1, %s18
    %s28 = scalar_select %p25, %s27, %s18
    %p29 = scmp.ge.s32.totalorder %s28, 2
    %s30 = scalar_select %p29, 0, %s28
    %s31 = ssub.s32 %s18, %s30
    %p32 = scmp.eq.s32.totalorder %s31, 0
    %s34 = sadd.s32 %s33, 1
    %s35 = scalar_select %p32, %s33, %s34
    %p38 = pneg %p32
    %p39 = scmp.eq.s32.totalorder %s11, 1
    %p40 = por %p38, %p39
    %p41 = scmp.ne.s32.totalorder %s33, %s36
    %p42 = scmp.eq.s32.totalorder %s11, 0
    %p43 = por %p41, %p42
    %p44 = scmp.ne.s32.totalorder %s33, %s36
    %p45 = scmp.eq.s32.totalorder %s16, 1
    %p46 = por %p44, %p45
    %p47 = scmp.ne.s32.totalorder %s36, %s37
    %p48 = scmp.eq.s32.totalorder %s16, 0
    %p49 = por %p47, %p48
    %p50 = scmp.ne.s32.totalorder %s36, %s37
    %p51 = scmp.eq.s32.totalorder %s17, 1
    %p52 = por %p50, %p51
    %p54 = scmp.ne.s32.totalorder %s37, %s53
    %p55 = scmp.eq.s32.totalorder %s17, 0
    %p56 = por %p54, %p55
    %s57 = ssub.s32 %s18, %s30
    %s58 = ssub.s32 %s19, %s26
    %s59 = sor.u32 %s57, %s58
    %p60 = scmp.eq.s32.totalorder %s59, 0
    %s62 = sadd.s32 %s61, 1
    %s63 = scalar_select %p60, %s61, %s62
    %p66 = pneg %p60
    %p67 = scmp.eq.s32.totalorder %s11, 1
    %p68 = por %p66, %p67
    %p69 = scmp.ne.s32.totalorder %s61, %s64
    %p70 = scmp.eq.s32.totalorder %s11, 0
    %p71 = por %p69, %p70
    %p72 = scmp.ne.s32.totalorder %s61, %s64
    %p73 = scmp.eq.s32.totalorder %s16, 1
    %p74 = por %p72, %p73
    %p75 = scmp.ne.s32.totalorder %s64, %s65
    %p76 = scmp.eq.s32.totalorder %s16, 0
    %p77 = por %p75, %p76
    %p78 = scmp.ne.s32.totalorder %s64, %s65
    %p79 = scmp.eq.s32.totalorder %s17, 1
    %p80 = por %p78, %p79
    %p82 = scmp.ne.s32.totalorder %s65, %s81
    %p83 = scmp.eq.s32.totalorder %s17, 0
    %p84 = por %p82, %p83
    %s86 = sadd.s32 %s85, 1
    %p89 = scmp.eq.s32.totalorder %s11, 1
    %p90 = scmp.ne.s32.totalorder %s85, %s87
    %p91 = scmp.eq.s32.totalorder %s11, 0
    %p92 = por %p90, %p91
    %p93 = scmp.ne.s32.totalorder %s85, %s87
    %p94 = scmp.eq.s32.totalorder %s16, 1
    %p95 = por %p93, %p94
    %p96 = scmp.ne.s32.totalorder %s87, %s88
    %p97 = scmp.eq.s32.totalorder %s16, 0
    %p98 = por %p96, %p97
    %p99 = scmp.ne.s32.totalorder %s87, %s88
    %p100 = scmp.eq.s32.totalorder %s17, 1
    %p101 = por %p99, %p100
    %p103 = scmp.ne.s32.totalorder %s88, %s102
    %p104 = scmp.eq.s32.totalorder %s17, 0
    %p105 = por %p103, %p104
    %s106 = ssub.s32 %s18, %s30
    %s107 = ssub.s32 %s19, %s26
    %s108 = sor.u32 %s106, %s107
    %p109 = scmp.eq.s32.totalorder %s108, 0
    %s111 = sadd.s32 %s110, 1
    %s112 = scalar_select %p109, %s110, %s111
    %p115 = pneg %p109
    %p116 = scmp.eq.s32.totalorder %s11, 1
    %p117 = por %p115, %p116
    %p118 = scmp.ne.s32.totalorder %s110, %s113
    %p119 = scmp.eq.s32.totalorder %s11, 0
    %p120 = por %p118, %p119
    %p121 = scmp.ne.s32.totalorder %s110, %s113
    %p122 = scmp.eq.s32.totalorder %s16, 1
    %p123 = por %p121, %p122
    %p124 = scmp.ne.s32.totalorder %s113, %s114
    %p125 = scmp.eq.s32.totalorder %s16, 0
    %p126 = por %p124, %p125
    %p127 = scmp.ne.s32.totalorder %s113, %s114
    %p128 = scmp.eq.s32.totalorder %s17, 1
    %p129 = por %p127, %p128
    %p131 = scmp.ne.s32.totalorder %s114, %s130
    %p132 = scmp.eq.s32.totalorder %s17, 0
    %p133 = por %p131, %p132
    %s134 = ssub.s32 %s18, %s30
    %s135 = ssub.s32 %s19, %s26
    %s136 = sor.u32 %s134, %s135
    %p137 = scmp.eq.s32.totalorder %s136, 0
    %s139 = sadd.s32 %s138, 1
    %s140 = scalar_select %p137, %s138, %s139
    %p143 = pneg %p137
    %p144 = scmp.eq.s32.totalorder %s11, 1
    %p145 = por %p143, %p144
    %p146 = scmp.ne.s32.totalorder %s138, %s141
    %p147 = scmp.eq.s32.totalorder %s11, 0
    %p148 = por %p146, %p147
    %p149 = scmp.ne.s32.totalorder %s138, %s141
    %p150 = scmp.eq.s32.totalorder %s16, 1
    %p151 = por %p149, %p150
    %p152 = scmp.ne.s32.totalorder %s141, %s142
    %p153 = scmp.eq.s32.totalorder %s16, 0
    %p154 = por %p152, %p153
    %p155 = scmp.ne.s32.totalorder %s141, %s142
    %p156 = scmp.eq.s32.totalorder %s17, 1
    %p157 = por %p155, %p156
    %p159 = scmp.ne.s32.totalorder %s142, %s158
    %p160 = scmp.eq.s32.totalorder %s17, 0
    %p161 = por %p159, %p160
    %p162 = scmp.le.s32.totalorder 1, %s11
    %p163 = scmp.lt.s32.totalorder %s11, 3
    %p164 = pnand %p162, %p163
    %p165 = pneg %p164
    // Predicated region
    $region9: #{dgcnn_forward.21} parent=5 // pred_check
      _
    $region10: #{dgcnn_forward.21} parent=5 // pred_check_branch
      %167 = sbr.rel (%p164) target = $region12
    $region11: #{dgcnn_forward.21} parent=5 // pred_region
      %s168 = ssub.s32 %s11, 1
      // Predicated region
      $region13: #{dgcnn_forward.21} parent=11 // pred_check
        %p169 = pneg %p98
      $region14: #{dgcnn_forward.21} parent=11 // pred_check_branch
        %171 = sbr.rel (%p169) target = $region16
      $region15: #{dgcnn_forward.21} parent=11 // pred_region
        _
      $region16: #{dgcnn_forward.21} parent=11 // pred_fallthru
        _
    $region12: #{dgcnn_forward.21} parent=5 // pred_fallthru
      _
    %p172 = scmp.lt.s32.totalorder %s11, 2
    // Predicated region
    $region17: #{dgcnn_forward.21} parent=5 // pred_check
      %p173 = pneg %p172
    $region18: #{dgcnn_forward.21} parent=5 // pred_check_branch
      %175 = sbr.rel (%p173) target = $region20
    $region19: #{dgcnn_forward.21} parent=5 // pred_region
      // Predicated region
      $region21: #{dgcnn_forward.21} parent=19 // pred_check
        %p176 = pneg %p43
      $region22: #{dgcnn_forward.21} parent=19 // pred_check_branch
        %178 = sbr.rel (%p176) target = $region24
      $region23: #{dgcnn_forward.21} parent=19 // pred_region
        %p179 = scmp.lt.s32.totalorder %s18, 1
        %s180 = scalar_select %p179, %s18, 1
        %s181 = smul.addr %s180, 2
        %s182 = smul.addr %s181, 4
        %s183 = scalar_lea.vmem %s0, %s182
      $region24: #{dgcnn_forward.21} parent=19 // pred_fallthru
        _
      // Predicated region
      $region25: #{dgcnn_forward.21} parent=19 // pred_check
        %p184 = pneg %p71
      $region26: #{dgcnn_forward.21} parent=19 // pred_check_branch
        %186 = sbr.rel (%p184) target = $region28
      $region27: #{dgcnn_forward.21} parent=19 // pred_region
        %p187 = scmp.lt.s32.totalorder %s18, 1
        %s188 = scalar_select %p187, %s18, 1
        %p189 = scmp.lt.s32.totalorder %s19, 0
        %s190 = scalar_select %p189, %s19, 0
        %s191 = sadd.s32 %s190, %s188
        %s192 = smul.addr %s191, 4
        %s193 = scalar_lea.vmem %s1, %s192
      $region28: #{dgcnn_forward.21} parent=19 // pred_fallthru
        _
    $region20: #{dgcnn_forward.21} parent=5 // pred_fallthru
      _
    %p194 = scmp.le.s32.totalorder 1, %s11
    %p195 = scmp.lt.s32.totalorder %s11, 3
    %p196 = pnand %p194, %p195
    %p197 = pneg %p196
    // Predicated region
    $region29: #{dgcnn_forward.21} parent=5 // pred_check
      _
    $region30: #{dgcnn_forward.21} parent=5 // pred_check_branch
      %199 = sbr.rel (%p196) target = $region32
    $region31: #{dgcnn_forward.21} parent=5 // pred_region
      %s200 = ssub.s32 %s11, 1
      %p201 = scmp.lt.s32.totalorder %s20, 1
      %s202 = scalar_select %p201, %s20, 1
      %s203 = smul.addr %s202, 2
      %s204 = smul.addr %s203, 4
      %s205 = scalar_lea.vmem %s0, %s204
      %p206 = pneg %p49
      %p207 = pneg %p46
      %p208 = scmp.lt.s32.totalorder %s20, 1
      %s209 = scalar_select %p208, %s20, 1
      %p210 = scmp.lt.s32.totalorder %s21, 0
      %s211 = scalar_select %p210, %s21, 0
      %s212 = sadd.s32 %s211, %s209
      %s213 = smul.addr %s212, 4
      %s214 = scalar_lea.vmem %s1, %s213
      %p215 = pneg %p77
      %p216 = pneg %p74
      %p217 = pneg %p98
      %p218 = pneg %p95
      %p219 = pneg %p126
      %p220 = pneg %p123
      %s221 = smul.u32 2, %s21
      %p222 = scmp.lt.s32.totalorder %s20, 1
      %s223 = scalar_select %p222, %s20, 1
      %p224 = scmp.lt.s32.totalorder %s221, 1
      %s225 = scalar_select %p224, %s221, 1
      %s226 = smul.addr %s223, 2
      %s227 = sadd.s32 %s225, %s226
      %s228 = smul.addr %s227, 8
      %s229 = scalar_lea.vmem %s3, %s228
      %p230 = pneg %p154
      %p231 = pneg %p151
      %p232 = scmp.lt.s32.totalorder %s20, 1
      %s233 = scalar_select %p232, %s20, 1
      %p234 = scmp.lt.s32.totalorder %s21, 0
      %s235 = scalar_select %p234, %s21, 0
      %s236 = sadd.s32 %s235, %s233
      %s237 = smul.addr %s236, 2
      %s238 = scalar_lea.vmem %s4, %s237
      %p239 = scmp.lt.s32.totalorder %s20, 1
      %s240 = scalar_select %p239, %s20, 1
      %s241 = smul.addr %s240, 2
      %s242 = smul.addr %s241, 4
      %s243 = scalar_lea.vmem %s0, %s242
      %p244 = scmp.lt.s32.totalorder %s20, 1
      %s245 = scalar_select %p244, %s20, 1
      %p246 = scmp.lt.s32.totalorder %s21, 0
      %s247 = scalar_select %p246, %s21, 0
      %s248 = sadd.s32 %s247, %s245
      %s249 = smul.addr %s248, 4
      %s250 = scalar_lea.vmem %s1, %s249
      %s251 = smul.u32 2, %s21
      %p252 = scmp.lt.s32.totalorder %s20, 1
      %s253 = scalar_select %p252, %s20, 1
      %p254 = scmp.lt.s32.totalorder %s251, 1
      %s255 = scalar_select %p254, %s251, 1
      %s256 = smul.addr %s253, 2
      %s257 = sadd.s32 %s255, %s256
      %s258 = smul.addr %s257, 8
      %s259 = scalar_lea.vmem %s3, %s258
      %s260 = smul.u32 2, %s21
      %p261 = scmp.lt.s32.totalorder %s20, 1
      %s262 = scalar_select %p261, %s20, 1
      %p263 = scmp.lt.s32.totalorder %s21, 0
      %s264 = scalar_select %p263, %s21, 0
      %s265 = sadd.s32 %s264, %s262
      %s266 = smul.addr %s265, 2
      %s267 = scalar_lea.vmem %s4, %s266
      %v269 = vld [vmem:[%s243] sm:$0xf]
      %v270 = vld [vmem:[%s243 + $0x4] sm:$0xf]
      %s271 = smul.u32 %s21, 16
      %s272 = sshra.s32 %s271, 3
      %s273 = sand.u32 %s271, 7
      %s274 = smul.addr %s272, 4
      %s275 = scalar_lea.vmem %s243, %s274
      %v276 = vld [vmem:[%s275] sm:$0xf]
      %v277 = vld [vmem:[%s275 + $0x4] sm:$0xf]
      %v278 = vld [vmem:[%s250] sm:$0xf]
      %v279 = vlaneseq
      %v280 = vand.u32 %v279, 127
      %v281 = vlaneseq
      %v282 = vshrl.u32 %v281, 7
      %v283 = vsub.s32 0, %v282
      %v284 = vrot.slane %v278, %v283
      %286 = vbcast.lane.b32.xlu0 %v284, 256
      %v287 = vpop.permute.xlu0 %286
      %s289 = sor.u32 256, 8
      %290 = vbcast.lane.b32.xlu0 %v284, %s289
      %v291 = vpop.permute.xlu0 %290
      %v292 = vlaneseq
      %v293 = vshrl.u32 %v292, 7
      %v294 = vsub.s32 1, %v293
      %v295 = vrot.slane %v278, %v294
      %297 = vbcast.lane.b32.xlu0 %v295, 256
      %v298 = vpop.permute.xlu0 %297
      %s300 = sor.u32 256, 8
      %301 = vbcast.lane.b32.xlu0 %v295, %s300
      %v302 = vpop.permute.xlu0 %301
      %v303 = vlaneseq
      %v304 = vshrl.u32 %v303, 7
      %v305 = vsub.s32 2, %v304
      %v306 = vrot.slane %v278, %v305
      %308 = vbcast.lane.b32.xlu0 %v306, 256
      %v309 = vpop.permute.xlu0 %308
      %s311 = sor.u32 256, 8
      %312 = vbcast.lane.b32.xlu0 %v306, %s311
      %v313 = vpop.permute.xlu0 %312
      %v314 = vlaneseq
      %v315 = vshrl.u32 %v314, 7
      %v316 = vsub.s32 3, %v315
      %v317 = vrot.slane %v278, %v316
      %319 = vbcast.lane.b32.xlu0 %v317, 256
      %v320 = vpop.permute.xlu0 %319
      %s322 = sor.u32 256, 8
      %323 = vbcast.lane.b32.xlu0 %v317, %s322
      %v324 = vpop.permute.xlu0 %323
      %vm325 = vcmp.eq.s32.totalorder %v287, %v280
      %vm326 = vcmp.eq.s32.totalorder %v291, %v280
      %vm327 = vcmp.eq.s32.totalorder %v298, %v280
      %vm328 = vcmp.eq.s32.totalorder %v302, %v280
      %vm329 = vcmp.eq.s32.totalorder %v309, %v280
      %vm330 = vcmp.eq.s32.totalorder %v313, %v280
      %vm331 = vcmp.eq.s32.totalorder %v320, %v280
      %vm332 = vcmp.eq.s32.totalorder %v324, %v280
      %v333 = vsel %vm325, 1, 0
      %v334 = vsel %vm326, 1, 0
      %v335 = vsel %vm327, 1, 0
      %v336 = vsel %vm328, 1, 0
      %v337 = vsel %vm329, 1, 0
      %v338 = vsel %vm330, 1, 0
      %v339 = vsel %vm331, 1, 0
      %v340 = vsel %vm332, 1, 0
      %v341 = vcvt.s32.f32 %v333
      %v342 = vcvt.s32.f32 %v334
      %v343 = vcvt.s32.f32 %v335
      %v344 = vcvt.s32.f32 %v336
      %v345 = vcvt.s32.f32 %v337
      %v346 = vcvt.s32.f32 %v338
      %v347 = vcvt.s32.f32 %v339
      %v348 = vcvt.s32.f32 %v340
      %v349 = vpack.c.bf16 %v342, %v341
      %v350 = vpack.c.bf16 %v344, %v343
      %v351 = vpack.c.bf16 %v346, %v345
      %v352 = vpack.c.bf16 %v348, %v347
      %v355 = vunpack.c.l.b16 %v269
      %v356 = vunpack.c.l.b16 %v270
      %v357 = vpack.c.b16 %v356, %v355
      %vm359 = vcmask 130048
      %v361 = vsel %vm359, %v349, 0
      %v364 = vsel %vm359, %v350, 0
      %v367 = vsel %vm359, %v351, 0
      %v370 = vsel %vm359, %v352, 0
      %372 = vmatprep.subr.bf16.mxu0 0
      %373 = vmatpush1.bf16.msra.mxu0 %v357
      %374 = vmatprep.subr.bf16.mxu0 0
      %375 = vmatpush1.bf16.msra.mxu0 0
      %376 = vmatprep.subr.bf16.mxu0 0
      %377 = vmatpush1.bf16.msra.mxu0 0
      %378 = vmatprep.subr.bf16.mxu0 0
      %379 = vmatpush1.bf16.msra.mxu0 0
      %380 = vmatprep.subr.bf16.mxu0 0
      %381 = vmatpush1.bf16.msra.mxu0 0
      %382 = vmatprep.subr.bf16.mxu0 0
      %383 = vmatpush1.bf16.msra.mxu0 0
      %384 = vmatprep.subr.bf16.mxu0 0
      %385 = vmatpush1.bf16.msra.mxu0 0
      %386 = vmatprep.subr.bf16.mxu0 0
      %387 = vmatpush1.bf16.msra.mxu0 0
      %388 = vmatprep.subr.bf16.mxu0 0
      %389 = vmatpush1.bf16.msra.mxu0 0
      %390 = vmatprep.subr.bf16.mxu0 0
      %391 = vmatpush1.bf16.msra.mxu0 0
      %392 = vmatprep.subr.bf16.mxu0 0
      %393 = vmatpush1.bf16.msra.mxu0 0
      %394 = vmatprep.subr.bf16.mxu0 0
      %395 = vmatpush1.bf16.msra.mxu0 0
      %396 = vmatprep.subr.bf16.mxu0 0
      %397 = vmatpush1.bf16.msra.mxu0 0
      %398 = vmatprep.subr.bf16.mxu0 0
      %399 = vmatpush1.bf16.msra.mxu0 0
      %400 = vmatprep.subr.bf16.mxu0 0
      %401 = vmatpush1.bf16.msra.mxu0 0
      %402 = vmatprep.subr.bf16.mxu0 0
      %403 = vmatpush1.bf16.msra.mxu0 0
      %404 = vmatprep.mubr.bf16.mxu0 0
      %405 = vmatmul.mubr.bf16.gmra.mrb[0].mxu0 %v361
      %v406 = vpop.f32.mrb[0].mxu0
      %v407 = vadd.f32 0.0, %v406
      %v408 = vpop.f32.mrb[0].mxu0
      %v409 = vpop.f32.mrb[0].mxu0
      %v410 = vadd.f32 0.0, %v409
      %v411 = vpop.f32.mrb[0].mxu0
      %412 = vmatprep.mubr.bf16.mxu0 0
      %413 = vmatmul.mubr.bf16.gmra.mrb[0].mxu0 %v364
      %v414 = vpop.f32.mrb[0].mxu0
      %v415 = vadd.f32 0.0, %v414
      %v416 = vpop.f32.mrb[0].mxu0
      %v417 = vpop.f32.mrb[0].mxu0
      %v418 = vadd.f32 0.0, %v417
      %v419 = vpop.f32.mrb[0].mxu0
      %420 = vmatprep.mubr.bf16.mxu0 0
      %421 = vmatmul.mubr.bf16.gmra.mrb[0].mxu0 %v367
      %v422 = vpop.f32.mrb[0].mxu0
      %v423 = vadd.f32 0.0, %v422
      %v424 = vpop.f32.mrb[0].mxu0
      %v425 = vpop.f32.mrb[0].mxu0
      %v426 = vadd.f32 0.0, %v425
      %v427 = vpop.f32.mrb[0].mxu0
      %428 = vmatprep.mubr.bf16.mxu0 0
      %429 = vmatmul.mubr.bf16.gmra.mrb[0].mxu0 %v370
      %v430 = vpop.f32.mrb[0].mxu0
      %v431 = vadd.f32 0.0, %v430
      %v432 = vpop.f32.mrb[0].mxu0
      %v433 = vpop.f32.mrb[0].mxu0
      %v434 = vadd.f32 0.0, %v433
      %v435 = vpop.f32.mrb[0].mxu0
      %436 = vdwg.mxu0
      %v437 = vpack.c.bf16 %v410, %v407
      %v438 = vpack.c.bf16 %v418, %v415
      %v439 = vpack.c.bf16 %v426, %v423
      %v440 = vpack.c.bf16 %v434, %v431
      %v443 = vunpack.c.l.b16 %v276
      %v444 = vunpack.c.l.b16 %v277
      %v445 = vpack.c.b16 %v444, %v443
      %v447 = vsub.bf16 %v437, %v445
      %v448 = vsub.bf16 %v438, %v445
      %v449 = vsub.bf16 %v439, %v445
      %v450 = vsub.bf16 %v440, %v445
      %451 = vrot.lane.b32.xlu0 %v445, 64
      %v452 = vpop.permute.xlu0 %451
      %vm453 = vcmask 523264
      %v456 = vsel %vm453, %v447, %v452
      %v459 = vsel %vm453, %v448, %v452
      %v462 = vsel %vm453, %v449, %v452
      %v465 = vsel %vm453, %v450, %v452
      %v467 = vld [vmem:[%s2] sm:$0xf]
      %v468 = vld [vmem:[%s2 + $0x4] sm:$0xf]
      %v469 = vld [vmem:[%s2 + $0x8] sm:$0xf]
      %v470 = vld [vmem:[%s2 + $0xc] sm:$0xf]
      %v471 = vld [vmem:[%s2 + $0x10] sm:$0xf]
      %v472 = vld [vmem:[%s2 + $0x14] sm:$0xf]
      %v473 = vld [vmem:[%s2 + $0x18] sm:$0xf]
      %v474 = vld [vmem:[%s2 + $0x1c] sm:$0xf]
      %v475 = vld [vmem:[%s2 + $0x20] sm:$0xf]
      %v476 = vld [vmem:[%s2 + $0x24] sm:$0xf]
      %v477 = vld [vmem:[%s2 + $0x28] sm:$0xf]
      %v478 = vld [vmem:[%s2 + $0x2c] sm:$0xf]
      %v479 = vld [vmem:[%s2 + $0x30] sm:$0xf]
      %v480 = vld [vmem:[%s2 + $0x34] sm:$0xf]
      %v481 = vld [vmem:[%s2 + $0x38] sm:$0xf]
      %v482 = vld [vmem:[%s2 + $0x3c] sm:$0xf]
      %v499 = vunpack.c.l.b16 %v467
      %v500 = vunpack.c.l.b16 %v468
      %v501 = vunpack.c.l.b16 %v469
      %v502 = vunpack.c.l.b16 %v470
      %v503 = vunpack.c.l.b16 %v471
      %v504 = vunpack.c.l.b16 %v472
      %v505 = vunpack.c.l.b16 %v473
      %v506 = vunpack.c.l.b16 %v474
      %v507 = vunpack.c.l.b16 %v475
      %v508 = vunpack.c.l.b16 %v476
      %v509 = vunpack.c.l.b16 %v477
      %v510 = vunpack.c.l.b16 %v478
      %v511 = vunpack.c.l.b16 %v479
      %v512 = vunpack.c.l.b16 %v480
      %v513 = vunpack.c.l.b16 %v481
      %v514 = vunpack.c.l.b16 %v482
      %v515 = vpack.c.b16 %v500, %v499
      %v516 = vpack.c.b16 %v502, %v501
      %v517 = vpack.c.b16 %v504, %v503
      %v518 = vpack.c.b16 %v506, %v505
      %v519 = vpack.c.b16 %v508, %v507
      %v520 = vpack.c.b16 %v510, %v509
      %v521 = vpack.c.b16 %v512, %v511
      %v522 = vpack.c.b16 %v514, %v513
      %531 = vmatprep.subr.bf16.mxu0 0
      %532 = vmatpush1.bf16.msra.mxu0 %v515
      %533 = vmatprep.subr.bf16.mxu0 0
      %534 = vmatpush1.bf16.msra.mxu0 %v516
      %535 = vmatprep.subr.bf16.mxu0 0
      %536 = vmatpush1.bf16.msra.mxu0 %v517
      %537 = vmatprep.subr.bf16.mxu0 0
      %538 = vmatpush1.bf16.msra.mxu0 %v518
      %539 = vmatprep.subr.bf16.mxu0 0
      %540 = vmatpush1.bf16.msra.mxu0 %v519
      %541 = vmatprep.subr.bf16.mxu0 0
      %542 = vmatpush1.bf16.msra.mxu0 %v520
      %543 = vmatprep.subr.bf16.mxu0 0
      %544 = vmatpush1.bf16.msra.mxu0 %v521
      %545 = vmatprep.subr.bf16.mxu0 0
      %546 = vmatpush1.bf16.msra.mxu0 %v522
      %547 = vmatprep.subr.bf16.mxu0 0
      %548 = vmatpush1.bf16.msra.mxu0 0
      %549 = vmatprep.subr.bf16.mxu0 0
      %550 = vmatpush1.bf16.msra.mxu0 0
      %551 = vmatprep.subr.bf16.mxu0 0
      %552 = vmatpush1.bf16.msra.mxu0 0
      %553 = vmatprep.subr.bf16.mxu0 0
      %554 = vmatpush1.bf16.msra.mxu0 0
      %555 = vmatprep.subr.bf16.mxu0 0
      %556 = vmatpush1.bf16.msra.mxu0 0
      %557 = vmatprep.subr.bf16.mxu0 0
      %558 = vmatpush1.bf16.msra.mxu0 0
      %559 = vmatprep.subr.bf16.mxu0 0
      %560 = vmatpush1.bf16.msra.mxu0 0
      %561 = vmatprep.subr.bf16.mxu0 0
      %562 = vmatpush1.bf16.msra.mxu0 0
      %563 = vmatprep.mubr.bf16.mxu0 0
      %564 = vmatmul.mubr.bf16.gmra.mrb[0].mxu0 %v456
      %v565 = vpop.f32.mrb[0].mxu0
      %v566 = vadd.f32 0.0, %v565
      %v567 = vpop.f32.mrb[0].mxu0
      %v568 = vpop.f32.mrb[0].mxu0
      %v569 = vadd.f32 0.0, %v568
      %v570 = vpop.f32.mrb[0].mxu0
      %571 = vmatprep.mubr.bf16.mxu0 0
      %572 = vmatmul.mubr.bf16.gmra.mrb[0].mxu0 %v459
      %v573 = vpop.f32.mrb[0].mxu0
      %v574 = vadd.f32 0.0, %v573
      %v575 = vpop.f32.mrb[0].mxu0
      %v576 = vpop.f32.mrb[0].mxu0
      %v577 = vadd.f32 0.0, %v576
      %v578 = vpop.f32.mrb[0].mxu0
      %579 = vmatprep.mubr.bf16.mxu0 0
      %580 = vmatmul.mubr.bf16.gmra.mrb[0].mxu0 %v462
      %v581 = vpop.f32.mrb[0].mxu0
      %v582 = vadd.f32 0.0, %v581
      %v583 = vpop.f32.mrb[0].mxu0
      %v584 = vpop.f32.mrb[0].mxu0
      %v585 = vadd.f32 0.0, %v584
      %v586 = vpop.f32.mrb[0].mxu0
      %587 = vmatprep.mubr.bf16.mxu0 0
      %588 = vmatmul.mubr.bf16.gmra.mrb[0].mxu0 %v465
      %v589 = vpop.f32.mrb[0].mxu0
      %v590 = vadd.f32 0.0, %v589
      %v591 = vpop.f32.mrb[0].mxu0
      %v592 = vpop.f32.mrb[0].mxu0
      %v593 = vadd.f32 0.0, %v592
      %v594 = vpop.f32.mrb[0].mxu0
      %595 = vdwg.mxu0
      %v596 = vadd.f32 %v566, %v569
      %v597 = vadd.f32 %v596, %v574
      %v598 = vadd.f32 %v597, %v577
      %v599 = vadd.f32 %v598, %v582
      %v600 = vadd.f32 %v599, %v585
      %v601 = vadd.f32 %v600, %v590
      %v602 = vadd.f32 %v601, %v593
      %v603 = vrot.slane %v602, 4
      %v604 = vadd.f32 %v602, %v603
      %v605 = vrot.slane %v604, 2
      %v606 = vadd.f32 %v604, %v605
      %v607 = vrot.slane %v606, 1
      %v608 = vadd.f32 %v606, %v607
      %v609 = vmul.f32 %v566, %v566
      %v610 = vmul.f32 %v569, %v569
      %v611 = vmul.f32 %v574, %v574
      %v612 = vmul.f32 %v577, %v577
      %v613 = vmul.f32 %v582, %v582
      %v614 = vmul.f32 %v585, %v585
      %v615 = vmul.f32 %v590, %v590
      %v616 = vmul.f32 %v593, %v593
      %v617 = vadd.f32 %v609, %v610
      %v618 = vadd.f32 %v617, %v611
      %v619 = vadd.f32 %v618, %v612
      %v620 = vadd.f32 %v619, %v613
      %v621 = vadd.f32 %v620, %v614
      %v622 = vadd.f32 %v621, %v615
      %v623 = vadd.f32 %v622, %v616
      %v624 = vrot.slane %v623, 4
      %v625 = vadd.f32 %v623, %v624
      %v626 = vrot.slane %v625, 2
      %v627 = vadd.f32 %v625, %v626
      %v628 = vrot.slane %v627, 1
      %v629 = vadd.f32 %v627, %v628
      %vm630 = vcmask 1040384
      %v631 = vsel %vm630, %v608, %v629
      %632 = vst [vmem:[%s267] sm:$0x3] %v631
      %v633 = vmax.f32 %v566, %v582
      %v634 = vmax.f32 %v574, %v590
      %v635 = vmax.f32 %v633, %v634
      %v636 = vmax.f32 %v569, %v585
      %v637 = vmax.f32 %v577, %v593
      %v638 = vmax.f32 %v636, %v637
      %639 = vst [vmem:[%s259] sm:$0xff] %v635
      %640 = vst [vmem:[%s259 + $0x8] sm:$0xff] %v638
      %s641 = smul.u32 2, %s21
      %p642 = scmp.lt.s32.totalorder %s20, 1
      %s643 = scalar_select %p642, %s20, 1
      %p644 = scmp.lt.s32.totalorder %s641, 1
      %s645 = scalar_select %p644, %s641, 1
      %s646 = smul.addr %s643, 2
      %s647 = sadd.s32 %s645, %s646
      %s648 = smul.addr %s647, 8
      %s649 = scalar_lea.vmem %s3, %s648
      %p650 = scmp.lt.s32.totalorder %s20, 1
      %s651 = scalar_select %p650, %s20, 1
      %p652 = scmp.lt.s32.totalorder %s21, 0
      %s653 = scalar_select %p652, %s21, 0
      %s654 = sadd.s32 %s653, %s651
      %s655 = smul.addr %s654, 2
      %s656 = scalar_lea.vmem %s4, %s655
      // Predicated region
      $region33: #{dgcnn_forward.21} parent=31 // pred_check
        %p657 = pneg %p123
      $region34: #{dgcnn_forward.21} parent=31 // pred_check_branch
        %659 = sbr.rel (%p657) target = $region36
      $region35: #{dgcnn_forward.21} parent=31 // pred_region
        %s660 = smul.u32 2, %s21
      $region36: #{dgcnn_forward.21} parent=31 // pred_fallthru
        _
      // Predicated region
      $region37: #{dgcnn_forward.21} parent=31 // pred_check
        %p661 = pneg %p151
      $region38: #{dgcnn_forward.21} parent=31 // pred_check_branch
        %663 = sbr.rel (%p661) target = $region40
      $region39: #{dgcnn_forward.21} parent=31 // pred_region
        _
      $region40: #{dgcnn_forward.21} parent=31 // pred_fallthru
        _
    $region32: #{dgcnn_forward.21} parent=5 // pred_fallthru
      _
    %p664 = scmp.le.s32.totalorder 2, %s11
    // Predicated region
    $region41: #{dgcnn_forward.21} parent=5 // pred_check
      %p665 = pneg %p664
    $region42: #{dgcnn_forward.21} parent=5 // pred_check_branch
      %667 = sbr.rel (%p665) target = $region44
    $region43: #{dgcnn_forward.21} parent=5 // pred_region
      %s668 = ssub.s32 %s11, 2
      // Predicated region
      $region45: #{dgcnn_forward.21} parent=43 // pred_check
        %p669 = pneg %p129
      $region46: #{dgcnn_forward.21} parent=43 // pred_check_branch
        %671 = sbr.rel (%p669) target = $region48
      $region47: #{dgcnn_forward.21} parent=43 // pred_region
        %s672 = smul.u32 2, %s23
        %p673 = scmp.lt.s32.totalorder %s22, 1
        %s674 = scalar_select %p673, %s22, 1
        %p675 = scmp.lt.s32.totalorder %s672, 1
        %s676 = scalar_select %p675, %s672, 1
        %s677 = smul.addr %s674, 2
        %s678 = sadd.s32 %s676, %s677
        %s679 = smul.addr %s678, 8
        %s680 = scalar_lea.vmem %s3, %s679
      $region48: #{dgcnn_forward.21} parent=43 // pred_fallthru
        _
      // Predicated region
      $region49: #{dgcnn_forward.21} parent=43 // pred_check
        %p681 = pneg %p157
      $region50: #{dgcnn_forward.21} parent=43 // pred_check_branch
        %683 = sbr.rel (%p681) target = $region52
      $region51: #{dgcnn_forward.21} parent=43 // pred_region
        %p684 = scmp.lt.s32.totalorder %s22, 1
        %s685 = scalar_select %p684, %s22, 1
        %p686 = scmp.lt.s32.totalorder %s23, 0
        %s687 = scalar_select %p686, %s23, 0
        %s688 = sadd.s32 %s687, %s685
        %s689 = smul.addr %s688, 2
        %s690 = scalar_lea.vmem %s4, %s689
      $region52: #{dgcnn_forward.21} parent=43 // pred_fallthru
        _
    $region44: #{dgcnn_forward.21} parent=5 // pred_fallthru
      _
  $region6: #{dgcnn_forward.21} parent=0 // loop_footer
    %s15 = sadd.s32 1, %s11
  $region7: #{dgcnn_forward.21} parent=0 // loop_footer_branch
    %10 = sbr.rel target = $region3
  $region8: #{dgcnn_forward.21} parent=0 // loop_exit
    _

// kernel: dgcnn_forward.24
$region0: #{dgcnn_forward.24}
  #allocation0 [shape = 'u32[]', space=smem, size = 0x4, offset = 0x4, fixed_abs, tag = 'smem constant byte address 0x4 - core index']
  #allocation1 [shape = 'u32[144,128]{1,0:T(1,128)}', space=vmem, size = 0x12000, scoped, tag = 'internal scratch']
  %s0 = inlined_call_operand.vmem [shape: bf16[2,16,128], index: 0, kind: input, shape index: {}]
  %s1 = inlined_call_operand.vmem [shape: s32[2,4,16], index: 1, kind: input, shape index: {}]
  %s2 = inlined_call_operand.vmem [shape: bf16[256,256], index: 2, kind: input, shape index: {}]
  %s3 = inlined_call_operand.vmem [shape: f32[2,16,256], index: 3, kind: output, shape index: {0}]
  %s4 = inlined_call_operand.vmem [shape: f32[2,1,2,256], index: 4, kind: output, shape index: {1}]
  %5 = xla_tuple %s3, %s4
  %s6 = sld [smem:[#allocation0]]
  $region53: #{dgcnn_forward.24} parent=0
    _
  %s8 = ssub.s32 1, %s6
  %s9 = scalar_select 0, %s8, %s6
  loop: start=0, step=1, limit=4
  $region2: #{dgcnn_forward.24} parent=0 // loop_pre_header
    _
  $region3: #{dgcnn_forward.24} parent=0 // loop_header
    %s11 = sphi 0, %s15
    %p12 = scmp.ge.s32.totalorder %s11, 4
    %s18 = sphi 0, %s30
    %s19 = sphi 0, %s26
    %s20 = sphi 0, %s18
    %s21 = sphi 0, %s19
    %s22 = sphi 0, %s20
    %s23 = sphi 0, %s21
    %s33 = sphi 0, %s35
    %s36 = sphi 0, %s33
    %s37 = sphi 0, %s36
    %s53 = sphi 0, %s37
    %s61 = sphi 0, %s63
    %s64 = sphi 0, %s61
    %s65 = sphi 0, %s64
    %s81 = sphi 0, %s65
    %s85 = sphi 0, %s85
    %s87 = sphi 0, %s85
    %s88 = sphi 0, %s87
    %s102 = sphi 0, %s88
    %s110 = sphi 0, %s112
    %s113 = sphi 0, %s110
    %s114 = sphi 0, %s113
    %s130 = sphi 0, %s114
    %s138 = sphi 0, %s140
    %s141 = sphi 0, %s138
    %s142 = sphi 0, %s141
    %s158 = sphi 0, %s142
  $region4: #{dgcnn_forward.24} parent=0 // loop_header_branch
    %14 = sbr.rel (%p12) target = $region8
  $region5: #{dgcnn_forward.24} parent=0 // loop_body
    %s16 = ssub.s32 %s11, 1
    %s17 = ssub.s32 %s11, 2
    %s24 = sadd.s32 1, %s19
    %p25 = scmp.ge.s32.totalorder %s24, 1
    %s26 = scalar_select %p25, 0, %s24
    %s27 = sadd.s32 1, %s18
    %s28 = scalar_select %p25, %s27, %s18
    %p29 = scmp.ge.s32.totalorder %s28, 2
    %s30 = scalar_select %p29, 0, %s28
    %s31 = ssub.s32 %s18, %s30
    %p32 = scmp.eq.s32.totalorder %s31, 0
    %s34 = sadd.s32 %s33, 1
    %s35 = scalar_select %p32, %s33, %s34
    %p38 = pneg %p32
    %p39 = scmp.eq.s32.totalorder %s11, 1
    %p40 = por %p38, %p39
    %p41 = scmp.ne.s32.totalorder %s33, %s36
    %p42 = scmp.eq.s32.totalorder %s11, 0
    %p43 = por %p41, %p42
    %p44 = scmp.ne.s32.totalorder %s33, %s36
    %p45 = scmp.eq.s32.totalorder %s16, 1
    %p46 = por %p44, %p45
    %p47 = scmp.ne.s32.totalorder %s36, %s37
    %p48 = scmp.eq.s32.totalorder %s16, 0
    %p49 = por %p47, %p48
    %p50 = scmp.ne.s32.totalorder %s36, %s37
    %p51 = scmp.eq.s32.totalorder %s17, 1
    %p52 = por %p50, %p51
    %p54 = scmp.ne.s32.totalorder %s37, %s53
    %p55 = scmp.eq.s32.totalorder %s17, 0
    %p56 = por %p54, %p55
    %s57 = ssub.s32 %s18, %s30
    %s58 = ssub.s32 %s19, %s26
    %s59 = sor.u32 %s57, %s58
    %p60 = scmp.eq.s32.totalorder %s59, 0
    %s62 = sadd.s32 %s61, 1
    %s63 = scalar_select %p60, %s61, %s62
    %p66 = pneg %p60
    %p67 = scmp.eq.s32.totalorder %s11, 1
    %p68 = por %p66, %p67
    %p69 = scmp.ne.s32.totalorder %s61, %s64
    %p70 = scmp.eq.s32.totalorder %s11, 0
    %p71 = por %p69, %p70
    %p72 = scmp.ne.s32.totalorder %s61, %s64
    %p73 = scmp.eq.s32.totalorder %s16, 1
    %p74 = por %p72, %p73
    %p75 = scmp.ne.s32.totalorder %s64, %s65
    %p76 = scmp.eq.s32.totalorder %s16, 0
    %p77 = por %p75, %p76
    %p78 = scmp.ne.s32.totalorder %s64, %s65
    %p79 = scmp.eq.s32.totalorder %s17, 1
    %p80 = por %p78, %p79
    %p82 = scmp.ne.s32.totalorder %s65, %s81
    %p83 = scmp.eq.s32.totalorder %s17, 0
    %p84 = por %p82, %p83
    %s86 = sadd.s32 %s85, 1
    %p89 = scmp.eq.s32.totalorder %s11, 1
    %p90 = scmp.ne.s32.totalorder %s85, %s87
    %p91 = scmp.eq.s32.totalorder %s11, 0
    %p92 = por %p90, %p91
    %p93 = scmp.ne.s32.totalorder %s85, %s87
    %p94 = scmp.eq.s32.totalorder %s16, 1
    %p95 = por %p93, %p94
    %p96 = scmp.ne.s32.totalorder %s87, %s88
    %p97 = scmp.eq.s32.totalorder %s16, 0
    %p98 = por %p96, %p97
    %p99 = scmp.ne.s32.totalorder %s87, %s88
    %p100 = scmp.eq.s32.totalorder %s17, 1
    %p101 = por %p99, %p100
    %p103 = scmp.ne.s32.totalorder %s88, %s102
    %p104 = scmp.eq.s32.totalorder %s17, 0
    %p105 = por %p103, %p104
    %s106 = ssub.s32 %s18, %s30
    %s107 = ssub.s32 %s19, %s26
    %s108 = sor.u32 %s106, %s107
    %p109 = scmp.eq.s32.totalorder %s108, 0
    %s111 = sadd.s32 %s110, 1
    %s112 = scalar_select %p109, %s110, %s111
    %p115 = pneg %p109
    %p116 = scmp.eq.s32.totalorder %s11, 1
    %p117 = por %p115, %p116
    %p118 = scmp.ne.s32.totalorder %s110, %s113
    %p119 = scmp.eq.s32.totalorder %s11, 0
    %p120 = por %p118, %p119
    %p121 = scmp.ne.s32.totalorder %s110, %s113
    %p122 = scmp.eq.s32.totalorder %s16, 1
    %p123 = por %p121, %p122
    %p124 = scmp.ne.s32.totalorder %s113, %s114
    %p125 = scmp.eq.s32.totalorder %s16, 0
    %p126 = por %p124, %p125
    %p127 = scmp.ne.s32.totalorder %s113, %s114
    %p128 = scmp.eq.s32.totalorder %s17, 1
    %p129 = por %p127, %p128
    %p131 = scmp.ne.s32.totalorder %s114, %s130
    %p132 = scmp.eq.s32.totalorder %s17, 0
    %p133 = por %p131, %p132
    %s134 = ssub.s32 %s18, %s30
    %s135 = ssub.s32 %s19, %s26
    %s136 = sor.u32 %s134, %s135
    %p137 = scmp.eq.s32.totalorder %s136, 0
    %s139 = sadd.s32 %s138, 1
    %s140 = scalar_select %p137, %s138, %s139
    %p143 = pneg %p137
    %p144 = scmp.eq.s32.totalorder %s11, 1
    %p145 = por %p143, %p144
    %p146 = scmp.ne.s32.totalorder %s138, %s141
    %p147 = scmp.eq.s32.totalorder %s11, 0
    %p148 = por %p146, %p147
    %p149 = scmp.ne.s32.totalorder %s138, %s141
    %p150 = scmp.eq.s32.totalorder %s16, 1
    %p151 = por %p149, %p150
    %p152 = scmp.ne.s32.totalorder %s141, %s142
    %p153 = scmp.eq.s32.totalorder %s16, 0
    %p154 = por %p152, %p153
    %p155 = scmp.ne.s32.totalorder %s141, %s142
    %p156 = scmp.eq.s32.totalorder %s17, 1
    %p157 = por %p155, %p156
    %p159 = scmp.ne.s32.totalorder %s142, %s158
    %p160 = scmp.eq.s32.totalorder %s17, 0
    %p161 = por %p159, %p160
    %p162 = scmp.le.s32.totalorder 1, %s11
    %p163 = scmp.lt.s32.totalorder %s11, 3
    %p164 = pnand %p162, %p163
    %p165 = pneg %p164
    // Predicated region
    $region9: #{dgcnn_forward.24} parent=5 // pred_check
      _
    $region10: #{dgcnn_forward.24} parent=5 // pred_check_branch
      %167 = sbr.rel (%p164) target = $region12
    $region11: #{dgcnn_forward.24} parent=5 // pred_region
      %s168 = ssub.s32 %s11, 1
      // Predicated region
      $region13: #{dgcnn_forward.24} parent=11 // pred_check
        %p169 = pneg %p98
      $region14: #{dgcnn_forward.24} parent=11 // pred_check_branch
        %171 = sbr.rel (%p169) target = $region16
      $region15: #{dgcnn_forward.24} parent=11 // pred_region
        _
      $region16: #{dgcnn_forward.24} parent=11 // pred_fallthru
        _
    $region12: #{dgcnn_forward.24} parent=5 // pred_fallthru
      _
    %p172 = scmp.lt.s32.totalorder %s11, 2
    // Predicated region
    $region17: #{dgcnn_forward.24} parent=5 // pred_check
      %p173 = pneg %p172
    $region18: #{dgcnn_forward.24} parent=5 // pred_check_branch
      %175 = sbr.rel (%p173) target = $region20
    $region19: #{dgcnn_forward.24} parent=5 // pred_region
      // Predicated region
      $region21: #{dgcnn_forward.24} parent=19 // pred_check
        %p176 = pneg %p43
      $region22: #{dgcnn_forward.24} parent=19 // pred_check_branch
        %178 = sbr.rel (%p176) target = $region24
      $region23: #{dgcnn_forward.24} parent=19 // pred_region
        %p179 = scmp.lt.s32.totalorder %s18, 1
        %s180 = scalar_select %p179, %s18, 1
        %s181 = smul.addr %s180, 2
        %s182 = smul.addr %s181, 4
        %s183 = scalar_lea.vmem %s0, %s182
      $region24: #{dgcnn_forward.24} parent=19 // pred_fallthru
        _
      // Predicated region
      $region25: #{dgcnn_forward.24} parent=19 // pred_check
        %p184 = pneg %p71
      $region26: #{dgcnn_forward.24} parent=19 // pred_check_branch
        %186 = sbr.rel (%p184) target = $region28
      $region27: #{dgcnn_forward.24} parent=19 // pred_region
        %p187 = scmp.lt.s32.totalorder %s18, 1
        %s188 = scalar_select %p187, %s18, 1
        %p189 = scmp.lt.s32.totalorder %s19, 0
        %s190 = scalar_select %p189, %s19, 0
        %s191 = sadd.s32 %s190, %s188
        %s192 = smul.addr %s191, 4
        %s193 = scalar_lea.vmem %s1, %s192
      $region28: #{dgcnn_forward.24} parent=19 // pred_fallthru
        _
    $region20: #{dgcnn_forward.24} parent=5 // pred_fallthru
      _
    %p194 = scmp.le.s32.totalorder 1, %s11
    %p195 = scmp.lt.s32.totalorder %s11, 3
    %p196 = pnand %p194, %p195
    %p197 = pneg %p196
    // Predicated region
    $region29: #{dgcnn_forward.24} parent=5 // pred_check
      _
    $region30: #{dgcnn_forward.24} parent=5 // pred_check_branch
      %199 = sbr.rel (%p196) target = $region32
    $region31: #{dgcnn_forward.24} parent=5 // pred_region
      %s200 = ssub.s32 %s11, 1
      %p201 = scmp.lt.s32.totalorder %s20, 1
      %s202 = scalar_select %p201, %s20, 1
      %s203 = smul.addr %s202, 2
      %s204 = smul.addr %s203, 4
      %s205 = scalar_lea.vmem %s0, %s204
      %p206 = pneg %p49
      %p207 = pneg %p46
      %p208 = scmp.lt.s32.totalorder %s20, 1
      %s209 = scalar_select %p208, %s20, 1
      %p210 = scmp.lt.s32.totalorder %s21, 0
      %s211 = scalar_select %p210, %s21, 0
      %s212 = sadd.s32 %s211, %s209
      %s213 = smul.addr %s212, 4
      %s214 = scalar_lea.vmem %s1, %s213
      %p215 = pneg %p77
      %p216 = pneg %p74
      %p217 = pneg %p98
      %p218 = pneg %p95
      %p219 = pneg %p126
      %p220 = pneg %p123
      %s221 = smul.u32 2, %s21
      %p222 = scmp.lt.s32.totalorder %s20, 1
      %s223 = scalar_select %p222, %s20, 1
      %p224 = scmp.lt.s32.totalorder %s221, 1
      %s225 = scalar_select %p224, %s221, 1
      %s226 = smul.addr %s225, 2
      %s227 = smul.addr %s223, 4
      %s228 = sadd.s32 %s226, %s227
      %s229 = smul.addr %s228, 8
      %s230 = scalar_lea.vmem %s3, %s229
      %p231 = pneg %p154
      %p232 = pneg %p151
      %p233 = scmp.lt.s32.totalorder %s20, 1
      %s234 = scalar_select %p233, %s20, 1
      %p235 = scmp.lt.s32.totalorder %s21, 0
      %s236 = scalar_select %p235, %s21, 0
      %s237 = smul.addr %s236, 2
      %s238 = smul.addr %s234, 2
      %s239 = sadd.s32 %s237, %s238
      %s240 = smul.addr %s239, 2
      %s241 = scalar_lea.vmem %s4, %s240
      %p242 = scmp.lt.s32.totalorder %s20, 1
      %s243 = scalar_select %p242, %s20, 1
      %s244 = smul.addr %s243, 2
      %s245 = smul.addr %s244, 4
      %s246 = scalar_lea.vmem %s0, %s245
      %p247 = scmp.lt.s32.totalorder %s20, 1
      %s248 = scalar_select %p247, %s20, 1
      %p249 = scmp.lt.s32.totalorder %s21, 0
      %s250 = scalar_select %p249, %s21, 0
      %s251 = sadd.s32 %s250, %s248
      %s252 = smul.addr %s251, 4
      %s253 = scalar_lea.vmem %s1, %s252
      %s254 = smul.u32 2, %s21
      %p255 = scmp.lt.s32.totalorder %s20, 1
      %s256 = scalar_select %p255, %s20, 1
      %p257 = scmp.lt.s32.totalorder %s254, 1
      %s258 = scalar_select %p257, %s254, 1
      %s259 = smul.addr %s258, 2
      %s260 = smul.addr %s256, 4
      %s261 = sadd.s32 %s259, %s260
      %s262 = smul.addr %s261, 8
      %s263 = scalar_lea.vmem %s3, %s262
      %s264 = smul.u32 2, %s21
      %p265 = scmp.lt.s32.totalorder %s20, 1
      %s266 = scalar_select %p265, %s20, 1
      %p267 = scmp.lt.s32.totalorder %s21, 0
      %s268 = scalar_select %p267, %s21, 0
      %s269 = smul.addr %s268, 2
      %s270 = smul.addr %s266, 2
      %s271 = sadd.s32 %s269, %s270
      %s272 = smul.addr %s271, 2
      %s273 = scalar_lea.vmem %s4, %s272
      %v275 = vld [vmem:[%s246] sm:$0xf]
      %v276 = vld [vmem:[%s246 + $0x4] sm:$0xf]
      %s277 = smul.u32 %s21, 16
      %s278 = sshra.s32 %s277, 3
      %s279 = sand.u32 %s277, 7
      %s280 = smul.addr %s278, 4
      %s281 = scalar_lea.vmem %s246, %s280
      %v282 = vld [vmem:[%s281] sm:$0xf]
      %v283 = vld [vmem:[%s281 + $0x4] sm:$0xf]
      %v284 = vld [vmem:[%s253] sm:$0xf]
      %v285 = vlaneseq
      %v286 = vand.u32 %v285, 127
      %v287 = vlaneseq
      %v288 = vshrl.u32 %v287, 7
      %v289 = vsub.s32 0, %v288
      %v290 = vrot.slane %v284, %v289
      %292 = vbcast.lane.b32.xlu0 %v290, 256
      %v293 = vpop.permute.xlu0 %292
      %s295 = sor.u32 256, 8
      %296 = vbcast.lane.b32.xlu0 %v290, %s295
      %v297 = vpop.permute.xlu0 %296
      %v298 = vlaneseq
      %v299 = vshrl.u32 %v298, 7
      %v300 = vsub.s32 1, %v299
      %v301 = vrot.slane %v284, %v300
      %303 = vbcast.lane.b32.xlu0 %v301, 256
      %v304 = vpop.permute.xlu0 %303
      %s306 = sor.u32 256, 8
      %307 = vbcast.lane.b32.xlu0 %v301, %s306
      %v308 = vpop.permute.xlu0 %307
      %v309 = vlaneseq
      %v310 = vshrl.u32 %v309, 7
      %v311 = vsub.s32 2, %v310
      %v312 = vrot.slane %v284, %v311
      %314 = vbcast.lane.b32.xlu0 %v312, 256
      %v315 = vpop.permute.xlu0 %314
      %s317 = sor.u32 256, 8
      %318 = vbcast.lane.b32.xlu0 %v312, %s317
      %v319 = vpop.permute.xlu0 %318
      %v320 = vlaneseq
      %v321 = vshrl.u32 %v320, 7
      %v322 = vsub.s32 3, %v321
      %v323 = vrot.slane %v284, %v322
      %325 = vbcast.lane.b32.xlu0 %v323, 256
      %v326 = vpop.permute.xlu0 %325
      %s328 = sor.u32 256, 8
      %329 = vbcast.lane.b32.xlu0 %v323, %s328
      %v330 = vpop.permute.xlu0 %329
      %vm331 = vcmp.eq.s32.totalorder %v293, %v286
      %vm332 = vcmp.eq.s32.totalorder %v297, %v286
      %vm333 = vcmp.eq.s32.totalorder %v304, %v286
      %vm334 = vcmp.eq.s32.totalorder %v308, %v286
      %vm335 = vcmp.eq.s32.totalorder %v315, %v286
      %vm336 = vcmp.eq.s32.totalorder %v319, %v286
      %vm337 = vcmp.eq.s32.totalorder %v326, %v286
      %vm338 = vcmp.eq.s32.totalorder %v330, %v286
      %v339 = vsel %vm331, 1, 0
      %v340 = vsel %vm332, 1, 0
      %v341 = vsel %vm333, 1, 0
      %v342 = vsel %vm334, 1, 0
      %v343 = vsel %vm335, 1, 0
      %v344 = vsel %vm336, 1, 0
      %v345 = vsel %vm337, 1, 0
      %v346 = vsel %vm338, 1, 0
      %v347 = vcvt.s32.f32 %v339
      %v348 = vcvt.s32.f32 %v340
      %v349 = vcvt.s32.f32 %v341
      %v350 = vcvt.s32.f32 %v342
      %v351 = vcvt.s32.f32 %v343
      %v352 = vcvt.s32.f32 %v344
      %v353 = vcvt.s32.f32 %v345
      %v354 = vcvt.s32.f32 %v346
      %v355 = vpack.c.bf16 %v348, %v347
      %v356 = vpack.c.bf16 %v350, %v349
      %v357 = vpack.c.bf16 %v352, %v351
      %v358 = vpack.c.bf16 %v354, %v353
      %v361 = vunpack.c.l.b16 %v275
      %v362 = vunpack.c.l.b16 %v276
      %v363 = vpack.c.b16 %v362, %v361
      %vm365 = vcmask 130048
      %v367 = vsel %vm365, %v355, 0
      %v370 = vsel %vm365, %v356, 0
      %v373 = vsel %vm365, %v357, 0
      %v376 = vsel %vm365, %v358, 0
      %378 = vmatprep.subr.bf16.mxu0 0
      %379 = vmatpush1.bf16.msra.mxu0 %v363
      %380 = vmatprep.subr.bf16.mxu0 0
      %381 = vmatpush1.bf16.msra.mxu0 0
      %382 = vmatprep.subr.bf16.mxu0 0
      %383 = vmatpush1.bf16.msra.mxu0 0
      %384 = vmatprep.subr.bf16.mxu0 0
      %385 = vmatpush1.bf16.msra.mxu0 0
      %386 = vmatprep.subr.bf16.mxu0 0
      %387 = vmatpush1.bf16.msra.mxu0 0
      %388 = vmatprep.subr.bf16.mxu0 0
      %389 = vmatpush1.bf16.msra.mxu0 0
      %390 = vmatprep.subr.bf16.mxu0 0
      %391 = vmatpush1.bf16.msra.mxu0 0
      %392 = vmatprep.subr.bf16.mxu0 0
      %393 = vmatpush1.bf16.msra.mxu0 0
      %394 = vmatprep.subr.bf16.mxu0 0
      %395 = vmatpush1.bf16.msra.mxu0 0
      %396 = vmatprep.subr.bf16.mxu0 0
      %397 = vmatpush1.bf16.msra.mxu0 0
      %398 = vmatprep.subr.bf16.mxu0 0
      %399 = vmatpush1.bf16.msra.mxu0 0
      %400 = vmatprep.subr.bf16.mxu0 0
      %401 = vmatpush1.bf16.msra.mxu0 0
      %402 = vmatprep.subr.bf16.mxu0 0
      %403 = vmatpush1.bf16.msra.mxu0 0
      %404 = vmatprep.subr.bf16.mxu0 0
      %405 = vmatpush1.bf16.msra.mxu0 0
      %406 = vmatprep.subr.bf16.mxu0 0
      %407 = vmatpush1.bf16.msra.mxu0 0
      %408 = vmatprep.subr.bf16.mxu0 0
      %409 = vmatpush1.bf16.msra.mxu0 0
      %410 = vmatprep.mubr.bf16.mxu0 0
      %411 = vmatmul.mubr.bf16.gmra.mrb[0].mxu0 %v367
      %v412 = vpop.f32.mrb[0].mxu0
      %v413 = vadd.f32 0.0, %v412
      %v414 = vpop.f32.mrb[0].mxu0
      %v415 = vpop.f32.mrb[0].mxu0
      %v416 = vadd.f32 0.0, %v415
      %v417 = vpop.f32.mrb[0].mxu0
      %418 = vmatprep.mubr.bf16.mxu0 0
      %419 = vmatmul.mubr.bf16.gmra.mrb[0].mxu0 %v370
      %v420 = vpop.f32.mrb[0].mxu0
      %v421 = vadd.f32 0.0, %v420
      %v422 = vpop.f32.mrb[0].mxu0
      %v423 = vpop.f32.mrb[0].mxu0
      %v424 = vadd.f32 0.0, %v423
      %v425 = vpop.f32.mrb[0].mxu0
      %426 = vmatprep.mubr.bf16.mxu0 0
      %427 = vmatmul.mubr.bf16.gmra.mrb[0].mxu0 %v373
      %v428 = vpop.f32.mrb[0].mxu0
      %v429 = vadd.f32 0.0, %v428
      %v430 = vpop.f32.mrb[0].mxu0
      %v431 = vpop.f32.mrb[0].mxu0
      %v432 = vadd.f32 0.0, %v431
      %v433 = vpop.f32.mrb[0].mxu0
      %434 = vmatprep.mubr.bf16.mxu0 0
      %435 = vmatmul.mubr.bf16.gmra.mrb[0].mxu0 %v376
      %v436 = vpop.f32.mrb[0].mxu0
      %v437 = vadd.f32 0.0, %v436
      %v438 = vpop.f32.mrb[0].mxu0
      %v439 = vpop.f32.mrb[0].mxu0
      %v440 = vadd.f32 0.0, %v439
      %v441 = vpop.f32.mrb[0].mxu0
      %442 = vdwg.mxu0
      %v443 = vpack.c.bf16 %v416, %v413
      %v444 = vpack.c.bf16 %v424, %v421
      %v445 = vpack.c.bf16 %v432, %v429
      %v446 = vpack.c.bf16 %v440, %v437
      %v449 = vunpack.c.l.b16 %v282
      %v450 = vunpack.c.l.b16 %v283
      %v451 = vpack.c.b16 %v450, %v449
      %v453 = vsub.bf16 %v443, %v451
      %v454 = vsub.bf16 %v444, %v451
      %v455 = vsub.bf16 %v445, %v451
      %v456 = vsub.bf16 %v446, %v451
      %v457 = vld [vmem:[%s2] sm:$0xff]
      %v458 = vld [vmem:[%s2 + $0x8] sm:$0xff]
      %v459 = vld [vmem:[%s2 + $0x10] sm:$0xff]
      %v460 = vld [vmem:[%s2 + $0x18] sm:$0xff]
      %v461 = vld [vmem:[%s2 + $0x20] sm:$0xff]
      %v462 = vld [vmem:[%s2 + $0x28] sm:$0xff]
      %v463 = vld [vmem:[%s2 + $0x30] sm:$0xff]
      %v464 = vld [vmem:[%s2 + $0x38] sm:$0xff]
      %v465 = vld [vmem:[%s2 + $0x40] sm:$0xff]
      %v466 = vld [vmem:[%s2 + $0x48] sm:$0xff]
      %v467 = vld [vmem:[%s2 + $0x50] sm:$0xff]
      %v468 = vld [vmem:[%s2 + $0x58] sm:$0xff]
      %v469 = vld [vmem:[%s2 + $0x60] sm:$0xff]
      %v470 = vld [vmem:[%s2 + $0x68] sm:$0xff]
      %v471 = vld [vmem:[%s2 + $0x70] sm:$0xff]
      %v472 = vld [vmem:[%s2 + $0x78] sm:$0xff]
      %v473 = vld [vmem:[%s2 + $0x80] sm:$0xff]
      %v474 = vld [vmem:[%s2 + $0x88] sm:$0xff]
      %v475 = vld [vmem:[%s2 + $0x90] sm:$0xff]
      %v476 = vld [vmem:[%s2 + $0x98] sm:$0xff]
      %v477 = vld [vmem:[%s2 + $0xa0] sm:$0xff]
      %v478 = vld [vmem:[%s2 + $0xa8] sm:$0xff]
      %v479 = vld [vmem:[%s2 + $0xb0] sm:$0xff]
      %v480 = vld [vmem:[%s2 + $0xb8] sm:$0xff]
      %v481 = vld [vmem:[%s2 + $0xc0] sm:$0xff]
      %v482 = vld [vmem:[%s2 + $0xc8] sm:$0xff]
      %v483 = vld [vmem:[%s2 + $0xd0] sm:$0xff]
      %v484 = vld [vmem:[%s2 + $0xd8] sm:$0xff]
      %v485 = vld [vmem:[%s2 + $0xe0] sm:$0xff]
      %v486 = vld [vmem:[%s2 + $0xe8] sm:$0xff]
      %v487 = vld [vmem:[%s2 + $0xf0] sm:$0xff]
      %v488 = vld [vmem:[%s2 + $0xf8] sm:$0xff]
      %v521 = vunpack.c.l.b16 %v457
      %v522 = vunpack.c.h.b16 %v457
      %v523 = vunpack.c.l.b16 %v458
      %v524 = vunpack.c.h.b16 %v458
      %v525 = vunpack.c.l.b16 %v459
      %v526 = vunpack.c.h.b16 %v459
      %v527 = vunpack.c.l.b16 %v460
      %v528 = vunpack.c.h.b16 %v460
      %v529 = vunpack.c.l.b16 %v461
      %v530 = vunpack.c.h.b16 %v461
      %v531 = vunpack.c.l.b16 %v462
      %v532 = vunpack.c.h.b16 %v462
      %v533 = vunpack.c.l.b16 %v463
      %v534 = vunpack.c.h.b16 %v463
      %v535 = vunpack.c.l.b16 %v464
      %v536 = vunpack.c.h.b16 %v464
      %v537 = vunpack.c.l.b16 %v465
      %v538 = vunpack.c.h.b16 %v465
      %v539 = vunpack.c.l.b16 %v466
      %v540 = vunpack.c.h.b16 %v466
      %v541 = vunpack.c.l.b16 %v467
      %v542 = vunpack.c.h.b16 %v467
      %v543 = vunpack.c.l.b16 %v468
      %v544 = vunpack.c.h.b16 %v468
      %v545 = vunpack.c.l.b16 %v469
      %v546 = vunpack.c.h.b16 %v469
      %v547 = vunpack.c.l.b16 %v470
      %v548 = vunpack.c.h.b16 %v470
      %v549 = vunpack.c.l.b16 %v471
      %v550 = vunpack.c.h.b16 %v471
      %v551 = vunpack.c.l.b16 %v472
      %v552 = vunpack.c.h.b16 %v472
      %v553 = vunpack.c.l.b16 %v473
      %v554 = vunpack.c.h.b16 %v473
      %v555 = vunpack.c.l.b16 %v474
      %v556 = vunpack.c.h.b16 %v474
      %v557 = vunpack.c.l.b16 %v475
      %v558 = vunpack.c.h.b16 %v475
      %v559 = vunpack.c.l.b16 %v476
      %v560 = vunpack.c.h.b16 %v476
      %v561 = vunpack.c.l.b16 %v477
      %v562 = vunpack.c.h.b16 %v477
      %v563 = vunpack.c.l.b16 %v478
      %v564 = vunpack.c.h.b16 %v478
      %v565 = vunpack.c.l.b16 %v479
      %v566 = vunpack.c.h.b16 %v479
      %v567 = vunpack.c.l.b16 %v480
      %v568 = vunpack.c.h.b16 %v480
      %v569 = vunpack.c.l.b16 %v481
      %v570 = vunpack.c.h.b16 %v481
      %v571 = vunpack.c.l.b16 %v482
      %v572 = vunpack.c.h.b16 %v482
      %v573 = vunpack.c.l.b16 %v483
      %v574 = vunpack.c.h.b16 %v483
      %v575 = vunpack.c.l.b16 %v484
      %v576 = vunpack.c.h.b16 %v484
      %v577 = vunpack.c.l.b16 %v485
      %v578 = vunpack.c.h.b16 %v485
      %v579 = vunpack.c.l.b16 %v486
      %v580 = vunpack.c.h.b16 %v486
      %v581 = vunpack.c.l.b16 %v487
      %v582 = vunpack.c.h.b16 %v487
      %v583 = vunpack.c.l.b16 %v488
      %v584 = vunpack.c.h.b16 %v488
      %v585 = vpack.c.b16 %v523, %v521
      %v586 = vpack.c.b16 %v524, %v522
      %v587 = vpack.c.b16 %v527, %v525
      %v588 = vpack.c.b16 %v528, %v526
      %v589 = vpack.c.b16 %v531, %v529
      %v590 = vpack.c.b16 %v532, %v530
      %v591 = vpack.c.b16 %v535, %v533
      %v592 = vpack.c.b16 %v536, %v534
      %v593 = vpack.c.b16 %v539, %v537
      %v594 = vpack.c.b16 %v540, %v538
      %v595 = vpack.c.b16 %v543, %v541
      %v596 = vpack.c.b16 %v544, %v542
      %v597 = vpack.c.b16 %v547, %v545
      %v598 = vpack.c.b16 %v548, %v546
      %v599 = vpack.c.b16 %v551, %v549
      %v600 = vpack.c.b16 %v552, %v550
      %v601 = vpack.c.b16 %v555, %v553
      %v602 = vpack.c.b16 %v556, %v554
      %v603 = vpack.c.b16 %v559, %v557
      %v604 = vpack.c.b16 %v560, %v558
      %v605 = vpack.c.b16 %v563, %v561
      %v606 = vpack.c.b16 %v564, %v562
      %v607 = vpack.c.b16 %v567, %v565
      %v608 = vpack.c.b16 %v568, %v566
      %v609 = vpack.c.b16 %v571, %v569
      %v610 = vpack.c.b16 %v572, %v570
      %v611 = vpack.c.b16 %v575, %v573
      %v612 = vpack.c.b16 %v576, %v574
      %v613 = vpack.c.b16 %v579, %v577
      %v614 = vpack.c.b16 %v580, %v578
      %v615 = vpack.c.b16 %v583, %v581
      %v616 = vpack.c.b16 %v584, %v582
      %649 = vmatprep.subr.bf16.mxu0 %v586
      %650 = vmatpush1.bf16.msra.mxu0 %v585
      %651 = vmatprep.subr.bf16.mxu0 %v588
      %652 = vmatpush1.bf16.msra.mxu0 %v587
      %653 = vmatprep.subr.bf16.mxu0 %v590
      %654 = vmatpush1.bf16.msra.mxu0 %v589
      %655 = vmatprep.subr.bf16.mxu0 %v592
      %656 = vmatpush1.bf16.msra.mxu0 %v591
      %657 = vmatprep.subr.bf16.mxu0 %v594
      %658 = vmatpush1.bf16.msra.mxu0 %v593
      %659 = vmatprep.subr.bf16.mxu0 %v596
      %660 = vmatpush1.bf16.msra.mxu0 %v595
      %661 = vmatprep.subr.bf16.mxu0 %v598
      %662 = vmatpush1.bf16.msra.mxu0 %v597
      %663 = vmatprep.subr.bf16.mxu0 %v600
      %664 = vmatpush1.bf16.msra.mxu0 %v599
      %665 = vmatprep.subr.bf16.mxu0 %v602
      %666 = vmatpush1.bf16.msra.mxu0 %v601
      %667 = vmatprep.subr.bf16.mxu0 %v604
      %668 = vmatpush1.bf16.msra.mxu0 %v603
      %669 = vmatprep.subr.bf16.mxu0 %v606
      %670 = vmatpush1.bf16.msra.mxu0 %v605
      %671 = vmatprep.subr.bf16.mxu0 %v608
      %672 = vmatpush1.bf16.msra.mxu0 %v607
      %673 = vmatprep.subr.bf16.mxu0 %v610
      %674 = vmatpush1.bf16.msra.mxu0 %v609
      %675 = vmatprep.subr.bf16.mxu0 %v612
      %676 = vmatpush1.bf16.msra.mxu0 %v611
      %677 = vmatprep.subr.bf16.mxu0 %v614
      %678 = vmatpush1.bf16.msra.mxu0 %v613
      %679 = vmatprep.subr.bf16.mxu0 %v616
      %680 = vmatpush1.bf16.msra.mxu0 %v615
      %681 = vmatprep.mubr.bf16.mxu0 %v451
      %682 = vmatmul.mubr.bf16.gmra.mrb[0].mxu0 %v453
      %v683 = vpop.f32.mrb[0].mxu0
      %v684 = vadd.f32 0.0, %v683
      %v685 = vpop.f32.mrb[0].mxu0
      %v686 = vadd.f32 0.0, %v685
      %v687 = vpop.f32.mrb[0].mxu0
      %v688 = vadd.f32 0.0, %v687
      %v689 = vpop.f32.mrb[0].mxu0
      %v690 = vadd.f32 0.0, %v689
      %691 = vmatprep.mubr.bf16.mxu0 %v451
      %692 = vmatmul.mubr.bf16.gmra.mrb[0].mxu0 %v454
      %v693 = vpop.f32.mrb[0].mxu0
      %v694 = vadd.f32 0.0, %v693
      %v695 = vpop.f32.mrb[0].mxu0
      %v696 = vadd.f32 0.0, %v695
      %v697 = vpop.f32.mrb[0].mxu0
      %v698 = vadd.f32 0.0, %v697
      %v699 = vpop.f32.mrb[0].mxu0
      %v700 = vadd.f32 0.0, %v699
      %701 = vmatprep.mubr.bf16.mxu0 %v451
      %702 = vmatmul.mubr.bf16.gmra.mrb[0].mxu0 %v455
      %v703 = vpop.f32.mrb[0].mxu0
      %v704 = vadd.f32 0.0, %v703
      %v705 = vpop.f32.mrb[0].mxu0
      %v706 = vadd.f32 0.0, %v705
      %v707 = vpop.f32.mrb[0].mxu0
      %v708 = vadd.f32 0.0, %v707
      %v709 = vpop.f32.mrb[0].mxu0
      %v710 = vadd.f32 0.0, %v709
      %711 = vmatprep.mubr.bf16.mxu0 %v451
      %712 = vmatmul.mubr.bf16.gmra.mrb[0].mxu0 %v456
      %v713 = vpop.f32.mrb[0].mxu0
      %v714 = vadd.f32 0.0, %v713
      %v715 = vpop.f32.mrb[0].mxu0
      %v716 = vadd.f32 0.0, %v715
      %v717 = vpop.f32.mrb[0].mxu0
      %v718 = vadd.f32 0.0, %v717
      %v719 = vpop.f32.mrb[0].mxu0
      %v720 = vadd.f32 0.0, %v719
      %721 = vdwg.mxu0
      %v722 = vadd.f32 %v684, %v688
      %v723 = vadd.f32 %v722, %v694
      %v724 = vadd.f32 %v723, %v698
      %v725 = vadd.f32 %v724, %v704
      %v726 = vadd.f32 %v725, %v708
      %v727 = vadd.f32 %v726, %v714
      %v728 = vadd.f32 %v727, %v718
      %v729 = vrot.slane %v728, 4
      %v730 = vadd.f32 %v728, %v729
      %v731 = vrot.slane %v730, 2
      %v732 = vadd.f32 %v730, %v731
      %v733 = vrot.slane %v732, 1
      %v734 = vadd.f32 %v732, %v733
      %v735 = vadd.f32 %v686, %v690
      %v736 = vadd.f32 %v735, %v696
      %v737 = vadd.f32 %v736, %v700
      %v738 = vadd.f32 %v737, %v706
      %v739 = vadd.f32 %v738, %v710
      %v740 = vadd.f32 %v739, %v716
      %v741 = vadd.f32 %v740, %v720
      %v742 = vrot.slane %v741, 4
      %v743 = vadd.f32 %v741, %v742
      %v744 = vrot.slane %v743, 2
      %v745 = vadd.f32 %v743, %v744
      %v746 = vrot.slane %v745, 1
      %v747 = vadd.f32 %v745, %v746
      %v748 = vmul.f32 %v684, %v684
      %v749 = vmul.f32 %v686, %v686
      %v750 = vmul.f32 %v688, %v688
      %v751 = vmul.f32 %v690, %v690
      %v752 = vmul.f32 %v694, %v694
      %v753 = vmul.f32 %v696, %v696
      %v754 = vmul.f32 %v698, %v698
      %v755 = vmul.f32 %v700, %v700
      %v756 = vmul.f32 %v704, %v704
      %v757 = vmul.f32 %v706, %v706
      %v758 = vmul.f32 %v708, %v708
      %v759 = vmul.f32 %v710, %v710
      %v760 = vmul.f32 %v714, %v714
      %v761 = vmul.f32 %v716, %v716
      %v762 = vmul.f32 %v718, %v718
      %v763 = vmul.f32 %v720, %v720
      %v764 = vadd.f32 %v748, %v750
      %v765 = vadd.f32 %v764, %v752
      %v766 = vadd.f32 %v765, %v754
      %v767 = vadd.f32 %v766, %v756
      %v768 = vadd.f32 %v767, %v758
      %v769 = vadd.f32 %v768, %v760
      %v770 = vadd.f32 %v769, %v762
      %v771 = vrot.slane %v770, 4
      %v772 = vadd.f32 %v770, %v771
      %v773 = vrot.slane %v772, 2
      %v774 = vadd.f32 %v772, %v773
      %v775 = vrot.slane %v774, 1
      %v776 = vadd.f32 %v774, %v775
      %v777 = vadd.f32 %v749, %v751
      %v778 = vadd.f32 %v777, %v753
      %v779 = vadd.f32 %v778, %v755
      %v780 = vadd.f32 %v779, %v757
      %v781 = vadd.f32 %v780, %v759
      %v782 = vadd.f32 %v781, %v761
      %v783 = vadd.f32 %v782, %v763
      %v784 = vrot.slane %v783, 4
      %v785 = vadd.f32 %v783, %v784
      %v786 = vrot.slane %v785, 2
      %v787 = vadd.f32 %v785, %v786
      %v788 = vrot.slane %v787, 1
      %v789 = vadd.f32 %v787, %v788
      %vm790 = vcmask 1040384
      %v791 = vsel %vm790, %v734, %v776
      %v792 = vsel %vm790, %v747, %v789
      %v795 = vcombine.low %v791, %v792
      %v797 = vunpack.c.l.s4 1983009808
      %v798 = vunpack.c.0.s8 %v797
      %v799 = vlaneseq
      %v800 = vshrl.u32 %v799, 7
      %v801 = vsub.s32 %v798, %v800
      %v802 = vrot.slane %v795, %v801
      %804 = vst [vmem:[%s273] sm:$0xf] %v802
      %v805 = vmax.f32 %v684, %v694
      %v806 = vmax.f32 %v805, %v704
      %v807 = vmax.f32 %v806, %v714
      %v808 = vmax.f32 %v686, %v696
      %v809 = vmax.f32 %v808, %v706
      %v810 = vmax.f32 %v809, %v716
      %v811 = vmax.f32 %v688, %v698
      %v812 = vmax.f32 %v811, %v708
      %v813 = vmax.f32 %v812, %v718
      %v814 = vmax.f32 %v690, %v700
      %v815 = vmax.f32 %v814, %v710
      %v816 = vmax.f32 %v815, %v720
      %817 = vst [vmem:[%s263] sm:$0xff] %v807
      %818 = vst [vmem:[%s263 + $0x8] sm:$0xff] %v810
      %819 = vst [vmem:[%s263 + $0x10] sm:$0xff] %v813
      %820 = vst [vmem:[%s263 + $0x18] sm:$0xff] %v816
      %s821 = smul.u32 2, %s21
      %p822 = scmp.lt.s32.totalorder %s20, 1
      %s823 = scalar_select %p822, %s20, 1
      %p824 = scmp.lt.s32.totalorder %s821, 1
      %s825 = scalar_select %p824, %s821, 1
      %s826 = smul.addr %s825, 2
      %s827 = smul.addr %s823, 4
      %s828 = sadd.s32 %s826, %s827
      %s829 = smul.addr %s828, 8
      %s830 = scalar_lea.vmem %s3, %s829
      %p831 = scmp.lt.s32.totalorder %s20, 1
      %s832 = scalar_select %p831, %s20, 1
      %p833 = scmp.lt.s32.totalorder %s21, 0
      %s834 = scalar_select %p833, %s21, 0
      %s835 = smul.addr %s834, 2
      %s836 = smul.addr %s832, 2
      %s837 = sadd.s32 %s835, %s836
      %s838 = smul.addr %s837, 2
      %s839 = scalar_lea.vmem %s4, %s838
      // Predicated region
      $region33: #{dgcnn_forward.24} parent=31 // pred_check
        %p840 = pneg %p123
      $region34: #{dgcnn_forward.24} parent=31 // pred_check_branch
        %842 = sbr.rel (%p840) target = $region36
      $region35: #{dgcnn_forward.24} parent=31 // pred_region
        %s843 = smul.u32 2, %s21
      $region36: #{dgcnn_forward.24} parent=31 // pred_fallthru
        _
      // Predicated region
      $region37: #{dgcnn_forward.24} parent=31 // pred_check
        %p844 = pneg %p151
      $region38: #{dgcnn_forward.24} parent=31 // pred_check_branch
        %846 = sbr.rel (%p844) target = $region40
      $region39: #{dgcnn_forward.24} parent=31 // pred_region
        _
      $region40: #{dgcnn_forward.24} parent=31 // pred_fallthru
        _
    $region32: #{dgcnn_forward.24} parent=5 // pred_fallthru
      _
    %p847 = scmp.le.s32.totalorder 2, %s11
    // Predicated region
    $region41: #{dgcnn_forward.24} parent=5 // pred_check
      %p848 = pneg %p847
    $region42: #{dgcnn_forward.24} parent=5 // pred_check_branch
      %850 = sbr.rel (%p848) target = $region44
    $region43: #{dgcnn_forward.24} parent=5 // pred_region
      %s851 = ssub.s32 %s11, 2
      // Predicated region
      $region45: #{dgcnn_forward.24} parent=43 // pred_check
        %p852 = pneg %p129
      $region46: #{dgcnn_forward.24} parent=43 // pred_check_branch
        %854 = sbr.rel (%p852) target = $region48
      $region47: #{dgcnn_forward.24} parent=43 // pred_region
        %s855 = smul.u32 2, %s23
        %p856 = scmp.lt.s32.totalorder %s22, 1
        %s857 = scalar_select %p856, %s22, 1
        %p858 = scmp.lt.s32.totalorder %s855, 1
        %s859 = scalar_select %p858, %s855, 1
        %s860 = smul.addr %s859, 2
        %s861 = smul.addr %s857, 4
        %s862 = sadd.s32 %s860, %s861
        %s863 = smul.addr %s862, 8
        %s864 = scalar_lea.vmem %s3, %s863
      $region48: #{dgcnn_forward.24} parent=43 // pred_fallthru
        _
      // Predicated region
      $region49: #{dgcnn_forward.24} parent=43 // pred_check
        %p865 = pneg %p157
      $region50: #{dgcnn_forward.24} parent=43 // pred_check_branch
        %867 = sbr.rel (%p865) target = $region52
      $region51: #{dgcnn_forward.24} parent=43 // pred_region
        %p868 = scmp.lt.s32.totalorder %s22, 1
        %s869 = scalar_select %p868, %s22, 1
        %p870 = scmp.lt.s32.totalorder %s23, 0
        %s871 = scalar_select %p870, %s23, 0
        %s872 = smul.addr %s871, 2
        %s873 = smul.addr %s869, 2
        %s874 = sadd.s32 %s872, %s873
        %s875 = smul.addr %s874, 2
        %s876 = scalar_lea.vmem %s4, %s875
      $region52: #{dgcnn_forward.24} parent=43 // pred_fallthru
        _
    $region44: #{dgcnn_forward.24} parent=5 // pred_fallthru
      _
  $region6: #{dgcnn_forward.24} parent=0 // loop_footer
    %s15 = sadd.s32 1, %s11
  $region7: #{dgcnn_forward.24} parent=0 // loop_footer_branch
    %10 = sbr.rel target = $region3
  $region8: #{dgcnn_forward.24} parent=0 // loop_exit
    _

// kernel: dgcnn_forward.25
$region0: #{dgcnn_forward.25}
  #allocation0 [shape = 'u32[]', space=smem, size = 0x4, offset = 0x4, fixed_abs, tag = 'smem constant byte address 0x4 - core index']
  #allocation1 [shape = 'u32[144,128]{1,0:T(1,128)}', space=vmem, size = 0x12000, scoped, tag = 'internal scratch']
  %s0 = inlined_call_operand.vmem [shape: f32[32,256], index: 0, kind: input, shape index: {}]
  %s1 = inlined_call_operand.vmem [shape: f32[1,256], index: 1, kind: input, shape index: {}]
  %s2 = inlined_call_operand.vmem [shape: f32[1,256], index: 2, kind: input, shape index: {}]
  %s3 = inlined_call_operand.vmem [shape: f32[32,256], index: 3, kind: output, shape index: {}]
  %s4 = sld [smem:[#allocation0]]
  $region22: #{dgcnn_forward.25} parent=0
    _
  %s6 = ssub.s32 1, %s4
  %s7 = scalar_select 0, %s6, %s4
  // Predicated region
  $region2: #{dgcnn_forward.25} parent=0 // pred_check
    _
  $region3: #{dgcnn_forward.25} parent=0 // pred_check_branch
    %9 = sbr.rel (0) target = $region5
  $region4: #{dgcnn_forward.25} parent=0 // pred_region
    _
  $region5: #{dgcnn_forward.25} parent=0 // pred_fallthru
    _
  // Predicated region
  $region6: #{dgcnn_forward.25} parent=0 // pred_check
    _
  $region7: #{dgcnn_forward.25} parent=0 // pred_check_branch
    %11 = sbr.rel (0) target = $region9
  $region8: #{dgcnn_forward.25} parent=0 // pred_region
    _
  $region9: #{dgcnn_forward.25} parent=0 // pred_fallthru
    _
  // Predicated region
  $region10: #{dgcnn_forward.25} parent=0 // pred_check
    _
  $region11: #{dgcnn_forward.25} parent=0 // pred_check_branch
    %13 = sbr.rel (0) target = $region13
  $region12: #{dgcnn_forward.25} parent=0 // pred_region
    _
  $region13: #{dgcnn_forward.25} parent=0 // pred_fallthru
    _
  %v14 = vld [vmem:[%s0] sm:$0xff]
  %v15 = vld [vmem:[%s0 + $0x8] sm:$0xff]
  %v16 = vld [vmem:[%s0 + $0x10] sm:$0xff]
  %v17 = vld [vmem:[%s0 + $0x18] sm:$0xff]
  %v18 = vld [vmem:[%s0 + $0x20] sm:$0xff]
  %v19 = vld [vmem:[%s0 + $0x28] sm:$0xff]
  %v20 = vld [vmem:[%s0 + $0x30] sm:$0xff]
  %v21 = vld [vmem:[%s0 + $0x38] sm:$0xff]
  %v22 = vld [vmem:[%s1] sm:$0x3]
  %v24 = vlaneseq
  %v25 = vshrl.u32 %v24, 7
  %v26 = vsub.s32 0, %v25
  %v27 = vrot.slane %v22, %v26
  %v28 = vlaneseq
  %v29 = vshrl.u32 %v28, 7
  %v30 = vsub.s32 1, %v29
  %v31 = vrot.slane %v22, %v30
  %v34 = vmul.f32 %v14, %v27
  %v35 = vmul.f32 %v15, %v31
  %v36 = vmul.f32 %v16, %v27
  %v37 = vmul.f32 %v17, %v31
  %v38 = vmul.f32 %v18, %v27
  %v39 = vmul.f32 %v19, %v31
  %v40 = vmul.f32 %v20, %v27
  %v41 = vmul.f32 %v21, %v31
  %v42 = vld [vmem:[%s2] sm:$0x3]
  %v44 = vlaneseq
  %v45 = vshrl.u32 %v44, 7
  %v46 = vsub.s32 0, %v45
  %v47 = vrot.slane %v42, %v46
  %v48 = vlaneseq
  %v49 = vshrl.u32 %v48, 7
  %v50 = vsub.s32 1, %v49
  %v51 = vrot.slane %v42, %v50
  %v54 = vadd.f32 %v34, %v47
  %v55 = vadd.f32 %v35, %v51
  %v56 = vadd.f32 %v36, %v47
  %v57 = vadd.f32 %v37, %v51
  %v58 = vadd.f32 %v38, %v47
  %v59 = vadd.f32 %v39, %v51
  %v60 = vadd.f32 %v40, %v47
  %v61 = vadd.f32 %v41, %v51
  %vm62 = vcmp.gt.f32.partialorder %v54, 0.0
  %vm63 = vcmp.gt.f32.partialorder %v55, 0.0
  %vm64 = vcmp.gt.f32.partialorder %v56, 0.0
  %vm65 = vcmp.gt.f32.partialorder %v57, 0.0
  %vm66 = vcmp.gt.f32.partialorder %v58, 0.0
  %vm67 = vcmp.gt.f32.partialorder %v59, 0.0
  %vm68 = vcmp.gt.f32.partialorder %v60, 0.0
  %vm69 = vcmp.gt.f32.partialorder %v61, 0.0
  %v70 = vmul.f32 %v54, 0.2
  %v71 = vmul.f32 %v55, 0.2
  %v72 = vmul.f32 %v56, 0.2
  %v73 = vmul.f32 %v57, 0.2
  %v74 = vmul.f32 %v58, 0.2
  %v75 = vmul.f32 %v59, 0.2
  %v76 = vmul.f32 %v60, 0.2
  %v77 = vmul.f32 %v61, 0.2
  %v78 = vsel %vm62, %v54, %v70
  %v79 = vsel %vm63, %v55, %v71
  %v80 = vsel %vm64, %v56, %v72
  %v81 = vsel %vm65, %v57, %v73
  %v82 = vsel %vm66, %v58, %v74
  %v83 = vsel %vm67, %v59, %v75
  %v84 = vsel %vm68, %v60, %v76
  %v85 = vsel %vm69, %v61, %v77
  %86 = vst [vmem:[%s3] sm:$0xff] %v78
  %87 = vst [vmem:[%s3 + $0x8] sm:$0xff] %v79
  %88 = vst [vmem:[%s3 + $0x10] sm:$0xff] %v80
  %89 = vst [vmem:[%s3 + $0x18] sm:$0xff] %v81
  %90 = vst [vmem:[%s3 + $0x20] sm:$0xff] %v82
  %91 = vst [vmem:[%s3 + $0x28] sm:$0xff] %v83
  %92 = vst [vmem:[%s3 + $0x30] sm:$0xff] %v84
  %93 = vst [vmem:[%s3 + $0x38] sm:$0xff] %v85
  // Predicated region
  $region14: #{dgcnn_forward.25} parent=0 // pred_check
    _
  $region15: #{dgcnn_forward.25} parent=0 // pred_check_branch
    %95 = sbr.rel (0) target = $region17
  $region16: #{dgcnn_forward.25} parent=0 // pred_region
    _
  $region17: #{dgcnn_forward.25} parent=0 // pred_fallthru
    _
  // Predicated region
  $region18: #{dgcnn_forward.25} parent=0 // pred_check
    _
  $region19: #{dgcnn_forward.25} parent=0 // pred_check_branch
    %97 = sbr.rel (0) target = $region21
  $region20: #{dgcnn_forward.25} parent=0 // pred_region
    _
  $region21: #{dgcnn_forward.25} parent=0 // pred_fallthru
    _

// kernel: dgcnn_forward.26
$region0: #{dgcnn_forward.26}
  #allocation0 [shape = 'u32[]', space=smem, size = 0x4, offset = 0x4, fixed_abs, tag = 'smem constant byte address 0x4 - core index']
  #allocation1 [shape = 'u32[144,128]{1,0:T(1,128)}', space=vmem, size = 0x12000, scoped, tag = 'internal scratch']
  %s0 = inlined_call_operand.vmem [shape: f32[32,512], index: 0, kind: input, shape index: {}]
  %s1 = inlined_call_operand.vmem [shape: bf16[512,64], index: 1, kind: input, shape index: {}]
  %s2 = inlined_call_operand.vmem [shape: f32[32,64], index: 2, kind: output, shape index: {0}]
  %s3 = inlined_call_operand.vmem [shape: f32[1,2,64], index: 3, kind: output, shape index: {1}]
  %4 = xla_tuple %s2, %s3
  %s5 = sld [smem:[#allocation0]]
  $region26: #{dgcnn_forward.26} parent=0
    _
  %s7 = ssub.s32 1, %s5
  %s8 = scalar_select 0, %s7, %s5
  // Predicated region
  $region2: #{dgcnn_forward.26} parent=0 // pred_check
    _
  $region3: #{dgcnn_forward.26} parent=0 // pred_check_branch
    %10 = sbr.rel (0) target = $region5
  $region4: #{dgcnn_forward.26} parent=0 // pred_region
    _
  $region5: #{dgcnn_forward.26} parent=0 // pred_fallthru
    _
  // Predicated region
  $region6: #{dgcnn_forward.26} parent=0 // pred_check
    _
  $region7: #{dgcnn_forward.26} parent=0 // pred_check_branch
    %12 = sbr.rel (0) target = $region9
  $region8: #{dgcnn_forward.26} parent=0 // pred_region
    _
  $region9: #{dgcnn_forward.26} parent=0 // pred_fallthru
    _
  %v14 = vld [vmem:[%s0] sm:$0xff]
  %v15 = vld [vmem:[%s0 + $0x8] sm:$0xff]
  %v16 = vld [vmem:[%s0 + $0x10] sm:$0xff]
  %v17 = vld [vmem:[%s0 + $0x18] sm:$0xff]
  %v18 = vld [vmem:[%s0 + $0x20] sm:$0xff]
  %v19 = vld [vmem:[%s0 + $0x28] sm:$0xff]
  %v20 = vld [vmem:[%s0 + $0x30] sm:$0xff]
  %v21 = vld [vmem:[%s0 + $0x38] sm:$0xff]
  %v22 = vld [vmem:[%s0 + $0x40] sm:$0xff]
  %v23 = vld [vmem:[%s0 + $0x48] sm:$0xff]
  %v24 = vld [vmem:[%s0 + $0x50] sm:$0xff]
  %v25 = vld [vmem:[%s0 + $0x58] sm:$0xff]
  %v26 = vld [vmem:[%s0 + $0x60] sm:$0xff]
  %v27 = vld [vmem:[%s0 + $0x68] sm:$0xff]
  %v28 = vld [vmem:[%s0 + $0x70] sm:$0xff]
  %v29 = vld [vmem:[%s0 + $0x78] sm:$0xff]
  %v30 = vpack.c.bf16 %v18, %v14
  %v31 = vpack.c.bf16 %v19, %v15
  %v32 = vpack.c.bf16 %v20, %v16
  %v33 = vpack.c.bf16 %v21, %v17
  %v34 = vpack.c.bf16 %v26, %v22
  %v35 = vpack.c.bf16 %v27, %v23
  %v36 = vpack.c.bf16 %v28, %v24
  %v37 = vpack.c.bf16 %v29, %v25
  %v38 = vld [vmem:[%s1] sm:$0xf]
  %v39 = vld [vmem:[%s1 + $0x4] sm:$0xf]
  %v40 = vld [vmem:[%s1 + $0x8] sm:$0xf]
  %v41 = vld [vmem:[%s1 + $0xc] sm:$0xf]
  %v42 = vld [vmem:[%s1 + $0x10] sm:$0xf]
  %v43 = vld [vmem:[%s1 + $0x14] sm:$0xf]
  %v44 = vld [vmem:[%s1 + $0x18] sm:$0xf]
  %v45 = vld [vmem:[%s1 + $0x1c] sm:$0xf]
  %v46 = vld [vmem:[%s1 + $0x20] sm:$0xf]
  %v47 = vld [vmem:[%s1 + $0x24] sm:$0xf]
  %v48 = vld [vmem:[%s1 + $0x28] sm:$0xf]
  %v49 = vld [vmem:[%s1 + $0x2c] sm:$0xf]
  %v50 = vld [vmem:[%s1 + $0x30] sm:$0xf]
  %v51 = vld [vmem:[%s1 + $0x34] sm:$0xf]
  %v52 = vld [vmem:[%s1 + $0x38] sm:$0xf]
  %v53 = vld [vmem:[%s1 + $0x3c] sm:$0xf]
  %v54 = vld [vmem:[%s1 + $0x40] sm:$0xf]
  %v55 = vld [vmem:[%s1 + $0x44] sm:$0xf]
  %v56 = vld [vmem:[%s1 + $0x48] sm:$0xf]
  %v57 = vld [vmem:[%s1 + $0x4c] sm:$0xf]
  %v58 = vld [vmem:[%s1 + $0x50] sm:$0xf]
  %v59 = vld [vmem:[%s1 + $0x54] sm:$0xf]
  %v60 = vld [vmem:[%s1 + $0x58] sm:$0xf]
  %v61 = vld [vmem:[%s1 + $0x5c] sm:$0xf]
  %v62 = vld [vmem:[%s1 + $0x60] sm:$0xf]
  %v63 = vld [vmem:[%s1 + $0x64] sm:$0xf]
  %v64 = vld [vmem:[%s1 + $0x68] sm:$0xf]
  %v65 = vld [vmem:[%s1 + $0x6c] sm:$0xf]
  %v66 = vld [vmem:[%s1 + $0x70] sm:$0xf]
  %v67 = vld [vmem:[%s1 + $0x74] sm:$0xf]
  %v68 = vld [vmem:[%s1 + $0x78] sm:$0xf]
  %v69 = vld [vmem:[%s1 + $0x7c] sm:$0xf]
  %v70 = vld [vmem:[%s1 + $0x80] sm:$0xf]
  %v71 = vld [vmem:[%s1 + $0x84] sm:$0xf]
  %v72 = vld [vmem:[%s1 + $0x88] sm:$0xf]
  %v73 = vld [vmem:[%s1 + $0x8c] sm:$0xf]
  %v74 = vld [vmem:[%s1 + $0x90] sm:$0xf]
  %v75 = vld [vmem:[%s1 + $0x94] sm:$0xf]
  %v76 = vld [vmem:[%s1 + $0x98] sm:$0xf]
  %v77 = vld [vmem:[%s1 + $0x9c] sm:$0xf]
  %v78 = vld [vmem:[%s1 + $0xa0] sm:$0xf]
  %v79 = vld [vmem:[%s1 + $0xa4] sm:$0xf]
  %v80 = vld [vmem:[%s1 + $0xa8] sm:$0xf]
  %v81 = vld [vmem:[%s1 + $0xac] sm:$0xf]
  %v82 = vld [vmem:[%s1 + $0xb0] sm:$0xf]
  %v83 = vld [vmem:[%s1 + $0xb4] sm:$0xf]
  %v84 = vld [vmem:[%s1 + $0xb8] sm:$0xf]
  %v85 = vld [vmem:[%s1 + $0xbc] sm:$0xf]
  %v86 = vld [vmem:[%s1 + $0xc0] sm:$0xf]
  %v87 = vld [vmem:[%s1 + $0xc4] sm:$0xf]
  %v88 = vld [vmem:[%s1 + $0xc8] sm:$0xf]
  %v89 = vld [vmem:[%s1 + $0xcc] sm:$0xf]
  %v90 = vld [vmem:[%s1 + $0xd0] sm:$0xf]
  %v91 = vld [vmem:[%s1 + $0xd4] sm:$0xf]
  %v92 = vld [vmem:[%s1 + $0xd8] sm:$0xf]
  %v93 = vld [vmem:[%s1 + $0xdc] sm:$0xf]
  %v94 = vld [vmem:[%s1 + $0xe0] sm:$0xf]
  %v95 = vld [vmem:[%s1 + $0xe4] sm:$0xf]
  %v96 = vld [vmem:[%s1 + $0xe8] sm:$0xf]
  %v97 = vld [vmem:[%s1 + $0xec] sm:$0xf]
  %v98 = vld [vmem:[%s1 + $0xf0] sm:$0xf]
  %v99 = vld [vmem:[%s1 + $0xf4] sm:$0xf]
  %v100 = vld [vmem:[%s1 + $0xf8] sm:$0xf]
  %v101 = vld [vmem:[%s1 + $0xfc] sm:$0xf]
  %v166 = vunpack.c.l.b16 %v38
  %v167 = vunpack.c.l.b16 %v39
  %v168 = vunpack.c.l.b16 %v40
  %v169 = vunpack.c.l.b16 %v41
  %v170 = vunpack.c.l.b16 %v42
  %v171 = vunpack.c.l.b16 %v43
  %v172 = vunpack.c.l.b16 %v44
  %v173 = vunpack.c.l.b16 %v45
  %v174 = vunpack.c.l.b16 %v46
  %v175 = vunpack.c.l.b16 %v47
  %v176 = vunpack.c.l.b16 %v48
  %v177 = vunpack.c.l.b16 %v49
  %v178 = vunpack.c.l.b16 %v50
  %v179 = vunpack.c.l.b16 %v51
  %v180 = vunpack.c.l.b16 %v52
  %v181 = vunpack.c.l.b16 %v53
  %v182 = vunpack.c.l.b16 %v54
  %v183 = vunpack.c.l.b16 %v55
  %v184 = vunpack.c.l.b16 %v56
  %v185 = vunpack.c.l.b16 %v57
  %v186 = vunpack.c.l.b16 %v58
  %v187 = vunpack.c.l.b16 %v59
  %v188 = vunpack.c.l.b16 %v60
  %v189 = vunpack.c.l.b16 %v61
  %v190 = vunpack.c.l.b16 %v62
  %v191 = vunpack.c.l.b16 %v63
  %v192 = vunpack.c.l.b16 %v64
  %v193 = vunpack.c.l.b16 %v65
  %v194 = vunpack.c.l.b16 %v66
  %v195 = vunpack.c.l.b16 %v67
  %v196 = vunpack.c.l.b16 %v68
  %v197 = vunpack.c.l.b16 %v69
  %v198 = vunpack.c.l.b16 %v70
  %v199 = vunpack.c.l.b16 %v71
  %v200 = vunpack.c.l.b16 %v72
  %v201 = vunpack.c.l.b16 %v73
  %v202 = vunpack.c.l.b16 %v74
  %v203 = vunpack.c.l.b16 %v75
  %v204 = vunpack.c.l.b16 %v76
  %v205 = vunpack.c.l.b16 %v77
  %v206 = vunpack.c.l.b16 %v78
  %v207 = vunpack.c.l.b16 %v79
  %v208 = vunpack.c.l.b16 %v80
  %v209 = vunpack.c.l.b16 %v81
  %v210 = vunpack.c.l.b16 %v82
  %v211 = vunpack.c.l.b16 %v83
  %v212 = vunpack.c.l.b16 %v84
  %v213 = vunpack.c.l.b16 %v85
  %v214 = vunpack.c.l.b16 %v86
  %v215 = vunpack.c.l.b16 %v87
  %v216 = vunpack.c.l.b16 %v88
  %v217 = vunpack.c.l.b16 %v89
  %v218 = vunpack.c.l.b16 %v90
  %v219 = vunpack.c.l.b16 %v91
  %v220 = vunpack.c.l.b16 %v92
  %v221 = vunpack.c.l.b16 %v93
  %v222 = vunpack.c.l.b16 %v94
  %v223 = vunpack.c.l.b16 %v95
  %v224 = vunpack.c.l.b16 %v96
  %v225 = vunpack.c.l.b16 %v97
  %v226 = vunpack.c.l.b16 %v98
  %v227 = vunpack.c.l.b16 %v99
  %v228 = vunpack.c.l.b16 %v100
  %v229 = vunpack.c.l.b16 %v101
  %v230 = vpack.c.b16 %v167, %v166
  %v231 = vpack.c.b16 %v169, %v168
  %v232 = vpack.c.b16 %v171, %v170
  %v233 = vpack.c.b16 %v173, %v172
  %v234 = vpack.c.b16 %v175, %v174
  %v235 = vpack.c.b16 %v177, %v176
  %v236 = vpack.c.b16 %v179, %v178
  %v237 = vpack.c.b16 %v181, %v180
  %v238 = vpack.c.b16 %v183, %v182
  %v239 = vpack.c.b16 %v185, %v184
  %v240 = vpack.c.b16 %v187, %v186
  %v241 = vpack.c.b16 %v189, %v188
  %v242 = vpack.c.b16 %v191, %v190
  %v243 = vpack.c.b16 %v193, %v192
  %v244 = vpack.c.b16 %v195, %v194
  %v245 = vpack.c.b16 %v197, %v196
  %v246 = vpack.c.b16 %v199, %v198
  %v247 = vpack.c.b16 %v201, %v200
  %v248 = vpack.c.b16 %v203, %v202
  %v249 = vpack.c.b16 %v205, %v204
  %v250 = vpack.c.b16 %v207, %v206
  %v251 = vpack.c.b16 %v209, %v208
  %v252 = vpack.c.b16 %v211, %v210
  %v253 = vpack.c.b16 %v213, %v212
  %v254 = vpack.c.b16 %v215, %v214
  %v255 = vpack.c.b16 %v217, %v216
  %v256 = vpack.c.b16 %v219, %v218
  %v257 = vpack.c.b16 %v221, %v220
  %v258 = vpack.c.b16 %v223, %v222
  %v259 = vpack.c.b16 %v225, %v224
  %v260 = vpack.c.b16 %v227, %v226
  %v261 = vpack.c.b16 %v229, %v228
  %294 = vmatprep.subr.bf16.mxu0 0
  %295 = vmatpush1.bf16.msra.mxu0 %v230
  %296 = vmatprep.subr.bf16.mxu0 0
  %297 = vmatpush1.bf16.msra.mxu0 %v231
  %298 = vmatprep.subr.bf16.mxu0 0
  %299 = vmatpush1.bf16.msra.mxu0 %v232
  %300 = vmatprep.subr.bf16.mxu0 0
  %301 = vmatpush1.bf16.msra.mxu0 %v233
  %302 = vmatprep.subr.bf16.mxu0 0
  %303 = vmatpush1.bf16.msra.mxu0 %v234
  %304 = vmatprep.subr.bf16.mxu0 0
  %305 = vmatpush1.bf16.msra.mxu0 %v235
  %306 = vmatprep.subr.bf16.mxu0 0
  %307 = vmatpush1.bf16.msra.mxu0 %v236
  %308 = vmatprep.subr.bf16.mxu0 0
  %309 = vmatpush1.bf16.msra.mxu0 %v237
  %310 = vmatprep.subr.bf16.mxu0 0
  %311 = vmatpush1.bf16.msra.mxu0 %v238
  %312 = vmatprep.subr.bf16.mxu0 0
  %313 = vmatpush1.bf16.msra.mxu0 %v239
  %314 = vmatprep.subr.bf16.mxu0 0
  %315 = vmatpush1.bf16.msra.mxu0 %v240
  %316 = vmatprep.subr.bf16.mxu0 0
  %317 = vmatpush1.bf16.msra.mxu0 %v241
  %318 = vmatprep.subr.bf16.mxu0 0
  %319 = vmatpush1.bf16.msra.mxu0 %v242
  %320 = vmatprep.subr.bf16.mxu0 0
  %321 = vmatpush1.bf16.msra.mxu0 %v243
  %322 = vmatprep.subr.bf16.mxu0 0
  %323 = vmatpush1.bf16.msra.mxu0 %v244
  %324 = vmatprep.subr.bf16.mxu0 0
  %325 = vmatpush1.bf16.msra.mxu0 %v245
  %326 = vmatprep.mubr.bf16.mxu0 %v31
  %327 = vmatmul.mubr.bf16.gmra.mrb[0].mxu0 %v30
  %v328 = vpop.f32.mrb[0].mxu0
  %v329 = vadd.f32 0.0, %v328
  %v330 = vpop.f32.mrb[0].mxu0
  %v331 = vpop.f32.mrb[0].mxu0
  %v332 = vadd.f32 0.0, %v331
  %v333 = vpop.f32.mrb[0].mxu0
  %334 = vmatprep.mubr.bf16.mxu0 %v35
  %335 = vmatmul.mubr.bf16.gmra.mrb[0].mxu0 %v34
  %v336 = vpop.f32.mrb[0].mxu0
  %v337 = vadd.f32 0.0, %v336
  %v338 = vpop.f32.mrb[0].mxu0
  %v339 = vpop.f32.mrb[0].mxu0
  %v340 = vadd.f32 0.0, %v339
  %v341 = vpop.f32.mrb[0].mxu0
  %342 = vdwg.mxu0
  %343 = vmatprep.subr.bf16.mxu0 0
  %344 = vmatpush1.bf16.msra.mxu0 %v246
  %345 = vmatprep.subr.bf16.mxu0 0
  %346 = vmatpush1.bf16.msra.mxu0 %v247
  %347 = vmatprep.subr.bf16.mxu0 0
  %348 = vmatpush1.bf16.msra.mxu0 %v248
  %349 = vmatprep.subr.bf16.mxu0 0
  %350 = vmatpush1.bf16.msra.mxu0 %v249
  %351 = vmatprep.subr.bf16.mxu0 0
  %352 = vmatpush1.bf16.msra.mxu0 %v250
  %353 = vmatprep.subr.bf16.mxu0 0
  %354 = vmatpush1.bf16.msra.mxu0 %v251
  %355 = vmatprep.subr.bf16.mxu0 0
  %356 = vmatpush1.bf16.msra.mxu0 %v252
  %357 = vmatprep.subr.bf16.mxu0 0
  %358 = vmatpush1.bf16.msra.mxu0 %v253
  %359 = vmatprep.subr.bf16.mxu0 0
  %360 = vmatpush1.bf16.msra.mxu0 %v254
  %361 = vmatprep.subr.bf16.mxu0 0
  %362 = vmatpush1.bf16.msra.mxu0 %v255
  %363 = vmatprep.subr.bf16.mxu0 0
  %364 = vmatpush1.bf16.msra.mxu0 %v256
  %365 = vmatprep.subr.bf16.mxu0 0
  %366 = vmatpush1.bf16.msra.mxu0 %v257
  %367 = vmatprep.subr.bf16.mxu0 0
  %368 = vmatpush1.bf16.msra.mxu0 %v258
  %369 = vmatprep.subr.bf16.mxu0 0
  %370 = vmatpush1.bf16.msra.mxu0 %v259
  %371 = vmatprep.subr.bf16.mxu0 0
  %372 = vmatpush1.bf16.msra.mxu0 %v260
  %373 = vmatprep.subr.bf16.mxu0 0
  %374 = vmatpush1.bf16.msra.mxu0 %v261
  %375 = vmatprep.mubr.bf16.mxu0 %v33
  %376 = vmatmul.mubr.bf16.gmra.mrb[0].mxu0 %v32
  %v377 = vpop.f32.mrb[0].mxu0
  %v378 = vadd.f32 %v329, %v377
  %v379 = vpop.f32.mrb[0].mxu0
  %v380 = vpop.f32.mrb[0].mxu0
  %v381 = vadd.f32 %v332, %v380
  %v382 = vpop.f32.mrb[0].mxu0
  %383 = vmatprep.mubr.bf16.mxu0 %v37
  %384 = vmatmul.mubr.bf16.gmra.mrb[0].mxu0 %v36
  %v385 = vpop.f32.mrb[0].mxu0
  %v386 = vadd.f32 %v337, %v385
  %v387 = vpop.f32.mrb[0].mxu0
  %v388 = vpop.f32.mrb[0].mxu0
  %v389 = vadd.f32 %v340, %v388
  %v390 = vpop.f32.mrb[0].mxu0
  %391 = vdwg.mxu0
  %vm392 = vcmask 523264
  %393 = vst.msk [vmem:[%s2] sm:$0xff] %vm392, %v378
  %394 = vst.msk [vmem:[%s2 + $0x8] sm:$0xff] %vm392, %v381
  %395 = vst.msk [vmem:[%s2 + $0x10] sm:$0xff] %vm392, %v386
  %396 = vst.msk [vmem:[%s2 + $0x18] sm:$0xff] %vm392, %v389
  %v397 = vsel %vm392, %v378, 0.0
  %v398 = vsel %vm392, %v381, 0.0
  %v399 = vadd.f32 %v397, %v398
  %v400 = vsel %vm392, %v386, 0.0
  %v401 = vadd.f32 %v399, %v400
  %v402 = vsel %vm392, %v389, 0.0
  %v403 = vadd.f32 %v401, %v402
  %v404 = vrot.slane %v403, 4
  %v405 = vadd.f32 %v403, %v404
  %v406 = vrot.slane %v405, 2
  %v407 = vadd.f32 %v405, %v406
  %v408 = vrot.slane %v407, 1
  %v409 = vadd.f32 %v407, %v408
  %v410 = vmul.f32 %v378, %v378
  %v411 = vmul.f32 %v381, %v381
  %v412 = vmul.f32 %v386, %v386
  %v413 = vmul.f32 %v389, %v389
  %v414 = vsel %vm392, %v410, 0.0
  %v415 = vsel %vm392, %v411, 0.0
  %v416 = vadd.f32 %v414, %v415
  %v417 = vsel %vm392, %v412, 0.0
  %v418 = vadd.f32 %v416, %v417
  %v419 = vsel %vm392, %v413, 0.0
  %v420 = vadd.f32 %v418, %v419
  %v421 = vrot.slane %v420, 4
  %v422 = vadd.f32 %v420, %v421
  %v423 = vrot.slane %v422, 2
  %v424 = vadd.f32 %v422, %v423
  %v425 = vrot.slane %v424, 1
  %v426 = vadd.f32 %v424, %v425
  %vm427 = vcmask 1040384
  %v428 = vsel %vm427, %v409, %v426
  %vm429 = vcmask 517120
  %430 = vst.msk [vmem:[%s3] sm:$0x3] %vm429, %v428
  // Predicated region
  $region10: #{dgcnn_forward.26} parent=0 // pred_check
    _
  $region11: #{dgcnn_forward.26} parent=0 // pred_check_branch
    %432 = sbr.rel (0) target = $region13
  $region12: #{dgcnn_forward.26} parent=0 // pred_region
    _
  $region13: #{dgcnn_forward.26} parent=0 // pred_fallthru
    _
  // Predicated region
  $region14: #{dgcnn_forward.26} parent=0 // pred_check
    _
  $region15: #{dgcnn_forward.26} parent=0 // pred_check_branch
    %434 = sbr.rel (0) target = $region17
  $region16: #{dgcnn_forward.26} parent=0 // pred_region
    _
  $region17: #{dgcnn_forward.26} parent=0 // pred_fallthru
    _
  // Predicated region
  $region18: #{dgcnn_forward.26} parent=0 // pred_check
    _
  $region19: #{dgcnn_forward.26} parent=0 // pred_check_branch
    %436 = sbr.rel (0) target = $region21
  $region20: #{dgcnn_forward.26} parent=0 // pred_region
    _
  $region21: #{dgcnn_forward.26} parent=0 // pred_fallthru
    _
  // Predicated region
  $region22: #{dgcnn_forward.26} parent=0 // pred_check
    _
  $region23: #{dgcnn_forward.26} parent=0 // pred_check_branch
    %438 = sbr.rel (0) target = $region25
  $region24: #{dgcnn_forward.26} parent=0 // pred_region
    _
  $region25: #{dgcnn_forward.26} parent=0 // pred_fallthru
    _

// kernel: dgcnn_forward.27
$region0: #{dgcnn_forward.27}
  #allocation0 [shape = 'u32[]', space=smem, size = 0x4, offset = 0x4, fixed_abs, tag = 'smem constant byte address 0x4 - core index']
  #allocation1 [shape = 'u32[144,128]{1,0:T(1,128)}', space=vmem, size = 0x12000, scoped, tag = 'internal scratch']
  %s0 = inlined_call_operand.vmem [shape: f32[32,64], index: 0, kind: input, shape index: {}]
  %s1 = inlined_call_operand.vmem [shape: f32[1,64], index: 1, kind: input, shape index: {}]
  %s2 = inlined_call_operand.vmem [shape: f32[1,64], index: 2, kind: input, shape index: {}]
  %s3 = inlined_call_operand.hbm [shape: f32[32,64], index: 3, kind: output, shape index: {}]
  %s4 = sld [smem:[#allocation0]]
  $region22: #{dgcnn_forward.27} parent=0
    _
  %s6 = ssub.s32 1, %s4
  %s7 = scalar_select 0, %s6, %s4
  $region1: #{dgcnn_forward.27} parent=0
    #allocation2 [shape = 'u8[16384]{0}', space=vmem, size = 0x4000, scoped, tag = 'output window, operand 0, single buffered']
    #allocation3 [shape = 's32[1]{0}', space=sflag, size = 0x4, scoped, tag = 'scoped memory for dgcnn_forward.27']
    %8 = vsyncpa [#allocation3], 0
    // Predicated region
    $region2: #{dgcnn_forward.27} parent=1 // pred_check
      _
    $region3: #{dgcnn_forward.27} parent=1 // pred_check_branch
      %10 = sbr.rel (0) target = $region5
    $region4: #{dgcnn_forward.27} parent=1 // pred_region
      _
    $region5: #{dgcnn_forward.27} parent=1 // pred_fallthru
      _
    // Predicated region
    $region6: #{dgcnn_forward.27} parent=1 // pred_check
      _
    $region7: #{dgcnn_forward.27} parent=1 // pred_check_branch
      %12 = sbr.rel (0) target = $region9
    $region8: #{dgcnn_forward.27} parent=1 // pred_region
      _
    $region9: #{dgcnn_forward.27} parent=1 // pred_fallthru
      _
    // Predicated region
    $region10: #{dgcnn_forward.27} parent=1 // pred_check
      _
    $region11: #{dgcnn_forward.27} parent=1 // pred_check_branch
      %14 = sbr.rel (0) target = $region13
    $region12: #{dgcnn_forward.27} parent=1 // pred_region
      _
    $region13: #{dgcnn_forward.27} parent=1 // pred_fallthru
      _
    %v15 = vld [vmem:[%s0] sm:$0xff]
    %v16 = vld [vmem:[%s0 + $0x8] sm:$0xff]
    %v17 = vld [vmem:[%s0 + $0x10] sm:$0xff]
    %v18 = vld [vmem:[%s0 + $0x18] sm:$0xff]
    %v19 = vld [vmem:[%s1] sm:$0x1]
    %v21 = vlaneseq
    %v22 = vshrl.u32 %v21, 7
    %v23 = vsub.s32 0, %v22
    %v24 = vrot.slane %v19, %v23
    %v26 = vmul.f32 %v15, %v24
    %v27 = vmul.f32 %v16, %v24
    %v28 = vmul.f32 %v17, %v24
    %v29 = vmul.f32 %v18, %v24
    %v30 = vld [vmem:[%s2] sm:$0x1]
    %v32 = vlaneseq
    %v33 = vshrl.u32 %v32, 7
    %v34 = vsub.s32 0, %v33
    %v35 = vrot.slane %v30, %v34
    %v37 = vadd.f32 %v26, %v35
    %v38 = vadd.f32 %v27, %v35
    %v39 = vadd.f32 %v28, %v35
    %v40 = vadd.f32 %v29, %v35
    %vm41 = vcmp.gt.f32.partialorder %v37, 0.0
    %vm42 = vcmp.gt.f32.partialorder %v38, 0.0
    %vm43 = vcmp.gt.f32.partialorder %v39, 0.0
    %vm44 = vcmp.gt.f32.partialorder %v40, 0.0
    %v45 = vmul.f32 %v37, 0.2
    %v46 = vmul.f32 %v38, 0.2
    %v47 = vmul.f32 %v39, 0.2
    %v48 = vmul.f32 %v40, 0.2
    %v49 = vsel %vm41, %v37, %v45
    %v50 = vsel %vm42, %v38, %v46
    %v51 = vsel %vm43, %v39, %v47
    %v52 = vsel %vm44, %v40, %v48
    %vm53 = vcmask 523264
    %54 = vst.msk [vmem:[#allocation2] sm:$0xff] %vm53, %v49
    %55 = vst.msk [vmem:[#allocation2 + $0x8] sm:$0xff] %vm53, %v50
    %56 = vst.msk [vmem:[#allocation2 + $0x10] sm:$0xff] %vm53, %v51
    %57 = vst.msk [vmem:[#allocation2 + $0x18] sm:$0xff] %vm53, %v52
    // Predicated region
    $region14: #{dgcnn_forward.27} parent=1 // pred_check
      _
    $region15: #{dgcnn_forward.27} parent=1 // pred_check_branch
      %59 = sbr.rel (0) target = $region17
    $region16: #{dgcnn_forward.27} parent=1 // pred_region
      %s61 = ssub.s32 512, 512
      %62 = vsyncadd [#allocation3], %s61
      %s63 = sshll.u32 [#allocation2], 4
      %s64 = int_to_ptr.vmem [resolvable:$true] %s63
      %69 = dma.vmem_to_hbm [thread:$0]  %s64, 512, %s3, [#allocation3], 128, 128, 8
    $region17: #{dgcnn_forward.27} parent=1 // pred_fallthru
      _
    // Predicated region
    $region18: #{dgcnn_forward.27} parent=1 // pred_check
      _
    $region19: #{dgcnn_forward.27} parent=1 // pred_check_branch
      %71 = sbr.rel (0) target = $region21
    $region20: #{dgcnn_forward.27} parent=1 // pred_region
      %72 = dma.done [#allocation3], 512
    $region21: #{dgcnn_forward.27} parent=1 // pred_fallthru
      _
    %73 = vsyncpa [#allocation3], 1

</llo_original>
